<compile_context>
chip_gen: v6e
topology: v6e:2x2x1
jax: 0.10.0
libtpu: 0.0.40
codegen_flags: <defaults>
</compile_context>

<pallas_src>
import functools
import math

import jax
import jax.numpy as jnp
from jax.experimental import pallas as pl
from jax.experimental.pallas import tpu as pltpu


# ----------------------------- in-kernel helpers (traced) -----------------------------

def _group_norm(x, w, b, pool, inv, eps, silu):
    """GroupNorm over a channel-major (C, N) f32 tile, single-pass stats in f32.

    Group aggregation of per-channel sums is done with two tiny matmuls against a
    precomputed one-hot (C, C) group-membership matrix (MXU slot, otherwise idle),
    instead of a serialized per-group select+reduce loop.
    """
    csum = jnp.sum(x, axis=1, keepdims=True)                       # (C, 1)
    csq = jnp.sum(x * x, axis=1, keepdims=True)                    # (C, 1)
    mean = jnp.dot(pool, csum, preferred_element_type=jnp.float32) * inv
    ex2 = jnp.dot(pool, csq, preferred_element_type=jnp.float32) * inv
    rstd = jax.lax.rsqrt(ex2 - mean * mean + eps)
    y = (x - mean) * (rstd * w) + b
    if silu:
        y = y * jax.nn.sigmoid(y)
    return y


def _conv3x3(y, w_mat, width):
    """3x3 'same' conv on a (Cin, H*W) f32 tile as ONE deep-K bf16 matmul.

    The 9 shifted/masked activation taps are built in VMEM (lane shifts via
    concat/slice + boundary masks), stacked along the sublane axis -> (9*Cin, N),
    and hit the MXU once against the (Cout, 9*Cin) bf16 weight matrix.
    """
    cin, n = y.shape
    wpos = jax.lax.broadcasted_iota(jnp.int32, (1, n), 1) % width
    not_left = wpos >= 1                       # source column valid when dw == -1
    not_right = wpos < (width - 1)             # source column valid when dw == +1
    taps = []
    for kh in range(3):
        for kw in range(3):
            dh, dw = kh - 1, kw - 1
            s = dh * width + dw                # flat spatial shift
            if s > 0:
                xs = jnp.concatenate(
                    [y[:, s:], jnp.zeros((cin, s), jnp.float32)], axis=1)
            elif s < 0:
                xs = jnp.concatenate(
                    [jnp.zeros((cin, -s), jnp.float32), y[:, :n + s]], axis=1)
            else:
                xs = y
            if dw == -1:
                xs = jnp.where(not_left, xs, 0.0)
            elif dw == 1:
                xs = jnp.where(not_right, xs, 0.0)
            taps.append(xs)
    stacked = jnp.concatenate(taps, axis=0).astype(jnp.bfloat16)   # (9*Cin, N)
    return jnp.dot(w_mat, stacked, preferred_element_type=jnp.float32)  # (Cout, N) f32


# ------------------------------- fused MidBlock kernel --------------------------------

def _make_midblock_kernel(*, num_layers, num_groups, num_heads, width, hw,
                          cin, cout, eps=1e-5):
    inv_in = 1.0 / float((cin // num_groups) * hw)
    inv_out = 1.0 / float((cout // num_groups) * hw)
    n_res = num_layers + 1

    def _resnet(h_in, t_col, refs, pool_first, inv_first, pool_out):
        gn1_w, gn1_b, c1w, c1b, gn2_w, gn2_b, c2w, c2b, rw, rb = refs
        y = _group_norm(h_in, gn1_w[...], gn1_b[...], pool_first, inv_first, eps, True)
        h = _conv3x3(y, c1w[...], width) + c1b[...] + t_col        # conv1 + t_emb add
        y = _group_norm(h, gn2_w[...], gn2_b[...], pool_out, inv_out, eps, True)
        h = _conv3x3(y, c2w[...], width) + c2b[...]                # conv2
        res = jnp.dot(rw[...], h_in.astype(jnp.bfloat16),          # fused 1x1 residual
                      preferred_element_type=jnp.float32) + rb[...]
        return h + res

    def _attn(x, refs, pool):
        nw, nb, wqkv, bqkv, wo, bo = refs
        c, s = x.shape
        hd = c // num_heads
        xn = _group_norm(x, nw[...], nb[...], pool, inv_out, eps, False)
        # Single (3C, C) matmul for Q/K/V (scale 1/sqrt(hd) folded into Q rows/bias).
        qkv = jnp.dot(wqkv[...], xn.astype(jnp.bfloat16),
                      preferred_element_type=jnp.float32) + bqkv[...]      # (3C, S)
        out = x + bo[...]                       # residual + out-proj bias (added once)
        for h in range(num_heads):              # static unroll
            qh = qkv[h * hd:(h + 1) * hd, :].astype(jnp.bfloat16)
            kh = qkv[c + h * hd:c + (h + 1) * hd, :].astype(jnp.bfloat16)
            vh = qkv[2 * c + h * hd:2 * c + (h + 1) * hd, :].astype(jnp.bfloat16)
            # scores[q, k] = sum_d qh[d, q] * kh[d, k]
            sc = jax.lax.dot_general(qh, kh, (((0,), (0,)), ((), ())),
                                     preferred_element_type=jnp.float32)   # (S, S)
            sc = sc - jnp.max(sc, axis=-1, keepdims=True)
            p = jnp.exp(sc)
            p = p * pl.reciprocal(jnp.sum(p, axis=-1, keepdims=True))      # exact recip
            # ctx[d, q] = sum_k vh[d, k] * p[q, k]
            ctx = jax.lax.dot_general(vh, p.astype(jnp.bfloat16),
                                      (((1,), (1,)), ((), ())),
                                      preferred_element_type=jnp.float32)  # (hd, S)
            # per-head output-projection accumulate (no head concatenate)
            out = out + jnp.dot(wo[h], ctx.astype(jnp.bfloat16),
                                preferred_element_type=jnp.float32)
        return out

    def kernel(*refs):
        o_ref = refs[-1]
        x_ref, t_ref, pool_in_ref, pool_out_ref = refs[:4]
        p = 4
        res_refs = [refs[p + 10 * i: p + 10 * (i + 1)] for i in range(n_res)]
        p += 10 * n_res
        attn_refs = [refs[p + 6 * i: p + 6 * (i + 1)] for i in range(num_layers)]

        pool_in = pool_in_ref[...]
        pool_out = pool_out_ref[...]

        out = x_ref[0].astype(jnp.float32)                                  # (Cin, HW)
        out = _resnet(out, t_ref[0, 0], res_refs[0], pool_in, inv_in, pool_out)
        for i in range(num_layers):
            out = _attn(out, attn_refs[i], pool_out)
            # TODO(synk): cross_attn=False path only; cross-attention not instantiated.
            out = _resnet(out, t_ref[0, i + 1], res_refs[i + 1],
                          pool_out, inv_out, pool_out)
        o_ref[0] = out.astype(o_ref.dtype)

    return kernel


# --------------------------------- pallas_call wrapper ---------------------------------

def _vmem_limit_bytes():
    try:
        cap = pltpu.get_tpu_info().vmem_capacity_bytes
        return int(cap * 3 // 4)                # generation-aware (v5e/v6e: 96M, v7x: 48M)
    except Exception:
        return 32 * 1024 * 1024


def _full_spec(a):
    nd = a.ndim
    return pl.BlockSpec(a.shape, lambda i: (0,) * nd)


def _batched_spec(shape):
    nd = len(shape)
    return pl.BlockSpec((1,) + tuple(shape[1:]), lambda i: (i,) + (0,) * (nd - 1))


def _group_pool(c, num_groups):
    gs = c // num_groups
    gid = jnp.arange(c) // gs
    return (gid[:, None] == gid[None, :]).astype(jnp.float32)     # (C, C) one-hot


def mid_block_forward(x_nchw, t_emb, kparams, *, num_heads, num_layers, norm_channels):
    b, c_in, h, w = x_nchw.shape
    hw = h * w
    x = x_nchw.reshape(b, c_in, hw)             # NCHW -> channel-major (B, C, HW) (free)
    c_out = kparams["resnet"][0]["conv1_b"].shape[0]
    assert c_in % norm_channels == 0 and c_out % norm_channels == 0
    assert c_out % num_heads == 0

    # Time-embedding branch (SiLU -> Linear) once per batch in plain XLA; the in-kernel
    # version was a degenerate single-output-lane matmul per grid step.
    # TODO(synk): t_emb is required here; the t_emb_dim=None variant is not instantiated.
    t_act = jax.nn.silu(t_emb.astype(jnp.float32))                 # (B, Td)
    t_cols = [t_act @ rp["temb_w"].T + rp["temb_b"] for rp in kparams["resnet"]]
    t_proj = jnp.stack(t_cols, axis=1)[..., None]                  # (B, L+1, Cout, 1)

    pool_in = _group_pool(c_in, norm_channels)
    pool_out = _group_pool(c_out, norm_channels)

    kern = _make_midblock_kernel(num_layers=num_layers, num_groups=norm_channels,
                                 num_heads=num_heads, width=w, hw=hw,
                                 cin=c_in, cout=c_out)

    res_keys = ("gn1_w", "gn1_b", "conv1_w", "conv1_b",
                "gn2_w", "gn2_b", "conv2_w", "conv2_b", "res_w", "res_b")
    attn_keys = ("norm_w", "norm_b", "wqkv", "bqkv", "wo", "bo")
    inputs = [x, t_proj, pool_in, pool_out]
    for rp in kparams["resnet"]:
        inputs += [rp[k] for k in res_keys]
    for ap in kparams["attn"]:
        inputs += [ap[k] for k in attn_keys]

    in_specs = [_batched_spec(x.shape), _batched_spec(t_proj.shape)]
    in_specs += [_full_spec(a) for a in inputs[2:]]

    out = pl.pallas_call(
        kern,
        out_shape=jax.ShapeDtypeStruct((b, c_out, hw), x.dtype),
        grid=(b,),
        in_specs=in_specs,
        out_specs=pl.BlockSpec((1, c_out, hw), lambda i: (i, 0, 0)),
        compiler_params=pltpu.CompilerParams(
            dimension_semantics=("parallel",),
            vmem_limit_bytes=_vmem_limit_bytes()),
    )(*inputs)
    return out.reshape(b, c_out, h, w)


# ---------------------------------- parameter handling ---------------------------------

def init_params(key, in_channels, out_channels, t_emb_dim, num_layers):
    """PyTorch-shaped parameters (same conventions as nn.Module state_dict)."""
    def nxt():
        nonlocal key
        key, sub = jax.random.split(key)
        return sub

    def rand(shape, scale=0.05):
        return scale * jax.random.normal(nxt(), shape, dtype=jnp.float32)

    params = {"resnet": [], "attn": []}
    for i in range(num_layers + 1):
        cin = in_channels if i == 0 else out_channels
        params["resnet"].append(dict(
            gn1_w=jnp.ones((cin,), jnp.float32),
            gn1_b=jnp.zeros((cin,), jnp.float32),
            conv1_w=rand((out_channels, cin, 3, 3)),
            conv1_b=rand((out_channels,)),
            temb_w=rand((out_channels, t_emb_dim)),
            temb_b=rand((out_channels,)),
            gn2_w=jnp.ones((out_channels,), jnp.float32),
            gn2_b=jnp.zeros((out_channels,), jnp.float32),
            conv2_w=rand((out_channels, out_channels, 3, 3)),
            conv2_b=rand((out_channels,)),
            res_w=rand((out_channels, cin, 1, 1)),
            res_b=rand((out_channels,)),
        ))
    for _ in range(num_layers):
        c = out_channels
        params["attn"].append(dict(
            norm_w=jnp.ones((c,), jnp.float32),
            norm_b=jnp.zeros((c,), jnp.float32),
            in_proj_w=rand((3 * c, c)),
            in_proj_b=rand((3 * c,)),
            out_proj_w=rand((c, c)),
            out_proj_b=rand((c,)),
        ))
    return params


def _conv3x3_to_mat(w):
    # PyTorch conv weight (Cout, Cin, 3, 3) -> (Cout, 9*Cin): column (kh*3+kw)*Cin + ci.
    cout, cin, kh, kw = w.shape
    return jnp.transpose(w, (0, 2, 3, 1)).reshape(cout, kh * kw * cin)


def prepare_params(params, *, num_heads):
    """One-time layout prep (outside jit): bf16 MXU weights, tap-stacked conv matrices,
    column biases, attention scale folded into Q, per-head out-proj blocks."""
    prepped = {"resnet": [], "attn": []}
    for p in params["resnet"]:
        prepped["resnet"].append(dict(
            gn1_w=p["gn1_w"][:, None], gn1_b=p["gn1_b"][:, None],
            conv1_w=_conv3x3_to_mat(p["conv1_w"]).astype(jnp.bfloat16),
            conv1_b=p["conv1_b"][:, None],
            temb_w=p["temb_w"], temb_b=p["temb_b"],        # used in XLA outside kernel
            gn2_w=p["gn2_w"][:, None], gn2_b=p["gn2_b"][:, None],
            conv2_w=_conv3x3_to_mat(p["conv2_w"]).astype(jnp.bfloat16),
            conv2_b=p["conv2_b"][:, None],
            res_w=p["res_w"][:, :, 0, 0].astype(jnp.bfloat16),   # (Cout, Cin) 1x1 conv
            res_b=p["res_b"][:, None],
        ))
    for a in params["attn"]:
        c = a["out_proj_w"].shape[0]
        hd = c // num_heads
        scale = 1.0 / math.sqrt(hd)
        wqkv = a["in_proj_w"].at[:c, :].multiply(scale)          # fold scale into Q rows
        bqkv = a["in_proj_b"].at[:c].multiply(scale)
        wo_heads = a["out_proj_w"].reshape(c, num_heads, hd).transpose(1, 0, 2)
        prepped["attn"].append(dict(
            norm_w=a["norm_w"][:, None], norm_b=a["norm_b"][:, None],
            wqkv=wqkv.astype(jnp.bfloat16),
            bqkv=bqkv[:, None].astype(jnp.float32),
            wo=wo_heads.astype(jnp.bfloat16),                    # (H, C, hd)
            bo=a["out_proj_b"][:, None].astype(jnp.float32),
        ))
    return prepped


# -------------------------------------- main -------------------------------------------

if __name__ == "__main__":
    B, IN_C, OUT_C = 2, 4, 8
    H = W = 16
    T_EMB = 16
    NUM_HEADS = 2
    NUM_LAYERS = 1
    NORM_CH = 4

    key = jax.random.PRNGKey(0)
    k_x, k_t, k_p = jax.random.split(key, 3)
    x = jax.random.normal(k_x, (B, IN_C, H, W), dtype=jnp.float32)
    t_emb = jax.random.normal(k_t, (B, T_EMB), dtype=jnp.float32)

    params = init_params(k_p, IN_C, OUT_C, T_EMB, NUM_LAYERS)
    kparams = prepare_params(params, num_heads=NUM_HEADS)   # weight re-layout, once

    fwd = jax.jit(functools.partial(mid_block_forward, num_heads=NUM_HEADS,
                                    num_layers=NUM_LAYERS, norm_channels=NORM_CH))
    y = fwd(x, t_emb, kparams)
    jax.block_until_ready(y)
    assert y.shape == (B, OUT_C, H, W), y.shape
    assert bool(jnp.all(jnp.isfinite(y))), "non-finite output"
    print("KERNEL_OK")
</pallas_src>

<mosaic_0001>
module attributes {stable_mosaic.version = 11 : i64} {
  func.func @kernel(%arg0: i32, %arg1: memref<1x4x256xf32, #tpu.memory_space<vmem>>, %arg2: memref<1x2x8x1xf32, #tpu.memory_space<vmem>>, %arg3: memref<4x4xf32, #tpu.memory_space<vmem>>, %arg4: memref<8x8xf32, #tpu.memory_space<vmem>>, %arg5: memref<4x1xf32, #tpu.memory_space<vmem>>, %arg6: memref<4x1xf32, #tpu.memory_space<vmem>>, %arg7: memref<8x36xbf16, #tpu.memory_space<vmem>>, %arg8: memref<8x1xf32, #tpu.memory_space<vmem>>, %arg9: memref<8x1xf32, #tpu.memory_space<vmem>>, %arg10: memref<8x1xf32, #tpu.memory_space<vmem>>, %arg11: memref<8x72xbf16, #tpu.memory_space<vmem>>, %arg12: memref<8x1xf32, #tpu.memory_space<vmem>>, %arg13: memref<8x4xbf16, #tpu.memory_space<vmem>>, %arg14: memref<8x1xf32, #tpu.memory_space<vmem>>, %arg15: memref<8x1xf32, #tpu.memory_space<vmem>>, %arg16: memref<8x1xf32, #tpu.memory_space<vmem>>, %arg17: memref<8x72xbf16, #tpu.memory_space<vmem>>, %arg18: memref<8x1xf32, #tpu.memory_space<vmem>>, %arg19: memref<8x1xf32, #tpu.memory_space<vmem>>, %arg20: memref<8x1xf32, #tpu.memory_space<vmem>>, %arg21: memref<8x72xbf16, #tpu.memory_space<vmem>>, %arg22: memref<8x1xf32, #tpu.memory_space<vmem>>, %arg23: memref<8x8xbf16, #tpu.memory_space<vmem>>, %arg24: memref<8x1xf32, #tpu.memory_space<vmem>>, %arg25: memref<8x1xf32, #tpu.memory_space<vmem>>, %arg26: memref<8x1xf32, #tpu.memory_space<vmem>>, %arg27: memref<24x8xbf16, #tpu.memory_space<vmem>>, %arg28: memref<24x1xf32, #tpu.memory_space<vmem>>, %arg29: memref<2x8x4xbf16, #tpu.memory_space<vmem>>, %arg30: memref<8x1xf32, #tpu.memory_space<vmem>>, %arg31: memref<1x8x256xf32, #tpu.memory_space<vmem>>) attributes {dimension_semantics = [#tpu.dimension_semantics<parallel>], iteration_bounds = array<i64: 2>, scalar_prefetch = 0 : i64, scratch_operands = 0 : i64, tpu.core_type = #tpu.core_type<tc>, window_params = [{transform_indices = @transform_0, window_bounds = array<i64: 1, 4, 256>}, {transform_indices = @transform_1, window_bounds = array<i64: 1, 2, 8, 1>}, {pipeline_mode = #tpu.pipeline_mode<synchronous>, transform_indices = @transform_2, window_bounds = array<i64: 4, 4>}, {pipeline_mode = #tpu.pipeline_mode<synchronous>, transform_indices = @transform_3, window_bounds = array<i64: 8, 8>}, {pipeline_mode = #tpu.pipeline_mode<synchronous>, transform_indices = @transform_4, window_bounds = array<i64: 4, 1>}, {pipeline_mode = #tpu.pipeline_mode<synchronous>, transform_indices = @transform_5, window_bounds = array<i64: 4, 1>}, {pipeline_mode = #tpu.pipeline_mode<synchronous>, transform_indices = @transform_6, window_bounds = array<i64: 8, 36>}, {pipeline_mode = #tpu.pipeline_mode<synchronous>, transform_indices = @transform_7, window_bounds = array<i64: 8, 1>}, {pipeline_mode = #tpu.pipeline_mode<synchronous>, transform_indices = @transform_8, window_bounds = array<i64: 8, 1>}, {pipeline_mode = #tpu.pipeline_mode<synchronous>, transform_indices = @transform_9, window_bounds = array<i64: 8, 1>}, {pipeline_mode = #tpu.pipeline_mode<synchronous>, transform_indices = @transform_10, window_bounds = array<i64: 8, 72>}, {pipeline_mode = #tpu.pipeline_mode<synchronous>, transform_indices = @transform_11, window_bounds = array<i64: 8, 1>}, {pipeline_mode = #tpu.pipeline_mode<synchronous>, transform_indices = @transform_12, window_bounds = array<i64: 8, 4>}, {pipeline_mode = #tpu.pipeline_mode<synchronous>, transform_indices = @transform_13, window_bounds = array<i64: 8, 1>}, {pipeline_mode = #tpu.pipeline_mode<synchronous>, transform_indices = @transform_14, window_bounds = array<i64: 8, 1>}, {pipeline_mode = #tpu.pipeline_mode<synchronous>, transform_indices = @transform_15, window_bounds = array<i64: 8, 1>}, {pipeline_mode = #tpu.pipeline_mode<synchronous>, transform_indices = @transform_16, window_bounds = array<i64: 8, 72>}, {pipeline_mode = #tpu.pipeline_mode<synchronous>, transform_indices = @transform_17, window_bounds = array<i64: 8, 1>}, {pipeline_mode = #tpu.pipeline_mode<synchronous>, transform_indices = @transform_18, window_bounds = array<i64: 8, 1>}, {pipeline_mode = #tpu.pipeline_mode<synchronous>, transform_indices = @transform_19, window_bounds = array<i64: 8, 1>}, {pipeline_mode = #tpu.pipeline_mode<synchronous>, transform_indices = @transform_20, window_bounds = array<i64: 8, 72>}, {pipeline_mode = #tpu.pipeline_mode<synchronous>, transform_indices = @transform_21, window_bounds = array<i64: 8, 1>}, {pipeline_mode = #tpu.pipeline_mode<synchronous>, transform_indices = @transform_22, window_bounds = array<i64: 8, 8>}, {pipeline_mode = #tpu.pipeline_mode<synchronous>, transform_indices = @transform_23, window_bounds = array<i64: 8, 1>}, {pipeline_mode = #tpu.pipeline_mode<synchronous>, transform_indices = @transform_24, window_bounds = array<i64: 8, 1>}, {pipeline_mode = #tpu.pipeline_mode<synchronous>, transform_indices = @transform_25, window_bounds = array<i64: 8, 1>}, {pipeline_mode = #tpu.pipeline_mode<synchronous>, transform_indices = @transform_26, window_bounds = array<i64: 24, 8>}, {pipeline_mode = #tpu.pipeline_mode<synchronous>, transform_indices = @transform_27, window_bounds = array<i64: 24, 1>}, {pipeline_mode = #tpu.pipeline_mode<synchronous>, transform_indices = @transform_28, window_bounds = array<i64: 2, 8, 4>}, {pipeline_mode = #tpu.pipeline_mode<synchronous>, transform_indices = @transform_29, window_bounds = array<i64: 8, 1>}, {transform_indices = @transform_30, window_bounds = array<i64: 1, 8, 256>}]} {
    %c0 = arith.constant 0 : index
    %c0_0 = arith.constant 0 : index
    %0 = vector.load %arg3[%c0, %c0_0] : memref<4x4xf32, #tpu.memory_space<vmem>>, vector<4x4xf32>
    %c0_1 = arith.constant 0 : index
    %c0_2 = arith.constant 0 : index
    %1 = vector.load %arg4[%c0_1, %c0_2] : memref<8x8xf32, #tpu.memory_space<vmem>>, vector<8x8xf32>
    %c0_3 = arith.constant 0 : index
    %c0_4 = arith.constant 0 : index
    %c0_5 = arith.constant 0 : index
    %2 = vector.load %arg1[%c0_3, %c0_4, %c0_5] : memref<1x4x256xf32, #tpu.memory_space<vmem>>, vector<1x4x256xf32>
    %3 = vector.shape_cast %2 : vector<1x4x256xf32> to vector<4x256xf32>
    %c0_6 = arith.constant 0 : index
    %c0_7 = arith.constant 0 : index
    %c0_8 = arith.constant 0 : index
    %c0_9 = arith.constant 0 : index
    %4 = vector.load %arg2[%c0_6, %c0_7, %c0_8, %c0_9] : memref<1x2x8x1xf32, #tpu.memory_space<vmem>>, vector<1x1x8x1xf32>
    %5 = vector.shape_cast %4 : vector<1x1x8x1xf32> to vector<8x1xf32>
    %c0_10 = arith.constant 0 : index
    %c0_11 = arith.constant 0 : index
    %6 = vector.load %arg5[%c0_10, %c0_11] : memref<4x1xf32, #tpu.memory_space<vmem>>, vector<4x1xf32>
    %c0_12 = arith.constant 0 : index
    %c0_13 = arith.constant 0 : index
    %7 = vector.load %arg6[%c0_12, %c0_13] : memref<4x1xf32, #tpu.memory_space<vmem>>, vector<4x1xf32>
    %cst = arith.constant dense<0.000000e+00> : vector<4xf32>
    %8 = vector.multi_reduction <add>, %3, %cst [1] : vector<4x256xf32> to vector<4xf32>
    %9 = vector.shape_cast %8 : vector<4xf32> to vector<4x1xf32>
    %10 = arith.mulf %3, %3 : vector<4x256xf32>
    %cst_14 = arith.constant dense<0.000000e+00> : vector<4xf32>
    %11 = vector.multi_reduction <add>, %10, %cst_14 [1] : vector<4x256xf32> to vector<4xf32>
    %12 = vector.shape_cast %11 : vector<4xf32> to vector<4x1xf32>
    %cst_15 = arith.constant dense<0.000000e+00> : vector<4x1xf32>
    %13 = tpu.matmul %0, %9, %cst_15 {dimension_numbers = #tpu.dot_dimension_numbers<[1], [0], [0], [1], [0, 0, 1, 1], [], []>} : vector<4x4xf32>, vector<4x1xf32>, vector<4x1xf32> -> vector<4x1xf32>
    %cst_16 = arith.constant 3.906250e-03 : f32
    %14 = vector.broadcast %cst_16 : f32 to vector<4x1xf32>
    %15 = arith.mulf %13, %14 : vector<4x1xf32>
    %cst_17 = arith.constant dense<0.000000e+00> : vector<4x1xf32>
    %16 = tpu.matmul %0, %12, %cst_17 {dimension_numbers = #tpu.dot_dimension_numbers<[1], [0], [0], [1], [0, 0, 1, 1], [], []>} : vector<4x4xf32>, vector<4x1xf32>, vector<4x1xf32> -> vector<4x1xf32>
    %cst_18 = arith.constant 3.906250e-03 : f32
    %17 = vector.broadcast %cst_18 : f32 to vector<4x1xf32>
    %18 = arith.mulf %16, %17 : vector<4x1xf32>
    %19 = arith.mulf %15, %15 : vector<4x1xf32>
    %20 = arith.subf %18, %19 : vector<4x1xf32>
    %cst_19 = arith.constant 9.99999974E-6 : f32
    %21 = vector.broadcast %cst_19 : f32 to vector<4x1xf32>
    %22 = arith.addf %20, %21 : vector<4x1xf32>
    %23 = math.rsqrt %22 : vector<4x1xf32>
    %24 = vector.broadcast %15 : vector<4x1xf32> to vector<4x256xf32>
    %25 = arith.subf %3, %24 : vector<4x256xf32>
    %26 = arith.mulf %23, %6 : vector<4x1xf32>
    %27 = vector.broadcast %26 : vector<4x1xf32> to vector<4x256xf32>
    %28 = arith.mulf %25, %27 : vector<4x256xf32>
    %29 = vector.broadcast %7 : vector<4x1xf32> to vector<4x256xf32>
    %30 = arith.addf %28, %29 : vector<4x256xf32>
    %31 = arith.negf %30 : vector<4x256xf32>
    %32 = math.exp %31 : vector<4x256xf32>
    %cst_20 = arith.constant 1.000000e+00 : f32
    %33 = vector.broadcast %cst_20 : f32 to vector<4x256xf32>
    %34 = arith.addf %33, %32 : vector<4x256xf32>
    %35 = arith.divf %33, %34 : vector<4x256xf32>
    %36 = arith.mulf %30, %35 : vector<4x256xf32>
    %c0_21 = arith.constant 0 : index
    %c0_22 = arith.constant 0 : index
    %37 = vector.load %arg7[%c0_21, %c0_22] : memref<8x36xbf16, #tpu.memory_space<vmem>>, vector<8x36xbf16>
    %38 = tpu.iota {dimensions = array<i32: 1>} : vector<1x256xi32>
    %c16_i32 = arith.constant 16 : i32
    %c0_i32 = arith.constant 0 : i32
    %39 = arith.cmpi eq, %c16_i32, %c0_i32 : i32
    %c1_i32 = arith.constant 1 : i32
    %40 = arith.select %39, %c1_i32, %c16_i32 : i32
    %41 = vector.broadcast %40 : i32 to vector<1x256xi32>
    %42 = arith.remsi %38, %41 : vector<1x256xi32>
    %c0_i32_23 = arith.constant 0 : i32
    %43 = vector.broadcast %c0_i32_23 : i32 to vector<1x256xi32>
    %44 = arith.cmpi ne, %42, %43 : vector<1x256xi32>
    %c0_i32_24 = arith.constant 0 : i32
    %45 = vector.broadcast %c0_i32_24 : i32 to vector<1x256xi32>
    %46 = arith.cmpi slt, %42, %45 : vector<1x256xi32>
    %c0_i32_25 = arith.constant 0 : i32
    %47 = arith.cmpi slt, %40, %c0_i32_25 : i32
    %48 = vector.broadcast %47 : i1 to vector<1x256xi1>
    %49 = vector.broadcast %48 : vector<1x256xi1> to vector<1x256xi1>
    %50 = arith.xori %46, %49 : vector<1x256xi1>
    %51 = arith.andi %50, %44 : vector<1x256xi1>
    %52 = vector.broadcast %40 : i32 to vector<1x256xi32>
    %53 = arith.addi %42, %52 : vector<1x256xi32>
    %54 = arith.select %51, %53, %42 : vector<1x256xi1>, vector<1x256xi32>
    %c1_i32_26 = arith.constant 1 : i32
    %55 = vector.broadcast %c1_i32_26 : i32 to vector<1x256xi32>
    %56 = arith.cmpi sge, %54, %55 : vector<1x256xi32>
    %c15_i32 = arith.constant 15 : i32
    %57 = vector.broadcast %c15_i32 : i32 to vector<1x256xi32>
    %58 = arith.cmpi slt, %54, %57 : vector<1x256xi32>
    %cst_27 = arith.constant 0.000000e+00 : f32
    %59 = vector.broadcast %cst_27 : f32 to vector<4x17xf32>
    %60 = vector.extract_strided_slice %36 {offsets = [0, 0], sizes = [4, 239], strides = [1, 1]} : vector<4x256xf32> to vector<4x239xf32>
    %61 = tpu.concatenate %59, %60 in 1 : vector<4x17xf32>, vector<4x239xf32> -> vector<4x256xf32>
    %cst_28 = arith.constant 0.000000e+00 : f32
    %62 = vector.shape_cast %56 : vector<1x256xi1> to vector<1x256xi1>
    %63 = vector.broadcast %62 : vector<1x256xi1> to vector<4x256xi1>
    %64 = vector.broadcast %cst_28 : f32 to vector<4x256xf32>
    %65 = arith.select %63, %61, %64 : vector<4x256xi1>, vector<4x256xf32>
    %cst_29 = arith.constant 0.000000e+00 : f32
    %66 = vector.broadcast %cst_29 : f32 to vector<4x16xf32>
    %67 = vector.extract_strided_slice %36 {offsets = [0, 0], sizes = [4, 240], strides = [1, 1]} : vector<4x256xf32> to vector<4x240xf32>
    %68 = tpu.concatenate %66, %67 in 1 : vector<4x16xf32>, vector<4x240xf32> -> vector<4x256xf32>
    %cst_30 = arith.constant 0.000000e+00 : f32
    %69 = vector.broadcast %cst_30 : f32 to vector<4x15xf32>
    %70 = vector.extract_strided_slice %36 {offsets = [0, 0], sizes = [4, 241], strides = [1, 1]} : vector<4x256xf32> to vector<4x241xf32>
    %71 = tpu.concatenate %69, %70 in 1 : vector<4x15xf32>, vector<4x241xf32> -> vector<4x256xf32>
    %cst_31 = arith.constant 0.000000e+00 : f32
    %72 = vector.shape_cast %58 : vector<1x256xi1> to vector<1x256xi1>
    %73 = vector.broadcast %72 : vector<1x256xi1> to vector<4x256xi1>
    %74 = vector.broadcast %cst_31 : f32 to vector<4x256xf32>
    %75 = arith.select %73, %71, %74 : vector<4x256xi1>, vector<4x256xf32>
    %cst_32 = arith.constant 0.000000e+00 : f32
    %76 = vector.broadcast %cst_32 : f32 to vector<4x1xf32>
    %77 = vector.extract_strided_slice %36 {offsets = [0, 0], sizes = [4, 255], strides = [1, 1]} : vector<4x256xf32> to vector<4x255xf32>
    %78 = tpu.concatenate %76, %77 in 1 : vector<4x1xf32>, vector<4x255xf32> -> vector<4x256xf32>
    %cst_33 = arith.constant 0.000000e+00 : f32
    %79 = vector.shape_cast %56 : vector<1x256xi1> to vector<1x256xi1>
    %80 = vector.broadcast %79 : vector<1x256xi1> to vector<4x256xi1>
    %81 = vector.broadcast %cst_33 : f32 to vector<4x256xf32>
    %82 = arith.select %80, %78, %81 : vector<4x256xi1>, vector<4x256xf32>
    %83 = vector.extract_strided_slice %36 {offsets = [0, 1], sizes = [4, 255], strides = [1, 1]} : vector<4x256xf32> to vector<4x255xf32>
    %cst_34 = arith.constant 0.000000e+00 : f32
    %84 = vector.broadcast %cst_34 : f32 to vector<4x1xf32>
    %85 = tpu.concatenate %83, %84 in 1 : vector<4x255xf32>, vector<4x1xf32> -> vector<4x256xf32>
    %cst_35 = arith.constant 0.000000e+00 : f32
    %86 = vector.shape_cast %58 : vector<1x256xi1> to vector<1x256xi1>
    %87 = vector.broadcast %86 : vector<1x256xi1> to vector<4x256xi1>
    %88 = vector.broadcast %cst_35 : f32 to vector<4x256xf32>
    %89 = arith.select %87, %85, %88 : vector<4x256xi1>, vector<4x256xf32>
    %90 = vector.extract_strided_slice %36 {offsets = [0, 15], sizes = [4, 241], strides = [1, 1]} : vector<4x256xf32> to vector<4x241xf32>
    %cst_36 = arith.constant 0.000000e+00 : f32
    %91 = vector.broadcast %cst_36 : f32 to vector<4x15xf32>
    %92 = tpu.concatenate %90, %91 in 1 : vector<4x241xf32>, vector<4x15xf32> -> vector<4x256xf32>
    %cst_37 = arith.constant 0.000000e+00 : f32
    %93 = vector.shape_cast %56 : vector<1x256xi1> to vector<1x256xi1>
    %94 = vector.broadcast %93 : vector<1x256xi1> to vector<4x256xi1>
    %95 = vector.broadcast %cst_37 : f32 to vector<4x256xf32>
    %96 = arith.select %94, %92, %95 : vector<4x256xi1>, vector<4x256xf32>
    %97 = vector.extract_strided_slice %36 {offsets = [0, 16], sizes = [4, 240], strides = [1, 1]} : vector<4x256xf32> to vector<4x240xf32>
    %cst_38 = arith.constant 0.000000e+00 : f32
    %98 = vector.broadcast %cst_38 : f32 to vector<4x16xf32>
    %99 = tpu.concatenate %97, %98 in 1 : vector<4x240xf32>, vector<4x16xf32> -> vector<4x256xf32>
    %100 = vector.extract_strided_slice %36 {offsets = [0, 17], sizes = [4, 239], strides = [1, 1]} : vector<4x256xf32> to vector<4x239xf32>
    %cst_39 = arith.constant 0.000000e+00 : f32
    %101 = vector.broadcast %cst_39 : f32 to vector<4x17xf32>
    %102 = tpu.concatenate %100, %101 in 1 : vector<4x239xf32>, vector<4x17xf32> -> vector<4x256xf32>
    %cst_40 = arith.constant 0.000000e+00 : f32
    %103 = vector.shape_cast %58 : vector<1x256xi1> to vector<1x256xi1>
    %104 = vector.broadcast %103 : vector<1x256xi1> to vector<4x256xi1>
    %105 = vector.broadcast %cst_40 : f32 to vector<4x256xf32>
    %106 = arith.select %104, %102, %105 : vector<4x256xi1>, vector<4x256xf32>
    %107 = tpu.concatenate %65, %68, %75, %82, %36, %89, %96, %99, %106 in 0 : vector<4x256xf32>, vector<4x256xf32>, vector<4x256xf32>, vector<4x256xf32>, vector<4x256xf32>, vector<4x256xf32>, vector<4x256xf32>, vector<4x256xf32>, vector<4x256xf32> -> vector<36x256xf32>
    %108 = arith.truncf %107 : vector<36x256xf32> to vector<36x256xbf16>
    %cst_41 = arith.constant dense<0.000000e+00> : vector<8x256xf32>
    %109 = tpu.matmul %37, %108, %cst_41 {dimension_numbers = #tpu.dot_dimension_numbers<[1], [0], [0], [1], [0, 0, 1, 1], [], []>} : vector<8x36xbf16>, vector<36x256xbf16>, vector<8x256xf32> -> vector<8x256xf32>
    %c0_42 = arith.constant 0 : index
    %c0_43 = arith.constant 0 : index
    %110 = vector.load %arg8[%c0_42, %c0_43] : memref<8x1xf32, #tpu.memory_space<vmem>>, vector<8x1xf32>
    %111 = vector.broadcast %110 : vector<8x1xf32> to vector<8x256xf32>
    %112 = arith.addf %109, %111 : vector<8x256xf32>
    %113 = vector.broadcast %5 : vector<8x1xf32> to vector<8x256xf32>
    %114 = arith.addf %112, %113 : vector<8x256xf32>
    %c0_44 = arith.constant 0 : index
    %c0_45 = arith.constant 0 : index
    %115 = vector.load %arg9[%c0_44, %c0_45] : memref<8x1xf32, #tpu.memory_space<vmem>>, vector<8x1xf32>
    %c0_46 = arith.constant 0 : index
    %c0_47 = arith.constant 0 : index
    %116 = vector.load %arg10[%c0_46, %c0_47] : memref<8x1xf32, #tpu.memory_space<vmem>>, vector<8x1xf32>
    %cst_48 = arith.constant dense<0.000000e+00> : vector<8xf32>
    %117 = vector.multi_reduction <add>, %114, %cst_48 [1] : vector<8x256xf32> to vector<8xf32>
    %118 = vector.shape_cast %117 : vector<8xf32> to vector<8x1xf32>
    %119 = arith.mulf %114, %114 : vector<8x256xf32>
    %cst_49 = arith.constant dense<0.000000e+00> : vector<8xf32>
    %120 = vector.multi_reduction <add>, %119, %cst_49 [1] : vector<8x256xf32> to vector<8xf32>
    %121 = vector.shape_cast %120 : vector<8xf32> to vector<8x1xf32>
    %cst_50 = arith.constant dense<0.000000e+00> : vector<8x1xf32>
    %122 = tpu.matmul %1, %118, %cst_50 {dimension_numbers = #tpu.dot_dimension_numbers<[1], [0], [0], [1], [0, 0, 1, 1], [], []>} : vector<8x8xf32>, vector<8x1xf32>, vector<8x1xf32> -> vector<8x1xf32>
    %cst_51 = arith.constant 0.001953125 : f32
    %123 = vector.broadcast %cst_51 : f32 to vector<8x1xf32>
    %124 = arith.mulf %122, %123 : vector<8x1xf32>
    %cst_52 = arith.constant dense<0.000000e+00> : vector<8x1xf32>
    %125 = tpu.matmul %1, %121, %cst_52 {dimension_numbers = #tpu.dot_dimension_numbers<[1], [0], [0], [1], [0, 0, 1, 1], [], []>} : vector<8x8xf32>, vector<8x1xf32>, vector<8x1xf32> -> vector<8x1xf32>
    %cst_53 = arith.constant 0.001953125 : f32
    %126 = vector.broadcast %cst_53 : f32 to vector<8x1xf32>
    %127 = arith.mulf %125, %126 : vector<8x1xf32>
    %128 = arith.mulf %124, %124 : vector<8x1xf32>
    %129 = arith.subf %127, %128 : vector<8x1xf32>
    %cst_54 = arith.constant 9.99999974E-6 : f32
    %130 = vector.broadcast %cst_54 : f32 to vector<8x1xf32>
    %131 = arith.addf %129, %130 : vector<8x1xf32>
    %132 = math.rsqrt %131 : vector<8x1xf32>
    %133 = vector.broadcast %124 : vector<8x1xf32> to vector<8x256xf32>
    %134 = arith.subf %114, %133 : vector<8x256xf32>
    %135 = arith.mulf %132, %115 : vector<8x1xf32>
    %136 = vector.broadcast %135 : vector<8x1xf32> to vector<8x256xf32>
    %137 = arith.mulf %134, %136 : vector<8x256xf32>
    %138 = vector.broadcast %116 : vector<8x1xf32> to vector<8x256xf32>
    %139 = arith.addf %137, %138 : vector<8x256xf32>
    %140 = arith.negf %139 : vector<8x256xf32>
    %141 = math.exp %140 : vector<8x256xf32>
    %cst_55 = arith.constant 1.000000e+00 : f32
    %142 = vector.broadcast %cst_55 : f32 to vector<8x256xf32>
    %143 = arith.addf %142, %141 : vector<8x256xf32>
    %144 = arith.divf %142, %143 : vector<8x256xf32>
    %145 = arith.mulf %139, %144 : vector<8x256xf32>
    %c0_56 = arith.constant 0 : index
    %c0_57 = arith.constant 0 : index
    %146 = vector.load %arg11[%c0_56, %c0_57] : memref<8x72xbf16, #tpu.memory_space<vmem>>, vector<8x72xbf16>
    %147 = tpu.iota {dimensions = array<i32: 1>} : vector<1x256xi32>
    %c16_i32_58 = arith.constant 16 : i32
    %c0_i32_59 = arith.constant 0 : i32
    %148 = arith.cmpi eq, %c16_i32_58, %c0_i32_59 : i32
    %c1_i32_60 = arith.constant 1 : i32
    %149 = arith.select %148, %c1_i32_60, %c16_i32_58 : i32
    %150 = vector.broadcast %149 : i32 to vector<1x256xi32>
    %151 = arith.remsi %147, %150 : vector<1x256xi32>
    %c0_i32_61 = arith.constant 0 : i32
    %152 = vector.broadcast %c0_i32_61 : i32 to vector<1x256xi32>
    %153 = arith.cmpi ne, %151, %152 : vector<1x256xi32>
    %c0_i32_62 = arith.constant 0 : i32
    %154 = vector.broadcast %c0_i32_62 : i32 to vector<1x256xi32>
    %155 = arith.cmpi slt, %151, %154 : vector<1x256xi32>
    %c0_i32_63 = arith.constant 0 : i32
    %156 = arith.cmpi slt, %149, %c0_i32_63 : i32
    %157 = vector.broadcast %156 : i1 to vector<1x256xi1>
    %158 = vector.broadcast %157 : vector<1x256xi1> to vector<1x256xi1>
    %159 = arith.xori %155, %158 : vector<1x256xi1>
    %160 = arith.andi %159, %153 : vector<1x256xi1>
    %161 = vector.broadcast %149 : i32 to vector<1x256xi32>
    %162 = arith.addi %151, %161 : vector<1x256xi32>
    %163 = arith.select %160, %162, %151 : vector<1x256xi1>, vector<1x256xi32>
    %c1_i32_64 = arith.constant 1 : i32
    %164 = vector.broadcast %c1_i32_64 : i32 to vector<1x256xi32>
    %165 = arith.cmpi sge, %163, %164 : vector<1x256xi32>
    %c15_i32_65 = arith.constant 15 : i32
    %166 = vector.broadcast %c15_i32_65 : i32 to vector<1x256xi32>
    %167 = arith.cmpi slt, %163, %166 : vector<1x256xi32>
    %cst_66 = arith.constant 0.000000e+00 : f32
    %168 = vector.broadcast %cst_66 : f32 to vector<8x17xf32>
    %169 = vector.extract_strided_slice %145 {offsets = [0, 0], sizes = [8, 239], strides = [1, 1]} : vector<8x256xf32> to vector<8x239xf32>
    %170 = tpu.concatenate %168, %169 in 1 : vector<8x17xf32>, vector<8x239xf32> -> vector<8x256xf32>
    %cst_67 = arith.constant 0.000000e+00 : f32
    %171 = vector.shape_cast %165 : vector<1x256xi1> to vector<1x256xi1>
    %172 = vector.broadcast %171 : vector<1x256xi1> to vector<8x256xi1>
    %173 = vector.broadcast %cst_67 : f32 to vector<8x256xf32>
    %174 = arith.select %172, %170, %173 : vector<8x256xi1>, vector<8x256xf32>
    %cst_68 = arith.constant 0.000000e+00 : f32
    %175 = vector.broadcast %cst_68 : f32 to vector<8x16xf32>
    %176 = vector.extract_strided_slice %145 {offsets = [0, 0], sizes = [8, 240], strides = [1, 1]} : vector<8x256xf32> to vector<8x240xf32>
    %177 = tpu.concatenate %175, %176 in 1 : vector<8x16xf32>, vector<8x240xf32> -> vector<8x256xf32>
    %cst_69 = arith.constant 0.000000e+00 : f32
    %178 = vector.broadcast %cst_69 : f32 to vector<8x15xf32>
    %179 = vector.extract_strided_slice %145 {offsets = [0, 0], sizes = [8, 241], strides = [1, 1]} : vector<8x256xf32> to vector<8x241xf32>
    %180 = tpu.concatenate %178, %179 in 1 : vector<8x15xf32>, vector<8x241xf32> -> vector<8x256xf32>
    %cst_70 = arith.constant 0.000000e+00 : f32
    %181 = vector.shape_cast %167 : vector<1x256xi1> to vector<1x256xi1>
    %182 = vector.broadcast %181 : vector<1x256xi1> to vector<8x256xi1>
    %183 = vector.broadcast %cst_70 : f32 to vector<8x256xf32>
    %184 = arith.select %182, %180, %183 : vector<8x256xi1>, vector<8x256xf32>
    %cst_71 = arith.constant 0.000000e+00 : f32
    %185 = vector.broadcast %cst_71 : f32 to vector<8x1xf32>
    %186 = vector.extract_strided_slice %145 {offsets = [0, 0], sizes = [8, 255], strides = [1, 1]} : vector<8x256xf32> to vector<8x255xf32>
    %187 = tpu.concatenate %185, %186 in 1 : vector<8x1xf32>, vector<8x255xf32> -> vector<8x256xf32>
    %cst_72 = arith.constant 0.000000e+00 : f32
    %188 = vector.shape_cast %165 : vector<1x256xi1> to vector<1x256xi1>
    %189 = vector.broadcast %188 : vector<1x256xi1> to vector<8x256xi1>
    %190 = vector.broadcast %cst_72 : f32 to vector<8x256xf32>
    %191 = arith.select %189, %187, %190 : vector<8x256xi1>, vector<8x256xf32>
    %192 = vector.extract_strided_slice %145 {offsets = [0, 1], sizes = [8, 255], strides = [1, 1]} : vector<8x256xf32> to vector<8x255xf32>
    %cst_73 = arith.constant 0.000000e+00 : f32
    %193 = vector.broadcast %cst_73 : f32 to vector<8x1xf32>
    %194 = tpu.concatenate %192, %193 in 1 : vector<8x255xf32>, vector<8x1xf32> -> vector<8x256xf32>
    %cst_74 = arith.constant 0.000000e+00 : f32
    %195 = vector.shape_cast %167 : vector<1x256xi1> to vector<1x256xi1>
    %196 = vector.broadcast %195 : vector<1x256xi1> to vector<8x256xi1>
    %197 = vector.broadcast %cst_74 : f32 to vector<8x256xf32>
    %198 = arith.select %196, %194, %197 : vector<8x256xi1>, vector<8x256xf32>
    %199 = vector.extract_strided_slice %145 {offsets = [0, 15], sizes = [8, 241], strides = [1, 1]} : vector<8x256xf32> to vector<8x241xf32>
    %cst_75 = arith.constant 0.000000e+00 : f32
    %200 = vector.broadcast %cst_75 : f32 to vector<8x15xf32>
    %201 = tpu.concatenate %199, %200 in 1 : vector<8x241xf32>, vector<8x15xf32> -> vector<8x256xf32>
    %cst_76 = arith.constant 0.000000e+00 : f32
    %202 = vector.shape_cast %165 : vector<1x256xi1> to vector<1x256xi1>
    %203 = vector.broadcast %202 : vector<1x256xi1> to vector<8x256xi1>
    %204 = vector.broadcast %cst_76 : f32 to vector<8x256xf32>
    %205 = arith.select %203, %201, %204 : vector<8x256xi1>, vector<8x256xf32>
    %206 = vector.extract_strided_slice %145 {offsets = [0, 16], sizes = [8, 240], strides = [1, 1]} : vector<8x256xf32> to vector<8x240xf32>
    %cst_77 = arith.constant 0.000000e+00 : f32
    %207 = vector.broadcast %cst_77 : f32 to vector<8x16xf32>
    %208 = tpu.concatenate %206, %207 in 1 : vector<8x240xf32>, vector<8x16xf32> -> vector<8x256xf32>
    %209 = vector.extract_strided_slice %145 {offsets = [0, 17], sizes = [8, 239], strides = [1, 1]} : vector<8x256xf32> to vector<8x239xf32>
    %cst_78 = arith.constant 0.000000e+00 : f32
    %210 = vector.broadcast %cst_78 : f32 to vector<8x17xf32>
    %211 = tpu.concatenate %209, %210 in 1 : vector<8x239xf32>, vector<8x17xf32> -> vector<8x256xf32>
    %cst_79 = arith.constant 0.000000e+00 : f32
    %212 = vector.shape_cast %167 : vector<1x256xi1> to vector<1x256xi1>
    %213 = vector.broadcast %212 : vector<1x256xi1> to vector<8x256xi1>
    %214 = vector.broadcast %cst_79 : f32 to vector<8x256xf32>
    %215 = arith.select %213, %211, %214 : vector<8x256xi1>, vector<8x256xf32>
    %216 = tpu.concatenate %174, %177, %184, %191, %145, %198, %205, %208, %215 in 0 : vector<8x256xf32>, vector<8x256xf32>, vector<8x256xf32>, vector<8x256xf32>, vector<8x256xf32>, vector<8x256xf32>, vector<8x256xf32>, vector<8x256xf32>, vector<8x256xf32> -> vector<72x256xf32>
    %217 = arith.truncf %216 : vector<72x256xf32> to vector<72x256xbf16>
    %cst_80 = arith.constant dense<0.000000e+00> : vector<8x256xf32>
    %218 = tpu.matmul %146, %217, %cst_80 {dimension_numbers = #tpu.dot_dimension_numbers<[1], [0], [0], [1], [0, 0, 1, 1], [], []>} : vector<8x72xbf16>, vector<72x256xbf16>, vector<8x256xf32> -> vector<8x256xf32>
    %c0_81 = arith.constant 0 : index
    %c0_82 = arith.constant 0 : index
    %219 = vector.load %arg12[%c0_81, %c0_82] : memref<8x1xf32, #tpu.memory_space<vmem>>, vector<8x1xf32>
    %220 = vector.broadcast %219 : vector<8x1xf32> to vector<8x256xf32>
    %221 = arith.addf %218, %220 : vector<8x256xf32>
    %c0_83 = arith.constant 0 : index
    %c0_84 = arith.constant 0 : index
    %222 = vector.load %arg13[%c0_83, %c0_84] : memref<8x4xbf16, #tpu.memory_space<vmem>>, vector<8x4xbf16>
    %223 = arith.truncf %3 : vector<4x256xf32> to vector<4x256xbf16>
    %cst_85 = arith.constant dense<0.000000e+00> : vector<8x256xf32>
    %224 = tpu.matmul %222, %223, %cst_85 {dimension_numbers = #tpu.dot_dimension_numbers<[1], [0], [0], [1], [0, 0, 1, 1], [], []>} : vector<8x4xbf16>, vector<4x256xbf16>, vector<8x256xf32> -> vector<8x256xf32>
    %c0_86 = arith.constant 0 : index
    %c0_87 = arith.constant 0 : index
    %225 = vector.load %arg14[%c0_86, %c0_87] : memref<8x1xf32, #tpu.memory_space<vmem>>, vector<8x1xf32>
    %226 = vector.broadcast %225 : vector<8x1xf32> to vector<8x256xf32>
    %227 = arith.addf %224, %226 : vector<8x256xf32>
    %228 = arith.addf %221, %227 : vector<8x256xf32>
    %c0_88 = arith.constant 0 : index
    %c0_89 = arith.constant 0 : index
    %229 = vector.load %arg25[%c0_88, %c0_89] : memref<8x1xf32, #tpu.memory_space<vmem>>, vector<8x1xf32>
    %c0_90 = arith.constant 0 : index
    %c0_91 = arith.constant 0 : index
    %230 = vector.load %arg26[%c0_90, %c0_91] : memref<8x1xf32, #tpu.memory_space<vmem>>, vector<8x1xf32>
    %cst_92 = arith.constant dense<0.000000e+00> : vector<8xf32>
    %231 = vector.multi_reduction <add>, %228, %cst_92 [1] : vector<8x256xf32> to vector<8xf32>
    %232 = vector.shape_cast %231 : vector<8xf32> to vector<8x1xf32>
    %233 = arith.mulf %228, %228 : vector<8x256xf32>
    %cst_93 = arith.constant dense<0.000000e+00> : vector<8xf32>
    %234 = vector.multi_reduction <add>, %233, %cst_93 [1] : vector<8x256xf32> to vector<8xf32>
    %235 = vector.shape_cast %234 : vector<8xf32> to vector<8x1xf32>
    %cst_94 = arith.constant dense<0.000000e+00> : vector<8x1xf32>
    %236 = tpu.matmul %1, %232, %cst_94 {dimension_numbers = #tpu.dot_dimension_numbers<[1], [0], [0], [1], [0, 0, 1, 1], [], []>} : vector<8x8xf32>, vector<8x1xf32>, vector<8x1xf32> -> vector<8x1xf32>
    %cst_95 = arith.constant 0.001953125 : f32
    %237 = vector.broadcast %cst_95 : f32 to vector<8x1xf32>
    %238 = arith.mulf %236, %237 : vector<8x1xf32>
    %cst_96 = arith.constant dense<0.000000e+00> : vector<8x1xf32>
    %239 = tpu.matmul %1, %235, %cst_96 {dimension_numbers = #tpu.dot_dimension_numbers<[1], [0], [0], [1], [0, 0, 1, 1], [], []>} : vector<8x8xf32>, vector<8x1xf32>, vector<8x1xf32> -> vector<8x1xf32>
    %cst_97 = arith.constant 0.001953125 : f32
    %240 = vector.broadcast %cst_97 : f32 to vector<8x1xf32>
    %241 = arith.mulf %239, %240 : vector<8x1xf32>
    %242 = arith.mulf %238, %238 : vector<8x1xf32>
    %243 = arith.subf %241, %242 : vector<8x1xf32>
    %cst_98 = arith.constant 9.99999974E-6 : f32
    %244 = vector.broadcast %cst_98 : f32 to vector<8x1xf32>
    %245 = arith.addf %243, %244 : vector<8x1xf32>
    %246 = math.rsqrt %245 : vector<8x1xf32>
    %247 = vector.broadcast %238 : vector<8x1xf32> to vector<8x256xf32>
    %248 = arith.subf %228, %247 : vector<8x256xf32>
    %249 = arith.mulf %246, %229 : vector<8x1xf32>
    %250 = vector.broadcast %249 : vector<8x1xf32> to vector<8x256xf32>
    %251 = arith.mulf %248, %250 : vector<8x256xf32>
    %252 = vector.broadcast %230 : vector<8x1xf32> to vector<8x256xf32>
    %253 = arith.addf %251, %252 : vector<8x256xf32>
    %c0_99 = arith.constant 0 : index
    %c0_100 = arith.constant 0 : index
    %254 = vector.load %arg27[%c0_99, %c0_100] : memref<24x8xbf16, #tpu.memory_space<vmem>>, vector<24x8xbf16>
    %255 = arith.truncf %253 : vector<8x256xf32> to vector<8x256xbf16>
    %cst_101 = arith.constant dense<0.000000e+00> : vector<24x256xf32>
    %256 = tpu.matmul %254, %255, %cst_101 {dimension_numbers = #tpu.dot_dimension_numbers<[1], [0], [0], [1], [0, 0, 1, 1], [], []>} : vector<24x8xbf16>, vector<8x256xbf16>, vector<24x256xf32> -> vector<24x256xf32>
    %c0_102 = arith.constant 0 : index
    %c0_103 = arith.constant 0 : index
    %257 = vector.load %arg28[%c0_102, %c0_103] : memref<24x1xf32, #tpu.memory_space<vmem>>, vector<24x1xf32>
    %258 = vector.broadcast %257 : vector<24x1xf32> to vector<24x256xf32>
    %259 = arith.addf %256, %258 : vector<24x256xf32>
    %c0_104 = arith.constant 0 : index
    %c0_105 = arith.constant 0 : index
    %260 = vector.load %arg30[%c0_104, %c0_105] : memref<8x1xf32, #tpu.memory_space<vmem>>, vector<8x1xf32>
    %261 = vector.broadcast %260 : vector<8x1xf32> to vector<8x256xf32>
    %262 = arith.addf %228, %261 : vector<8x256xf32>
    %263 = vector.extract_strided_slice %259 {offsets = [0, 0], sizes = [4, 256], strides = [1, 1]} : vector<24x256xf32> to vector<4x256xf32>
    %264 = arith.truncf %263 : vector<4x256xf32> to vector<4x256xbf16>
    %265 = vector.extract_strided_slice %259 {offsets = [8, 0], sizes = [4, 256], strides = [1, 1]} : vector<24x256xf32> to vector<4x256xf32>
    %266 = arith.truncf %265 : vector<4x256xf32> to vector<4x256xbf16>
    %267 = vector.extract_strided_slice %259 {offsets = [16, 0], sizes = [4, 256], strides = [1, 1]} : vector<24x256xf32> to vector<4x256xf32>
    %268 = arith.truncf %267 : vector<4x256xf32> to vector<4x256xbf16>
    %cst_106 = arith.constant dense<0.000000e+00> : vector<256x256xf32>
    %269 = tpu.matmul %264, %266, %cst_106 {dimension_numbers = #tpu.dot_dimension_numbers<[0], [0], [1], [1], [0, 1, 1, 1], [], []>} : vector<4x256xbf16>, vector<4x256xbf16>, vector<256x256xf32> -> vector<256x256xf32>
    %cst_107 = arith.constant dense<0xFF800000> : vector<256xf32>
    %270 = vector.multi_reduction <maximumf>, %269, %cst_107 [1] : vector<256x256xf32> to vector<256xf32>
    %271 = vector.shape_cast %270 : vector<256xf32> to vector<256x1xf32>
    %272 = vector.broadcast %271 : vector<256x1xf32> to vector<256x256xf32>
    %273 = arith.subf %269, %272 : vector<256x256xf32>
    %274 = math.exp %273 : vector<256x256xf32>
    %cst_108 = arith.constant dense<0.000000e+00> : vector<256xf32>
    %275 = vector.multi_reduction <add>, %274, %cst_108 [1] : vector<256x256xf32> to vector<256xf32>
    %276 = vector.shape_cast %275 : vector<256xf32> to vector<256x1xf32>
    %277 = tpu.reciprocal %276 : vector<256x1xf32> -> vector<256x1xf32>
    %278 = vector.broadcast %277 : vector<256x1xf32> to vector<256x256xf32>
    %279 = arith.mulf %274, %278 : vector<256x256xf32>
    %280 = arith.truncf %279 : vector<256x256xf32> to vector<256x256xbf16>
    %cst_109 = arith.constant dense<0.000000e+00> : vector<4x256xf32>
    %281 = tpu.matmul %268, %280, %cst_109 {dimension_numbers = #tpu.dot_dimension_numbers<[1], [1], [0], [0], [0, 0, 1, 0], [], []>} : vector<4x256xbf16>, vector<256x256xbf16>, vector<4x256xf32> -> vector<4x256xf32>
    %c0_110 = arith.constant 0 : index
    %c0_111 = arith.constant 0 : index
    %c0_112 = arith.constant 0 : index
    %282 = vector.load %arg29[%c0_110, %c0_111, %c0_112] : memref<2x8x4xbf16, #tpu.memory_space<vmem>>, vector<1x8x4xbf16>
    %283 = vector.shape_cast %282 : vector<1x8x4xbf16> to vector<8x4xbf16>
    %284 = arith.truncf %281 : vector<4x256xf32> to vector<4x256xbf16>
    %cst_113 = arith.constant dense<0.000000e+00> : vector<8x256xf32>
    %285 = tpu.matmul %283, %284, %cst_113 {dimension_numbers = #tpu.dot_dimension_numbers<[1], [0], [0], [1], [0, 0, 1, 1], [], []>} : vector<8x4xbf16>, vector<4x256xbf16>, vector<8x256xf32> -> vector<8x256xf32>
    %286 = arith.addf %262, %285 : vector<8x256xf32>
    %287 = vector.extract_strided_slice %259 {offsets = [4, 0], sizes = [4, 256], strides = [1, 1]} : vector<24x256xf32> to vector<4x256xf32>
    %288 = arith.truncf %287 : vector<4x256xf32> to vector<4x256xbf16>
    %289 = vector.extract_strided_slice %259 {offsets = [12, 0], sizes = [4, 256], strides = [1, 1]} : vector<24x256xf32> to vector<4x256xf32>
    %290 = arith.truncf %289 : vector<4x256xf32> to vector<4x256xbf16>
    %291 = vector.extract_strided_slice %259 {offsets = [20, 0], sizes = [4, 256], strides = [1, 1]} : vector<24x256xf32> to vector<4x256xf32>
    %292 = arith.truncf %291 : vector<4x256xf32> to vector<4x256xbf16>
    %cst_114 = arith.constant dense<0.000000e+00> : vector<256x256xf32>
    %293 = tpu.matmul %288, %290, %cst_114 {dimension_numbers = #tpu.dot_dimension_numbers<[0], [0], [1], [1], [0, 1, 1, 1], [], []>} : vector<4x256xbf16>, vector<4x256xbf16>, vector<256x256xf32> -> vector<256x256xf32>
    %cst_115 = arith.constant dense<0xFF800000> : vector<256xf32>
    %294 = vector.multi_reduction <maximumf>, %293, %cst_115 [1] : vector<256x256xf32> to vector<256xf32>
    %295 = vector.shape_cast %294 : vector<256xf32> to vector<256x1xf32>
    %296 = vector.broadcast %295 : vector<256x1xf32> to vector<256x256xf32>
    %297 = arith.subf %293, %296 : vector<256x256xf32>
    %298 = math.exp %297 : vector<256x256xf32>
    %cst_116 = arith.constant dense<0.000000e+00> : vector<256xf32>
    %299 = vector.multi_reduction <add>, %298, %cst_116 [1] : vector<256x256xf32> to vector<256xf32>
    %300 = vector.shape_cast %299 : vector<256xf32> to vector<256x1xf32>
    %301 = tpu.reciprocal %300 : vector<256x1xf32> -> vector<256x1xf32>
    %302 = vector.broadcast %301 : vector<256x1xf32> to vector<256x256xf32>
    %303 = arith.mulf %298, %302 : vector<256x256xf32>
    %304 = arith.truncf %303 : vector<256x256xf32> to vector<256x256xbf16>
    %cst_117 = arith.constant dense<0.000000e+00> : vector<4x256xf32>
    %305 = tpu.matmul %292, %304, %cst_117 {dimension_numbers = #tpu.dot_dimension_numbers<[1], [1], [0], [0], [0, 0, 1, 0], [], []>} : vector<4x256xbf16>, vector<256x256xbf16>, vector<4x256xf32> -> vector<4x256xf32>
    %c1 = arith.constant 1 : index
    %c0_118 = arith.constant 0 : index
    %c0_119 = arith.constant 0 : index
    %306 = vector.load %arg29[%c1, %c0_118, %c0_119] : memref<2x8x4xbf16, #tpu.memory_space<vmem>>, vector<1x8x4xbf16>
    %307 = vector.shape_cast %306 : vector<1x8x4xbf16> to vector<8x4xbf16>
    %308 = arith.truncf %305 : vector<4x256xf32> to vector<4x256xbf16>
    %cst_120 = arith.constant dense<0.000000e+00> : vector<8x256xf32>
    %309 = tpu.matmul %307, %308, %cst_120 {dimension_numbers = #tpu.dot_dimension_numbers<[1], [0], [0], [1], [0, 0, 1, 1], [], []>} : vector<8x4xbf16>, vector<4x256xbf16>, vector<8x256xf32> -> vector<8x256xf32>
    %310 = arith.addf %286, %309 : vector<8x256xf32>
    %c0_121 = arith.constant 0 : index
    %c1_122 = arith.constant 1 : index
    %c0_123 = arith.constant 0 : index
    %c0_124 = arith.constant 0 : index
    %311 = vector.load %arg2[%c0_121, %c1_122, %c0_123, %c0_124] : memref<1x2x8x1xf32, #tpu.memory_space<vmem>>, vector<1x1x8x1xf32>
    %312 = vector.shape_cast %311 : vector<1x1x8x1xf32> to vector<8x1xf32>
    %c0_125 = arith.constant 0 : index
    %c0_126 = arith.constant 0 : index
    %313 = vector.load %arg15[%c0_125, %c0_126] : memref<8x1xf32, #tpu.memory_space<vmem>>, vector<8x1xf32>
    %c0_127 = arith.constant 0 : index
    %c0_128 = arith.constant 0 : index
    %314 = vector.load %arg16[%c0_127, %c0_128] : memref<8x1xf32, #tpu.memory_space<vmem>>, vector<8x1xf32>
    %cst_129 = arith.constant dense<0.000000e+00> : vector<8xf32>
    %315 = vector.multi_reduction <add>, %310, %cst_129 [1] : vector<8x256xf32> to vector<8xf32>
    %316 = vector.shape_cast %315 : vector<8xf32> to vector<8x1xf32>
    %317 = arith.mulf %310, %310 : vector<8x256xf32>
    %cst_130 = arith.constant dense<0.000000e+00> : vector<8xf32>
    %318 = vector.multi_reduction <add>, %317, %cst_130 [1] : vector<8x256xf32> to vector<8xf32>
    %319 = vector.shape_cast %318 : vector<8xf32> to vector<8x1xf32>
    %cst_131 = arith.constant dense<0.000000e+00> : vector<8x1xf32>
    %320 = tpu.matmul %1, %316, %cst_131 {dimension_numbers = #tpu.dot_dimension_numbers<[1], [0], [0], [1], [0, 0, 1, 1], [], []>} : vector<8x8xf32>, vector<8x1xf32>, vector<8x1xf32> -> vector<8x1xf32>
    %cst_132 = arith.constant 0.001953125 : f32
    %321 = vector.broadcast %cst_132 : f32 to vector<8x1xf32>
    %322 = arith.mulf %320, %321 : vector<8x1xf32>
    %cst_133 = arith.constant dense<0.000000e+00> : vector<8x1xf32>
    %323 = tpu.matmul %1, %319, %cst_133 {dimension_numbers = #tpu.dot_dimension_numbers<[1], [0], [0], [1], [0, 0, 1, 1], [], []>} : vector<8x8xf32>, vector<8x1xf32>, vector<8x1xf32> -> vector<8x1xf32>
    %cst_134 = arith.constant 0.001953125 : f32
    %324 = vector.broadcast %cst_134 : f32 to vector<8x1xf32>
    %325 = arith.mulf %323, %324 : vector<8x1xf32>
    %326 = arith.mulf %322, %322 : vector<8x1xf32>
    %327 = arith.subf %325, %326 : vector<8x1xf32>
    %cst_135 = arith.constant 9.99999974E-6 : f32
    %328 = vector.broadcast %cst_135 : f32 to vector<8x1xf32>
    %329 = arith.addf %327, %328 : vector<8x1xf32>
    %330 = math.rsqrt %329 : vector<8x1xf32>
    %331 = vector.broadcast %322 : vector<8x1xf32> to vector<8x256xf32>
    %332 = arith.subf %310, %331 : vector<8x256xf32>
    %333 = arith.mulf %330, %313 : vector<8x1xf32>
    %334 = vector.broadcast %333 : vector<8x1xf32> to vector<8x256xf32>
    %335 = arith.mulf %332, %334 : vector<8x256xf32>
    %336 = vector.broadcast %314 : vector<8x1xf32> to vector<8x256xf32>
    %337 = arith.addf %335, %336 : vector<8x256xf32>
    %338 = arith.negf %337 : vector<8x256xf32>
    %339 = math.exp %338 : vector<8x256xf32>
    %cst_136 = arith.constant 1.000000e+00 : f32
    %340 = vector.broadcast %cst_136 : f32 to vector<8x256xf32>
    %341 = arith.addf %340, %339 : vector<8x256xf32>
    %342 = arith.divf %340, %341 : vector<8x256xf32>
    %343 = arith.mulf %337, %342 : vector<8x256xf32>
    %c0_137 = arith.constant 0 : index
    %c0_138 = arith.constant 0 : index
    %344 = vector.load %arg17[%c0_137, %c0_138] : memref<8x72xbf16, #tpu.memory_space<vmem>>, vector<8x72xbf16>
    %345 = tpu.iota {dimensions = array<i32: 1>} : vector<1x256xi32>
    %c16_i32_139 = arith.constant 16 : i32
    %c0_i32_140 = arith.constant 0 : i32
    %346 = arith.cmpi eq, %c16_i32_139, %c0_i32_140 : i32
    %c1_i32_141 = arith.constant 1 : i32
    %347 = arith.select %346, %c1_i32_141, %c16_i32_139 : i32
    %348 = vector.broadcast %347 : i32 to vector<1x256xi32>
    %349 = arith.remsi %345, %348 : vector<1x256xi32>
    %c0_i32_142 = arith.constant 0 : i32
    %350 = vector.broadcast %c0_i32_142 : i32 to vector<1x256xi32>
    %351 = arith.cmpi ne, %349, %350 : vector<1x256xi32>
    %c0_i32_143 = arith.constant 0 : i32
    %352 = vector.broadcast %c0_i32_143 : i32 to vector<1x256xi32>
    %353 = arith.cmpi slt, %349, %352 : vector<1x256xi32>
    %c0_i32_144 = arith.constant 0 : i32
    %354 = arith.cmpi slt, %347, %c0_i32_144 : i32
    %355 = vector.broadcast %354 : i1 to vector<1x256xi1>
    %356 = vector.broadcast %355 : vector<1x256xi1> to vector<1x256xi1>
    %357 = arith.xori %353, %356 : vector<1x256xi1>
    %358 = arith.andi %357, %351 : vector<1x256xi1>
    %359 = vector.broadcast %347 : i32 to vector<1x256xi32>
    %360 = arith.addi %349, %359 : vector<1x256xi32>
    %361 = arith.select %358, %360, %349 : vector<1x256xi1>, vector<1x256xi32>
    %c1_i32_145 = arith.constant 1 : i32
    %362 = vector.broadcast %c1_i32_145 : i32 to vector<1x256xi32>
    %363 = arith.cmpi sge, %361, %362 : vector<1x256xi32>
    %c15_i32_146 = arith.constant 15 : i32
    %364 = vector.broadcast %c15_i32_146 : i32 to vector<1x256xi32>
    %365 = arith.cmpi slt, %361, %364 : vector<1x256xi32>
    %cst_147 = arith.constant 0.000000e+00 : f32
    %366 = vector.broadcast %cst_147 : f32 to vector<8x17xf32>
    %367 = vector.extract_strided_slice %343 {offsets = [0, 0], sizes = [8, 239], strides = [1, 1]} : vector<8x256xf32> to vector<8x239xf32>
    %368 = tpu.concatenate %366, %367 in 1 : vector<8x17xf32>, vector<8x239xf32> -> vector<8x256xf32>
    %cst_148 = arith.constant 0.000000e+00 : f32
    %369 = vector.shape_cast %363 : vector<1x256xi1> to vector<1x256xi1>
    %370 = vector.broadcast %369 : vector<1x256xi1> to vector<8x256xi1>
    %371 = vector.broadcast %cst_148 : f32 to vector<8x256xf32>
    %372 = arith.select %370, %368, %371 : vector<8x256xi1>, vector<8x256xf32>
    %cst_149 = arith.constant 0.000000e+00 : f32
    %373 = vector.broadcast %cst_149 : f32 to vector<8x16xf32>
    %374 = vector.extract_strided_slice %343 {offsets = [0, 0], sizes = [8, 240], strides = [1, 1]} : vector<8x256xf32> to vector<8x240xf32>
    %375 = tpu.concatenate %373, %374 in 1 : vector<8x16xf32>, vector<8x240xf32> -> vector<8x256xf32>
    %cst_150 = arith.constant 0.000000e+00 : f32
    %376 = vector.broadcast %cst_150 : f32 to vector<8x15xf32>
    %377 = vector.extract_strided_slice %343 {offsets = [0, 0], sizes = [8, 241], strides = [1, 1]} : vector<8x256xf32> to vector<8x241xf32>
    %378 = tpu.concatenate %376, %377 in 1 : vector<8x15xf32>, vector<8x241xf32> -> vector<8x256xf32>
    %cst_151 = arith.constant 0.000000e+00 : f32
    %379 = vector.shape_cast %365 : vector<1x256xi1> to vector<1x256xi1>
    %380 = vector.broadcast %379 : vector<1x256xi1> to vector<8x256xi1>
    %381 = vector.broadcast %cst_151 : f32 to vector<8x256xf32>
    %382 = arith.select %380, %378, %381 : vector<8x256xi1>, vector<8x256xf32>
    %cst_152 = arith.constant 0.000000e+00 : f32
    %383 = vector.broadcast %cst_152 : f32 to vector<8x1xf32>
    %384 = vector.extract_strided_slice %343 {offsets = [0, 0], sizes = [8, 255], strides = [1, 1]} : vector<8x256xf32> to vector<8x255xf32>
    %385 = tpu.concatenate %383, %384 in 1 : vector<8x1xf32>, vector<8x255xf32> -> vector<8x256xf32>
    %cst_153 = arith.constant 0.000000e+00 : f32
    %386 = vector.shape_cast %363 : vector<1x256xi1> to vector<1x256xi1>
    %387 = vector.broadcast %386 : vector<1x256xi1> to vector<8x256xi1>
    %388 = vector.broadcast %cst_153 : f32 to vector<8x256xf32>
    %389 = arith.select %387, %385, %388 : vector<8x256xi1>, vector<8x256xf32>
    %390 = vector.extract_strided_slice %343 {offsets = [0, 1], sizes = [8, 255], strides = [1, 1]} : vector<8x256xf32> to vector<8x255xf32>
    %cst_154 = arith.constant 0.000000e+00 : f32
    %391 = vector.broadcast %cst_154 : f32 to vector<8x1xf32>
    %392 = tpu.concatenate %390, %391 in 1 : vector<8x255xf32>, vector<8x1xf32> -> vector<8x256xf32>
    %cst_155 = arith.constant 0.000000e+00 : f32
    %393 = vector.shape_cast %365 : vector<1x256xi1> to vector<1x256xi1>
    %394 = vector.broadcast %393 : vector<1x256xi1> to vector<8x256xi1>
    %395 = vector.broadcast %cst_155 : f32 to vector<8x256xf32>
    %396 = arith.select %394, %392, %395 : vector<8x256xi1>, vector<8x256xf32>
    %397 = vector.extract_strided_slice %343 {offsets = [0, 15], sizes = [8, 241], strides = [1, 1]} : vector<8x256xf32> to vector<8x241xf32>
    %cst_156 = arith.constant 0.000000e+00 : f32
    %398 = vector.broadcast %cst_156 : f32 to vector<8x15xf32>
    %399 = tpu.concatenate %397, %398 in 1 : vector<8x241xf32>, vector<8x15xf32> -> vector<8x256xf32>
    %cst_157 = arith.constant 0.000000e+00 : f32
    %400 = vector.shape_cast %363 : vector<1x256xi1> to vector<1x256xi1>
    %401 = vector.broadcast %400 : vector<1x256xi1> to vector<8x256xi1>
    %402 = vector.broadcast %cst_157 : f32 to vector<8x256xf32>
    %403 = arith.select %401, %399, %402 : vector<8x256xi1>, vector<8x256xf32>
    %404 = vector.extract_strided_slice %343 {offsets = [0, 16], sizes = [8, 240], strides = [1, 1]} : vector<8x256xf32> to vector<8x240xf32>
    %cst_158 = arith.constant 0.000000e+00 : f32
    %405 = vector.broadcast %cst_158 : f32 to vector<8x16xf32>
    %406 = tpu.concatenate %404, %405 in 1 : vector<8x240xf32>, vector<8x16xf32> -> vector<8x256xf32>
    %407 = vector.extract_strided_slice %343 {offsets = [0, 17], sizes = [8, 239], strides = [1, 1]} : vector<8x256xf32> to vector<8x239xf32>
    %cst_159 = arith.constant 0.000000e+00 : f32
    %408 = vector.broadcast %cst_159 : f32 to vector<8x17xf32>
    %409 = tpu.concatenate %407, %408 in 1 : vector<8x239xf32>, vector<8x17xf32> -> vector<8x256xf32>
    %cst_160 = arith.constant 0.000000e+00 : f32
    %410 = vector.shape_cast %365 : vector<1x256xi1> to vector<1x256xi1>
    %411 = vector.broadcast %410 : vector<1x256xi1> to vector<8x256xi1>
    %412 = vector.broadcast %cst_160 : f32 to vector<8x256xf32>
    %413 = arith.select %411, %409, %412 : vector<8x256xi1>, vector<8x256xf32>
    %414 = tpu.concatenate %372, %375, %382, %389, %343, %396, %403, %406, %413 in 0 : vector<8x256xf32>, vector<8x256xf32>, vector<8x256xf32>, vector<8x256xf32>, vector<8x256xf32>, vector<8x256xf32>, vector<8x256xf32>, vector<8x256xf32>, vector<8x256xf32> -> vector<72x256xf32>
    %415 = arith.truncf %414 : vector<72x256xf32> to vector<72x256xbf16>
    %cst_161 = arith.constant dense<0.000000e+00> : vector<8x256xf32>
    %416 = tpu.matmul %344, %415, %cst_161 {dimension_numbers = #tpu.dot_dimension_numbers<[1], [0], [0], [1], [0, 0, 1, 1], [], []>} : vector<8x72xbf16>, vector<72x256xbf16>, vector<8x256xf32> -> vector<8x256xf32>
    %c0_162 = arith.constant 0 : index
    %c0_163 = arith.constant 0 : index
    %417 = vector.load %arg18[%c0_162, %c0_163] : memref<8x1xf32, #tpu.memory_space<vmem>>, vector<8x1xf32>
    %418 = vector.broadcast %417 : vector<8x1xf32> to vector<8x256xf32>
    %419 = arith.addf %416, %418 : vector<8x256xf32>
    %420 = vector.broadcast %312 : vector<8x1xf32> to vector<8x256xf32>
    %421 = arith.addf %419, %420 : vector<8x256xf32>
    %c0_164 = arith.constant 0 : index
    %c0_165 = arith.constant 0 : index
    %422 = vector.load %arg19[%c0_164, %c0_165] : memref<8x1xf32, #tpu.memory_space<vmem>>, vector<8x1xf32>
    %c0_166 = arith.constant 0 : index
    %c0_167 = arith.constant 0 : index
    %423 = vector.load %arg20[%c0_166, %c0_167] : memref<8x1xf32, #tpu.memory_space<vmem>>, vector<8x1xf32>
    %cst_168 = arith.constant dense<0.000000e+00> : vector<8xf32>
    %424 = vector.multi_reduction <add>, %421, %cst_168 [1] : vector<8x256xf32> to vector<8xf32>
    %425 = vector.shape_cast %424 : vector<8xf32> to vector<8x1xf32>
    %426 = arith.mulf %421, %421 : vector<8x256xf32>
    %cst_169 = arith.constant dense<0.000000e+00> : vector<8xf32>
    %427 = vector.multi_reduction <add>, %426, %cst_169 [1] : vector<8x256xf32> to vector<8xf32>
    %428 = vector.shape_cast %427 : vector<8xf32> to vector<8x1xf32>
    %cst_170 = arith.constant dense<0.000000e+00> : vector<8x1xf32>
    %429 = tpu.matmul %1, %425, %cst_170 {dimension_numbers = #tpu.dot_dimension_numbers<[1], [0], [0], [1], [0, 0, 1, 1], [], []>} : vector<8x8xf32>, vector<8x1xf32>, vector<8x1xf32> -> vector<8x1xf32>
    %cst_171 = arith.constant 0.001953125 : f32
    %430 = vector.broadcast %cst_171 : f32 to vector<8x1xf32>
    %431 = arith.mulf %429, %430 : vector<8x1xf32>
    %cst_172 = arith.constant dense<0.000000e+00> : vector<8x1xf32>
    %432 = tpu.matmul %1, %428, %cst_172 {dimension_numbers = #tpu.dot_dimension_numbers<[1], [0], [0], [1], [0, 0, 1, 1], [], []>} : vector<8x8xf32>, vector<8x1xf32>, vector<8x1xf32> -> vector<8x1xf32>
    %cst_173 = arith.constant 0.001953125 : f32
    %433 = vector.broadcast %cst_173 : f32 to vector<8x1xf32>
    %434 = arith.mulf %432, %433 : vector<8x1xf32>
    %435 = arith.mulf %431, %431 : vector<8x1xf32>
    %436 = arith.subf %434, %435 : vector<8x1xf32>
    %cst_174 = arith.constant 9.99999974E-6 : f32
    %437 = vector.broadcast %cst_174 : f32 to vector<8x1xf32>
    %438 = arith.addf %436, %437 : vector<8x1xf32>
    %439 = math.rsqrt %438 : vector<8x1xf32>
    %440 = vector.broadcast %431 : vector<8x1xf32> to vector<8x256xf32>
    %441 = arith.subf %421, %440 : vector<8x256xf32>
    %442 = arith.mulf %439, %422 : vector<8x1xf32>
    %443 = vector.broadcast %442 : vector<8x1xf32> to vector<8x256xf32>
    %444 = arith.mulf %441, %443 : vector<8x256xf32>
    %445 = vector.broadcast %423 : vector<8x1xf32> to vector<8x256xf32>
    %446 = arith.addf %444, %445 : vector<8x256xf32>
    %447 = arith.negf %446 : vector<8x256xf32>
    %448 = math.exp %447 : vector<8x256xf32>
    %cst_175 = arith.constant 1.000000e+00 : f32
    %449 = vector.broadcast %cst_175 : f32 to vector<8x256xf32>
    %450 = arith.addf %449, %448 : vector<8x256xf32>
    %451 = arith.divf %449, %450 : vector<8x256xf32>
    %452 = arith.mulf %446, %451 : vector<8x256xf32>
    %c0_176 = arith.constant 0 : index
    %c0_177 = arith.constant 0 : index
    %453 = vector.load %arg21[%c0_176, %c0_177] : memref<8x72xbf16, #tpu.memory_space<vmem>>, vector<8x72xbf16>
    %454 = tpu.iota {dimensions = array<i32: 1>} : vector<1x256xi32>
    %c16_i32_178 = arith.constant 16 : i32
    %c0_i32_179 = arith.constant 0 : i32
    %455 = arith.cmpi eq, %c16_i32_178, %c0_i32_179 : i32
    %c1_i32_180 = arith.constant 1 : i32
    %456 = arith.select %455, %c1_i32_180, %c16_i32_178 : i32
    %457 = vector.broadcast %456 : i32 to vector<1x256xi32>
    %458 = arith.remsi %454, %457 : vector<1x256xi32>
    %c0_i32_181 = arith.constant 0 : i32
    %459 = vector.broadcast %c0_i32_181 : i32 to vector<1x256xi32>
    %460 = arith.cmpi ne, %458, %459 : vector<1x256xi32>
    %c0_i32_182 = arith.constant 0 : i32
    %461 = vector.broadcast %c0_i32_182 : i32 to vector<1x256xi32>
    %462 = arith.cmpi slt, %458, %461 : vector<1x256xi32>
    %c0_i32_183 = arith.constant 0 : i32
    %463 = arith.cmpi slt, %456, %c0_i32_183 : i32
    %464 = vector.broadcast %463 : i1 to vector<1x256xi1>
    %465 = vector.broadcast %464 : vector<1x256xi1> to vector<1x256xi1>
    %466 = arith.xori %462, %465 : vector<1x256xi1>
    %467 = arith.andi %466, %460 : vector<1x256xi1>
    %468 = vector.broadcast %456 : i32 to vector<1x256xi32>
    %469 = arith.addi %458, %468 : vector<1x256xi32>
    %470 = arith.select %467, %469, %458 : vector<1x256xi1>, vector<1x256xi32>
    %c1_i32_184 = arith.constant 1 : i32
    %471 = vector.broadcast %c1_i32_184 : i32 to vector<1x256xi32>
    %472 = arith.cmpi sge, %470, %471 : vector<1x256xi32>
    %c15_i32_185 = arith.constant 15 : i32
    %473 = vector.broadcast %c15_i32_185 : i32 to vector<1x256xi32>
    %474 = arith.cmpi slt, %470, %473 : vector<1x256xi32>
    %cst_186 = arith.constant 0.000000e+00 : f32
    %475 = vector.broadcast %cst_186 : f32 to vector<8x17xf32>
    %476 = vector.extract_strided_slice %452 {offsets = [0, 0], sizes = [8, 239], strides = [1, 1]} : vector<8x256xf32> to vector<8x239xf32>
    %477 = tpu.concatenate %475, %476 in 1 : vector<8x17xf32>, vector<8x239xf32> -> vector<8x256xf32>
    %cst_187 = arith.constant 0.000000e+00 : f32
    %478 = vector.shape_cast %472 : vector<1x256xi1> to vector<1x256xi1>
    %479 = vector.broadcast %478 : vector<1x256xi1> to vector<8x256xi1>
    %480 = vector.broadcast %cst_187 : f32 to vector<8x256xf32>
    %481 = arith.select %479, %477, %480 : vector<8x256xi1>, vector<8x256xf32>
    %cst_188 = arith.constant 0.000000e+00 : f32
    %482 = vector.broadcast %cst_188 : f32 to vector<8x16xf32>
    %483 = vector.extract_strided_slice %452 {offsets = [0, 0], sizes = [8, 240], strides = [1, 1]} : vector<8x256xf32> to vector<8x240xf32>
    %484 = tpu.concatenate %482, %483 in 1 : vector<8x16xf32>, vector<8x240xf32> -> vector<8x256xf32>
    %cst_189 = arith.constant 0.000000e+00 : f32
    %485 = vector.broadcast %cst_189 : f32 to vector<8x15xf32>
    %486 = vector.extract_strided_slice %452 {offsets = [0, 0], sizes = [8, 241], strides = [1, 1]} : vector<8x256xf32> to vector<8x241xf32>
    %487 = tpu.concatenate %485, %486 in 1 : vector<8x15xf32>, vector<8x241xf32> -> vector<8x256xf32>
    %cst_190 = arith.constant 0.000000e+00 : f32
    %488 = vector.shape_cast %474 : vector<1x256xi1> to vector<1x256xi1>
    %489 = vector.broadcast %488 : vector<1x256xi1> to vector<8x256xi1>
    %490 = vector.broadcast %cst_190 : f32 to vector<8x256xf32>
    %491 = arith.select %489, %487, %490 : vector<8x256xi1>, vector<8x256xf32>
    %cst_191 = arith.constant 0.000000e+00 : f32
    %492 = vector.broadcast %cst_191 : f32 to vector<8x1xf32>
    %493 = vector.extract_strided_slice %452 {offsets = [0, 0], sizes = [8, 255], strides = [1, 1]} : vector<8x256xf32> to vector<8x255xf32>
    %494 = tpu.concatenate %492, %493 in 1 : vector<8x1xf32>, vector<8x255xf32> -> vector<8x256xf32>
    %cst_192 = arith.constant 0.000000e+00 : f32
    %495 = vector.shape_cast %472 : vector<1x256xi1> to vector<1x256xi1>
    %496 = vector.broadcast %495 : vector<1x256xi1> to vector<8x256xi1>
    %497 = vector.broadcast %cst_192 : f32 to vector<8x256xf32>
    %498 = arith.select %496, %494, %497 : vector<8x256xi1>, vector<8x256xf32>
    %499 = vector.extract_strided_slice %452 {offsets = [0, 1], sizes = [8, 255], strides = [1, 1]} : vector<8x256xf32> to vector<8x255xf32>
    %cst_193 = arith.constant 0.000000e+00 : f32
    %500 = vector.broadcast %cst_193 : f32 to vector<8x1xf32>
    %501 = tpu.concatenate %499, %500 in 1 : vector<8x255xf32>, vector<8x1xf32> -> vector<8x256xf32>
    %cst_194 = arith.constant 0.000000e+00 : f32
    %502 = vector.shape_cast %474 : vector<1x256xi1> to vector<1x256xi1>
    %503 = vector.broadcast %502 : vector<1x256xi1> to vector<8x256xi1>
    %504 = vector.broadcast %cst_194 : f32 to vector<8x256xf32>
    %505 = arith.select %503, %501, %504 : vector<8x256xi1>, vector<8x256xf32>
    %506 = vector.extract_strided_slice %452 {offsets = [0, 15], sizes = [8, 241], strides = [1, 1]} : vector<8x256xf32> to vector<8x241xf32>
    %cst_195 = arith.constant 0.000000e+00 : f32
    %507 = vector.broadcast %cst_195 : f32 to vector<8x15xf32>
    %508 = tpu.concatenate %506, %507 in 1 : vector<8x241xf32>, vector<8x15xf32> -> vector<8x256xf32>
    %cst_196 = arith.constant 0.000000e+00 : f32
    %509 = vector.shape_cast %472 : vector<1x256xi1> to vector<1x256xi1>
    %510 = vector.broadcast %509 : vector<1x256xi1> to vector<8x256xi1>
    %511 = vector.broadcast %cst_196 : f32 to vector<8x256xf32>
    %512 = arith.select %510, %508, %511 : vector<8x256xi1>, vector<8x256xf32>
    %513 = vector.extract_strided_slice %452 {offsets = [0, 16], sizes = [8, 240], strides = [1, 1]} : vector<8x256xf32> to vector<8x240xf32>
    %cst_197 = arith.constant 0.000000e+00 : f32
    %514 = vector.broadcast %cst_197 : f32 to vector<8x16xf32>
    %515 = tpu.concatenate %513, %514 in 1 : vector<8x240xf32>, vector<8x16xf32> -> vector<8x256xf32>
    %516 = vector.extract_strided_slice %452 {offsets = [0, 17], sizes = [8, 239], strides = [1, 1]} : vector<8x256xf32> to vector<8x239xf32>
    %cst_198 = arith.constant 0.000000e+00 : f32
    %517 = vector.broadcast %cst_198 : f32 to vector<8x17xf32>
    %518 = tpu.concatenate %516, %517 in 1 : vector<8x239xf32>, vector<8x17xf32> -> vector<8x256xf32>
    %cst_199 = arith.constant 0.000000e+00 : f32
    %519 = vector.shape_cast %474 : vector<1x256xi1> to vector<1x256xi1>
    %520 = vector.broadcast %519 : vector<1x256xi1> to vector<8x256xi1>
    %521 = vector.broadcast %cst_199 : f32 to vector<8x256xf32>
    %522 = arith.select %520, %518, %521 : vector<8x256xi1>, vector<8x256xf32>
    %523 = tpu.concatenate %481, %484, %491, %498, %452, %505, %512, %515, %522 in 0 : vector<8x256xf32>, vector<8x256xf32>, vector<8x256xf32>, vector<8x256xf32>, vector<8x256xf32>, vector<8x256xf32>, vector<8x256xf32>, vector<8x256xf32>, vector<8x256xf32> -> vector<72x256xf32>
    %524 = arith.truncf %523 : vector<72x256xf32> to vector<72x256xbf16>
    %cst_200 = arith.constant dense<0.000000e+00> : vector<8x256xf32>
    %525 = tpu.matmul %453, %524, %cst_200 {dimension_numbers = #tpu.dot_dimension_numbers<[1], [0], [0], [1], [0, 0, 1, 1], [], []>} : vector<8x72xbf16>, vector<72x256xbf16>, vector<8x256xf32> -> vector<8x256xf32>
    %c0_201 = arith.constant 0 : index
    %c0_202 = arith.constant 0 : index
    %526 = vector.load %arg22[%c0_201, %c0_202] : memref<8x1xf32, #tpu.memory_space<vmem>>, vector<8x1xf32>
    %527 = vector.broadcast %526 : vector<8x1xf32> to vector<8x256xf32>
    %528 = arith.addf %525, %527 : vector<8x256xf32>
    %c0_203 = arith.constant 0 : index
    %c0_204 = arith.constant 0 : index
    %529 = vector.load %arg23[%c0_203, %c0_204] : memref<8x8xbf16, #tpu.memory_space<vmem>>, vector<8x8xbf16>
    %530 = arith.truncf %310 : vector<8x256xf32> to vector<8x256xbf16>
    %cst_205 = arith.constant dense<0.000000e+00> : vector<8x256xf32>
    %531 = tpu.matmul %529, %530, %cst_205 {dimension_numbers = #tpu.dot_dimension_numbers<[1], [0], [0], [1], [0, 0, 1, 1], [], []>} : vector<8x8xbf16>, vector<8x256xbf16>, vector<8x256xf32> -> vector<8x256xf32>
    %c0_206 = arith.constant 0 : index
    %c0_207 = arith.constant 0 : index
    %532 = vector.load %arg24[%c0_206, %c0_207] : memref<8x1xf32, #tpu.memory_space<vmem>>, vector<8x1xf32>
    %533 = vector.broadcast %532 : vector<8x1xf32> to vector<8x256xf32>
    %534 = arith.addf %531, %533 : vector<8x256xf32>
    %535 = arith.addf %528, %534 : vector<8x256xf32>
    %c0_208 = arith.constant 0 : index
    %c0_209 = arith.constant 0 : index
    %c0_210 = arith.constant 0 : index
    %536 = vector.load %arg31[%c0_208, %c0_209, %c0_210] : memref<1x8x256xf32, #tpu.memory_space<vmem>>, vector<1x8x256xf32>
    %537 = vector.shape_cast %536 : vector<1x8x256xf32> to vector<8x256xf32>
    %538 = vector.shape_cast %535 : vector<8x256xf32> to vector<1x8x256xf32>
    tpu.vector_store %arg31[%c0_208, %c0_209, %c0_210], %538 {strides = array<i32>} : memref<1x8x256xf32, #tpu.memory_space<vmem>>, vector<1x8x256xf32>,
    return
  }
  func.func @transform_0(%arg0: i32) -> (i32, i32, i32) {
    %c0_i32 = arith.constant 0 : i32
    %c0_i32_0 = arith.constant 0 : i32
    %c0_i32_1 = arith.constant 0 : i32
    return %arg0, %c0_i32, %c0_i32_0 : i32, i32, i32
  }
  func.func @transform_1(%arg0: i32) -> (i32, i32, i32, i32) {
    %c0_i32 = arith.constant 0 : i32
    %c0_i32_0 = arith.constant 0 : i32
    %c0_i32_1 = arith.constant 0 : i32
    %c0_i32_2 = arith.constant 0 : i32
    return %arg0, %c0_i32, %c0_i32_0, %c0_i32_1 : i32, i32, i32, i32
  }
  func.func @transform_2(%arg0: i32) -> (i32, i32) {
    %c0_i32 = arith.constant 0 : i32
    %c0_i32_0 = arith.constant 0 : i32
    %c0_i32_1 = arith.constant 0 : i32
    return %c0_i32, %c0_i32_0 : i32, i32
  }
  func.func @transform_3(%arg0: i32) -> (i32, i32) {
    %c0_i32 = arith.constant 0 : i32
    %c0_i32_0 = arith.constant 0 : i32
    %c0_i32_1 = arith.constant 0 : i32
    return %c0_i32, %c0_i32_0 : i32, i32
  }
  func.func @transform_4(%arg0: i32) -> (i32, i32) {
    %c0_i32 = arith.constant 0 : i32
    %c0_i32_0 = arith.constant 0 : i32
    %c0_i32_1 = arith.constant 0 : i32
    return %c0_i32, %c0_i32_0 : i32, i32
  }
  func.func @transform_5(%arg0: i32) -> (i32, i32) {
    %c0_i32 = arith.constant 0 : i32
    %c0_i32_0 = arith.constant 0 : i32
    %c0_i32_1 = arith.constant 0 : i32
    return %c0_i32, %c0_i32_0 : i32, i32
  }
  func.func @transform_6(%arg0: i32) -> (i32, i32) {
    %c0_i32 = arith.constant 0 : i32
    %c0_i32_0 = arith.constant 0 : i32
    %c0_i32_1 = arith.constant 0 : i32
    return %c0_i32, %c0_i32_0 : i32, i32
  }
  func.func @transform_7(%arg0: i32) -> (i32, i32) {
    %c0_i32 = arith.constant 0 : i32
    %c0_i32_0 = arith.constant 0 : i32
    %c0_i32_1 = arith.constant 0 : i32
    return %c0_i32, %c0_i32_0 : i32, i32
  }
  func.func @transform_8(%arg0: i32) -> (i32, i32) {
    %c0_i32 = arith.constant 0 : i32
    %c0_i32_0 = arith.constant 0 : i32
    %c0_i32_1 = arith.constant 0 : i32
    return %c0_i32, %c0_i32_0 : i32, i32
  }
  func.func @transform_9(%arg0: i32) -> (i32, i32) {
    %c0_i32 = arith.constant 0 : i32
    %c0_i32_0 = arith.constant 0 : i32
    %c0_i32_1 = arith.constant 0 : i32
    return %c0_i32, %c0_i32_0 : i32, i32
  }
  func.func @transform_10(%arg0: i32) -> (i32, i32) {
    %c0_i32 = arith.constant 0 : i32
    %c0_i32_0 = arith.constant 0 : i32
    %c0_i32_1 = arith.constant 0 : i32
    return %c0_i32, %c0_i32_0 : i32, i32
  }
  func.func @transform_11(%arg0: i32) -> (i32, i32) {
    %c0_i32 = arith.constant 0 : i32
    %c0_i32_0 = arith.constant 0 : i32
    %c0_i32_1 = arith.constant 0 : i32
    return %c0_i32, %c0_i32_0 : i32, i32
  }
  func.func @transform_12(%arg0: i32) -> (i32, i32) {
    %c0_i32 = arith.constant 0 : i32
    %c0_i32_0 = arith.constant 0 : i32
    %c0_i32_1 = arith.constant 0 : i32
    return %c0_i32, %c0_i32_0 : i32, i32
  }
  func.func @transform_13(%arg0: i32) -> (i32, i32) {
    %c0_i32 = arith.constant 0 : i32
    %c0_i32_0 = arith.constant 0 : i32
    %c0_i32_1 = arith.constant 0 : i32
    return %c0_i32, %c0_i32_0 : i32, i32
  }
  func.func @transform_14(%arg0: i32) -> (i32, i32) {
    %c0_i32 = arith.constant 0 : i32
    %c0_i32_0 = arith.constant 0 : i32
    %c0_i32_1 = arith.constant 0 : i32
    return %c0_i32, %c0_i32_0 : i32, i32
  }
  func.func @transform_15(%arg0: i32) -> (i32, i32) {
    %c0_i32 = arith.constant 0 : i32
    %c0_i32_0 = arith.constant 0 : i32
    %c0_i32_1 = arith.constant 0 : i32
    return %c0_i32, %c0_i32_0 : i32, i32
  }
  func.func @transform_16(%arg0: i32) -> (i32, i32) {
    %c0_i32 = arith.constant 0 : i32
    %c0_i32_0 = arith.constant 0 : i32
    %c0_i32_1 = arith.constant 0 : i32
    return %c0_i32, %c0_i32_0 : i32, i32
  }
  func.func @transform_17(%arg0: i32) -> (i32, i32) {
    %c0_i32 = arith.constant 0 : i32
    %c0_i32_0 = arith.constant 0 : i32
    %c0_i32_1 = arith.constant 0 : i32
    return %c0_i32, %c0_i32_0 : i32, i32
  }
  func.func @transform_18(%arg0: i32) -> (i32, i32) {
    %c0_i32 = arith.constant 0 : i32
    %c0_i32_0 = arith.constant 0 : i32
    %c0_i32_1 = arith.constant 0 : i32
    return %c0_i32, %c0_i32_0 : i32, i32
  }
  func.func @transform_19(%arg0: i32) -> (i32, i32) {
    %c0_i32 = arith.constant 0 : i32
    %c0_i32_0 = arith.constant 0 : i32
    %c0_i32_1 = arith.constant 0 : i32
    return %c0_i32, %c0_i32_0 : i32, i32
  }
  func.func @transform_20(%arg0: i32) -> (i32, i32) {
    %c0_i32 = arith.constant 0 : i32
    %c0_i32_0 = arith.constant 0 : i32
    %c0_i32_1 = arith.constant 0 : i32
    return %c0_i32, %c0_i32_0 : i32, i32
  }
  func.func @transform_21(%arg0: i32) -> (i32, i32) {
    %c0_i32 = arith.constant 0 : i32
    %c0_i32_0 = arith.constant 0 : i32
    %c0_i32_1 = arith.constant 0 : i32
    return %c0_i32, %c0_i32_0 : i32, i32
  }
  func.func @transform_22(%arg0: i32) -> (i32, i32) {
    %c0_i32 = arith.constant 0 : i32
    %c0_i32_0 = arith.constant 0 : i32
    %c0_i32_1 = arith.constant 0 : i32
    return %c0_i32, %c0_i32_0 : i32, i32
  }
  func.func @transform_23(%arg0: i32) -> (i32, i32) {
    %c0_i32 = arith.constant 0 : i32
    %c0_i32_0 = arith.constant 0 : i32
    %c0_i32_1 = arith.constant 0 : i32
    return %c0_i32, %c0_i32_0 : i32, i32
  }
  func.func @transform_24(%arg0: i32) -> (i32, i32) {
    %c0_i32 = arith.constant 0 : i32
    %c0_i32_0 = arith.constant 0 : i32
    %c0_i32_1 = arith.constant 0 : i32
    return %c0_i32, %c0_i32_0 : i32, i32
  }
  func.func @transform_25(%arg0: i32) -> (i32, i32) {
    %c0_i32 = arith.constant 0 : i32
    %c0_i32_0 = arith.constant 0 : i32
    %c0_i32_1 = arith.constant 0 : i32
    return %c0_i32, %c0_i32_0 : i32, i32
  }
  func.func @transform_26(%arg0: i32) -> (i32, i32) {
    %c0_i32 = arith.constant 0 : i32
    %c0_i32_0 = arith.constant 0 : i32
    %c0_i32_1 = arith.constant 0 : i32
    return %c0_i32, %c0_i32_0 : i32, i32
  }
  func.func @transform_27(%arg0: i32) -> (i32, i32) {
    %c0_i32 = arith.constant 0 : i32
    %c0_i32_0 = arith.constant 0 : i32
    %c0_i32_1 = arith.constant 0 : i32
    return %c0_i32, %c0_i32_0 : i32, i32
  }
  func.func @transform_28(%arg0: i32) -> (i32, i32, i32) {
    %c0_i32 = arith.constant 0 : i32
    %c0_i32_0 = arith.constant 0 : i32
    %c0_i32_1 = arith.constant 0 : i32
    %c0_i32_2 = arith.constant 0 : i32
    return %c0_i32, %c0_i32_0, %c0_i32_1 : i32, i32, i32
  }
  func.func @transform_29(%arg0: i32) -> (i32, i32) {
    %c0_i32 = arith.constant 0 : i32
    %c0_i32_0 = arith.constant 0 : i32
    %c0_i32_1 = arith.constant 0 : i32
    return %c0_i32, %c0_i32_0 : i32, i32
  }
  func.func @transform_30(%arg0: i32) -> (i32, i32, i32) {
    %c0_i32 = arith.constant 0 : i32
    %c0_i32_0 = arith.constant 0 : i32
    %c0_i32_1 = arith.constant 0 : i32
    return %arg0, %c0_i32, %c0_i32_0 : i32, i32, i32
  }
}

</mosaic_0001>

<llo_original>
// kernel: mid_block_forward.1
$region0: #{mid_block_forward.1}
  #allocation0 [shape = 'u32[]', space=smem, size = 0x4, offset = 0x4, fixed_abs, tag = 'smem constant byte address 0x4 - core index']
  #allocation1 [shape = 'u32[144,128]{1,0:T(1,128)}', space=vmem, size = 0x12000, scoped, tag = 'internal scratch']
  %s0 = inlined_call_operand.smem [shape: u32[31], index: -1, kind: input, shape index: {}]
  %s1 = sld [smem:[%s0]]
  %s2 = scalar_lea.smem %s0, 1
  %s3 = sld [smem:[%s2]]
  %s4 = scalar_lea.smem %s0, 2
  %s5 = sld [smem:[%s4]]
  %s6 = scalar_lea.smem %s0, 3
  %s7 = sld [smem:[%s6]]
  %s8 = scalar_lea.smem %s0, 4
  %s9 = sld [smem:[%s8]]
  %s10 = scalar_lea.smem %s0, 5
  %s11 = sld [smem:[%s10]]
  %s12 = scalar_lea.smem %s0, 6
  %s13 = sld [smem:[%s12]]
  %s14 = scalar_lea.smem %s0, 7
  %s15 = sld [smem:[%s14]]
  %s16 = scalar_lea.smem %s0, 8
  %s17 = sld [smem:[%s16]]
  %s18 = scalar_lea.smem %s0, 9
  %s19 = sld [smem:[%s18]]
  %s20 = scalar_lea.smem %s0, 10
  %s21 = sld [smem:[%s20]]
  %s22 = scalar_lea.smem %s0, 11
  %s23 = sld [smem:[%s22]]
  %s24 = scalar_lea.smem %s0, 12
  %s25 = sld [smem:[%s24]]
  %s26 = scalar_lea.smem %s0, 13
  %s27 = sld [smem:[%s26]]
  %s28 = scalar_lea.smem %s0, 14
  %s29 = sld [smem:[%s28]]
  %s30 = scalar_lea.smem %s0, 15
  %s31 = sld [smem:[%s30]]
  %s32 = scalar_lea.smem %s0, 16
  %s33 = sld [smem:[%s32]]
  %s34 = scalar_lea.smem %s0, 17
  %s35 = sld [smem:[%s34]]
  %s36 = scalar_lea.smem %s0, 18
  %s37 = sld [smem:[%s36]]
  %s38 = scalar_lea.smem %s0, 19
  %s39 = sld [smem:[%s38]]
  %s40 = scalar_lea.smem %s0, 20
  %s41 = sld [smem:[%s40]]
  %s42 = scalar_lea.smem %s0, 21
  %s43 = sld [smem:[%s42]]
  %s44 = scalar_lea.smem %s0, 22
  %s45 = sld [smem:[%s44]]
  %s46 = scalar_lea.smem %s0, 23
  %s47 = sld [smem:[%s46]]
  %s48 = scalar_lea.smem %s0, 24
  %s49 = sld [smem:[%s48]]
  %s50 = scalar_lea.smem %s0, 25
  %s51 = sld [smem:[%s50]]
  %s52 = scalar_lea.smem %s0, 26
  %s53 = sld [smem:[%s52]]
  %s54 = scalar_lea.smem %s0, 27
  %s55 = sld [smem:[%s54]]
  %s56 = scalar_lea.smem %s0, 28
  %s57 = sld [smem:[%s56]]
  %s58 = scalar_lea.smem %s0, 29
  %s59 = sld [smem:[%s58]]
  %s60 = scalar_lea.smem %s0, 30
  %s61 = sld [smem:[%s60]]
  %s62 = sld [smem:[#allocation0]]
  $region153: #{mid_block_forward.1} parent=0
    _
  %s64 = ssub.s32 1, %s62
  %s65 = scalar_select 0, %s64, %s62
  loop: start=0, step=1, limit=4
  $region2: #{mid_block_forward.1} parent=0 // loop_pre_header
    _
  $region3: #{mid_block_forward.1} parent=0 // loop_header
    %s67 = sphi 0, %s71
    %p68 = scmp.ge.s32.totalorder %s67, 4
    %s77 = sphi 0, %s79
    %s80 = sphi 0, %s77
    %s81 = sphi 0, %s80
    %s97 = sphi 0, %s81
    %s103 = sphi 0, %s105
    %s106 = sphi 0, %s103
    %s107 = sphi 0, %s106
    %s123 = sphi 0, %s107
    %s127 = sphi 0, %s127
    %s129 = sphi 0, %s127
    %s130 = sphi 0, %s129
    %s144 = sphi 0, %s130
    %s148 = sphi 0, %s148
    %s150 = sphi 0, %s148
    %s151 = sphi 0, %s150
    %s165 = sphi 0, %s151
    %s169 = sphi 0, %s169
    %s171 = sphi 0, %s169
    %s172 = sphi 0, %s171
    %s186 = sphi 0, %s172
    %s190 = sphi 0, %s190
    %s192 = sphi 0, %s190
    %s193 = sphi 0, %s192
    %s207 = sphi 0, %s193
    %s211 = sphi 0, %s211
    %s213 = sphi 0, %s211
    %s214 = sphi 0, %s213
    %s228 = sphi 0, %s214
    %s232 = sphi 0, %s232
    %s234 = sphi 0, %s232
    %s235 = sphi 0, %s234
    %s249 = sphi 0, %s235
    %s253 = sphi 0, %s253
    %s255 = sphi 0, %s253
    %s256 = sphi 0, %s255
    %s270 = sphi 0, %s256
    %s274 = sphi 0, %s274
    %s276 = sphi 0, %s274
    %s277 = sphi 0, %s276
    %s291 = sphi 0, %s277
    %s295 = sphi 0, %s295
    %s297 = sphi 0, %s295
    %s298 = sphi 0, %s297
    %s312 = sphi 0, %s298
    %s316 = sphi 0, %s316
    %s318 = sphi 0, %s316
    %s319 = sphi 0, %s318
    %s333 = sphi 0, %s319
    %s337 = sphi 0, %s337
    %s339 = sphi 0, %s337
    %s340 = sphi 0, %s339
    %s354 = sphi 0, %s340
    %s358 = sphi 0, %s358
    %s360 = sphi 0, %s358
    %s361 = sphi 0, %s360
    %s375 = sphi 0, %s361
    %s379 = sphi 0, %s379
    %s381 = sphi 0, %s379
    %s382 = sphi 0, %s381
    %s396 = sphi 0, %s382
    %s400 = sphi 0, %s400
    %s402 = sphi 0, %s400
    %s403 = sphi 0, %s402
    %s417 = sphi 0, %s403
    %s421 = sphi 0, %s421
    %s423 = sphi 0, %s421
    %s424 = sphi 0, %s423
    %s438 = sphi 0, %s424
    %s442 = sphi 0, %s442
    %s444 = sphi 0, %s442
    %s445 = sphi 0, %s444
    %s459 = sphi 0, %s445
    %s463 = sphi 0, %s463
    %s465 = sphi 0, %s463
    %s466 = sphi 0, %s465
    %s480 = sphi 0, %s466
    %s484 = sphi 0, %s484
    %s486 = sphi 0, %s484
    %s487 = sphi 0, %s486
    %s501 = sphi 0, %s487
    %s505 = sphi 0, %s505
    %s507 = sphi 0, %s505
    %s508 = sphi 0, %s507
    %s522 = sphi 0, %s508
    %s526 = sphi 0, %s526
    %s528 = sphi 0, %s526
    %s529 = sphi 0, %s528
    %s543 = sphi 0, %s529
    %s547 = sphi 0, %s547
    %s549 = sphi 0, %s547
    %s550 = sphi 0, %s549
    %s564 = sphi 0, %s550
    %s568 = sphi 0, %s568
    %s570 = sphi 0, %s568
    %s571 = sphi 0, %s570
    %s585 = sphi 0, %s571
    %s589 = sphi 0, %s589
    %s591 = sphi 0, %s589
    %s592 = sphi 0, %s591
    %s606 = sphi 0, %s592
    %s610 = sphi 0, %s610
    %s612 = sphi 0, %s610
    %s613 = sphi 0, %s612
    %s627 = sphi 0, %s613
    %s631 = sphi 0, %s631
    %s633 = sphi 0, %s631
    %s634 = sphi 0, %s633
    %s648 = sphi 0, %s634
    %s652 = sphi 0, %s652
    %s654 = sphi 0, %s652
    %s655 = sphi 0, %s654
    %s669 = sphi 0, %s655
    %s673 = sphi 0, %s673
    %s675 = sphi 0, %s673
    %s676 = sphi 0, %s675
    %s690 = sphi 0, %s676
    %s694 = sphi 0, %s694
    %s696 = sphi 0, %s694
    %s697 = sphi 0, %s696
    %s711 = sphi 0, %s697
    %s717 = sphi 0, %s719
    %s720 = sphi 0, %s717
    %s721 = sphi 0, %s720
    %s737 = sphi 0, %s721
  $region4: #{mid_block_forward.1} parent=0 // loop_header_branch
    %70 = sbr.rel (%p68) target = $region8
  $region5: #{mid_block_forward.1} parent=0 // loop_body
    %s72 = ssub.s32 %s67, 1
    %s73 = ssub.s32 %s67, 2
    %s74 = sadd.s32 %s67, 1
    %s75 = ssub.s32 %s67, %s74
    %p76 = scmp.eq.s32.totalorder %s75, 0
    %s78 = sadd.s32 %s77, 1
    %s79 = scalar_select %p76, %s77, %s78
    %p82 = pneg %p76
    %p83 = scmp.eq.s32.totalorder %s67, 1
    %p84 = por %p82, %p83
    %p85 = scmp.ne.s32.totalorder %s77, %s80
    %p86 = scmp.eq.s32.totalorder %s67, 0
    %p87 = por %p85, %p86
    %p88 = scmp.ne.s32.totalorder %s77, %s80
    %p89 = scmp.eq.s32.totalorder %s72, 1
    %p90 = por %p88, %p89
    %p91 = scmp.ne.s32.totalorder %s80, %s81
    %p92 = scmp.eq.s32.totalorder %s72, 0
    %p93 = por %p91, %p92
    %p94 = scmp.ne.s32.totalorder %s80, %s81
    %p95 = scmp.eq.s32.totalorder %s73, 1
    %p96 = por %p94, %p95
    %p98 = scmp.ne.s32.totalorder %s81, %s97
    %p99 = scmp.eq.s32.totalorder %s73, 0
    %p100 = por %p98, %p99
    %s101 = ssub.s32 %s67, %s74
    %p102 = scmp.eq.s32.totalorder %s101, 0
    %s104 = sadd.s32 %s103, 1
    %s105 = scalar_select %p102, %s103, %s104
    %p108 = pneg %p102
    %p109 = scmp.eq.s32.totalorder %s67, 1
    %p110 = por %p108, %p109
    %p111 = scmp.ne.s32.totalorder %s103, %s106
    %p112 = scmp.eq.s32.totalorder %s67, 0
    %p113 = por %p111, %p112
    %p114 = scmp.ne.s32.totalorder %s103, %s106
    %p115 = scmp.eq.s32.totalorder %s72, 1
    %p116 = por %p114, %p115
    %p117 = scmp.ne.s32.totalorder %s106, %s107
    %p118 = scmp.eq.s32.totalorder %s72, 0
    %p119 = por %p117, %p118
    %p120 = scmp.ne.s32.totalorder %s106, %s107
    %p121 = scmp.eq.s32.totalorder %s73, 1
    %p122 = por %p120, %p121
    %p124 = scmp.ne.s32.totalorder %s107, %s123
    %p125 = scmp.eq.s32.totalorder %s73, 0
    %p126 = por %p124, %p125
    %s128 = sadd.s32 %s127, 1
    %p131 = scmp.eq.s32.totalorder %s67, 1
    %p132 = scmp.ne.s32.totalorder %s127, %s129
    %p133 = scmp.eq.s32.totalorder %s67, 0
    %p134 = por %p132, %p133
    %p135 = scmp.ne.s32.totalorder %s127, %s129
    %p136 = scmp.eq.s32.totalorder %s72, 1
    %p137 = por %p135, %p136
    %p138 = scmp.ne.s32.totalorder %s129, %s130
    %p139 = scmp.eq.s32.totalorder %s72, 0
    %p140 = por %p138, %p139
    %p141 = scmp.ne.s32.totalorder %s129, %s130
    %p142 = scmp.eq.s32.totalorder %s73, 1
    %p143 = por %p141, %p142
    %p145 = scmp.ne.s32.totalorder %s130, %s144
    %p146 = scmp.eq.s32.totalorder %s73, 0
    %p147 = por %p145, %p146
    %s149 = sadd.s32 %s148, 1
    %p152 = scmp.eq.s32.totalorder %s67, 1
    %p153 = scmp.ne.s32.totalorder %s148, %s150
    %p154 = scmp.eq.s32.totalorder %s67, 0
    %p155 = por %p153, %p154
    %p156 = scmp.ne.s32.totalorder %s148, %s150
    %p157 = scmp.eq.s32.totalorder %s72, 1
    %p158 = por %p156, %p157
    %p159 = scmp.ne.s32.totalorder %s150, %s151
    %p160 = scmp.eq.s32.totalorder %s72, 0
    %p161 = por %p159, %p160
    %p162 = scmp.ne.s32.totalorder %s150, %s151
    %p163 = scmp.eq.s32.totalorder %s73, 1
    %p164 = por %p162, %p163
    %p166 = scmp.ne.s32.totalorder %s151, %s165
    %p167 = scmp.eq.s32.totalorder %s73, 0
    %p168 = por %p166, %p167
    %s170 = sadd.s32 %s169, 1
    %p173 = scmp.eq.s32.totalorder %s67, 1
    %p174 = scmp.ne.s32.totalorder %s169, %s171
    %p175 = scmp.eq.s32.totalorder %s67, 0
    %p176 = por %p174, %p175
    %p177 = scmp.ne.s32.totalorder %s169, %s171
    %p178 = scmp.eq.s32.totalorder %s72, 1
    %p179 = por %p177, %p178
    %p180 = scmp.ne.s32.totalorder %s171, %s172
    %p181 = scmp.eq.s32.totalorder %s72, 0
    %p182 = por %p180, %p181
    %p183 = scmp.ne.s32.totalorder %s171, %s172
    %p184 = scmp.eq.s32.totalorder %s73, 1
    %p185 = por %p183, %p184
    %p187 = scmp.ne.s32.totalorder %s172, %s186
    %p188 = scmp.eq.s32.totalorder %s73, 0
    %p189 = por %p187, %p188
    %s191 = sadd.s32 %s190, 1
    %p194 = scmp.eq.s32.totalorder %s67, 1
    %p195 = scmp.ne.s32.totalorder %s190, %s192
    %p196 = scmp.eq.s32.totalorder %s67, 0
    %p197 = por %p195, %p196
    %p198 = scmp.ne.s32.totalorder %s190, %s192
    %p199 = scmp.eq.s32.totalorder %s72, 1
    %p200 = por %p198, %p199
    %p201 = scmp.ne.s32.totalorder %s192, %s193
    %p202 = scmp.eq.s32.totalorder %s72, 0
    %p203 = por %p201, %p202
    %p204 = scmp.ne.s32.totalorder %s192, %s193
    %p205 = scmp.eq.s32.totalorder %s73, 1
    %p206 = por %p204, %p205
    %p208 = scmp.ne.s32.totalorder %s193, %s207
    %p209 = scmp.eq.s32.totalorder %s73, 0
    %p210 = por %p208, %p209
    %s212 = sadd.s32 %s211, 1
    %p215 = scmp.eq.s32.totalorder %s67, 1
    %p216 = scmp.ne.s32.totalorder %s211, %s213
    %p217 = scmp.eq.s32.totalorder %s67, 0
    %p218 = por %p216, %p217
    %p219 = scmp.ne.s32.totalorder %s211, %s213
    %p220 = scmp.eq.s32.totalorder %s72, 1
    %p221 = por %p219, %p220
    %p222 = scmp.ne.s32.totalorder %s213, %s214
    %p223 = scmp.eq.s32.totalorder %s72, 0
    %p224 = por %p222, %p223
    %p225 = scmp.ne.s32.totalorder %s213, %s214
    %p226 = scmp.eq.s32.totalorder %s73, 1
    %p227 = por %p225, %p226
    %p229 = scmp.ne.s32.totalorder %s214, %s228
    %p230 = scmp.eq.s32.totalorder %s73, 0
    %p231 = por %p229, %p230
    %s233 = sadd.s32 %s232, 1
    %p236 = scmp.eq.s32.totalorder %s67, 1
    %p237 = scmp.ne.s32.totalorder %s232, %s234
    %p238 = scmp.eq.s32.totalorder %s67, 0
    %p239 = por %p237, %p238
    %p240 = scmp.ne.s32.totalorder %s232, %s234
    %p241 = scmp.eq.s32.totalorder %s72, 1
    %p242 = por %p240, %p241
    %p243 = scmp.ne.s32.totalorder %s234, %s235
    %p244 = scmp.eq.s32.totalorder %s72, 0
    %p245 = por %p243, %p244
    %p246 = scmp.ne.s32.totalorder %s234, %s235
    %p247 = scmp.eq.s32.totalorder %s73, 1
    %p248 = por %p246, %p247
    %p250 = scmp.ne.s32.totalorder %s235, %s249
    %p251 = scmp.eq.s32.totalorder %s73, 0
    %p252 = por %p250, %p251
    %s254 = sadd.s32 %s253, 1
    %p257 = scmp.eq.s32.totalorder %s67, 1
    %p258 = scmp.ne.s32.totalorder %s253, %s255
    %p259 = scmp.eq.s32.totalorder %s67, 0
    %p260 = por %p258, %p259
    %p261 = scmp.ne.s32.totalorder %s253, %s255
    %p262 = scmp.eq.s32.totalorder %s72, 1
    %p263 = por %p261, %p262
    %p264 = scmp.ne.s32.totalorder %s255, %s256
    %p265 = scmp.eq.s32.totalorder %s72, 0
    %p266 = por %p264, %p265
    %p267 = scmp.ne.s32.totalorder %s255, %s256
    %p268 = scmp.eq.s32.totalorder %s73, 1
    %p269 = por %p267, %p268
    %p271 = scmp.ne.s32.totalorder %s256, %s270
    %p272 = scmp.eq.s32.totalorder %s73, 0
    %p273 = por %p271, %p272
    %s275 = sadd.s32 %s274, 1
    %p278 = scmp.eq.s32.totalorder %s67, 1
    %p279 = scmp.ne.s32.totalorder %s274, %s276
    %p280 = scmp.eq.s32.totalorder %s67, 0
    %p281 = por %p279, %p280
    %p282 = scmp.ne.s32.totalorder %s274, %s276
    %p283 = scmp.eq.s32.totalorder %s72, 1
    %p284 = por %p282, %p283
    %p285 = scmp.ne.s32.totalorder %s276, %s277
    %p286 = scmp.eq.s32.totalorder %s72, 0
    %p287 = por %p285, %p286
    %p288 = scmp.ne.s32.totalorder %s276, %s277
    %p289 = scmp.eq.s32.totalorder %s73, 1
    %p290 = por %p288, %p289
    %p292 = scmp.ne.s32.totalorder %s277, %s291
    %p293 = scmp.eq.s32.totalorder %s73, 0
    %p294 = por %p292, %p293
    %s296 = sadd.s32 %s295, 1
    %p299 = scmp.eq.s32.totalorder %s67, 1
    %p300 = scmp.ne.s32.totalorder %s295, %s297
    %p301 = scmp.eq.s32.totalorder %s67, 0
    %p302 = por %p300, %p301
    %p303 = scmp.ne.s32.totalorder %s295, %s297
    %p304 = scmp.eq.s32.totalorder %s72, 1
    %p305 = por %p303, %p304
    %p306 = scmp.ne.s32.totalorder %s297, %s298
    %p307 = scmp.eq.s32.totalorder %s72, 0
    %p308 = por %p306, %p307
    %p309 = scmp.ne.s32.totalorder %s297, %s298
    %p310 = scmp.eq.s32.totalorder %s73, 1
    %p311 = por %p309, %p310
    %p313 = scmp.ne.s32.totalorder %s298, %s312
    %p314 = scmp.eq.s32.totalorder %s73, 0
    %p315 = por %p313, %p314
    %s317 = sadd.s32 %s316, 1
    %p320 = scmp.eq.s32.totalorder %s67, 1
    %p321 = scmp.ne.s32.totalorder %s316, %s318
    %p322 = scmp.eq.s32.totalorder %s67, 0
    %p323 = por %p321, %p322
    %p324 = scmp.ne.s32.totalorder %s316, %s318
    %p325 = scmp.eq.s32.totalorder %s72, 1
    %p326 = por %p324, %p325
    %p327 = scmp.ne.s32.totalorder %s318, %s319
    %p328 = scmp.eq.s32.totalorder %s72, 0
    %p329 = por %p327, %p328
    %p330 = scmp.ne.s32.totalorder %s318, %s319
    %p331 = scmp.eq.s32.totalorder %s73, 1
    %p332 = por %p330, %p331
    %p334 = scmp.ne.s32.totalorder %s319, %s333
    %p335 = scmp.eq.s32.totalorder %s73, 0
    %p336 = por %p334, %p335
    %s338 = sadd.s32 %s337, 1
    %p341 = scmp.eq.s32.totalorder %s67, 1
    %p342 = scmp.ne.s32.totalorder %s337, %s339
    %p343 = scmp.eq.s32.totalorder %s67, 0
    %p344 = por %p342, %p343
    %p345 = scmp.ne.s32.totalorder %s337, %s339
    %p346 = scmp.eq.s32.totalorder %s72, 1
    %p347 = por %p345, %p346
    %p348 = scmp.ne.s32.totalorder %s339, %s340
    %p349 = scmp.eq.s32.totalorder %s72, 0
    %p350 = por %p348, %p349
    %p351 = scmp.ne.s32.totalorder %s339, %s340
    %p352 = scmp.eq.s32.totalorder %s73, 1
    %p353 = por %p351, %p352
    %p355 = scmp.ne.s32.totalorder %s340, %s354
    %p356 = scmp.eq.s32.totalorder %s73, 0
    %p357 = por %p355, %p356
    %s359 = sadd.s32 %s358, 1
    %p362 = scmp.eq.s32.totalorder %s67, 1
    %p363 = scmp.ne.s32.totalorder %s358, %s360
    %p364 = scmp.eq.s32.totalorder %s67, 0
    %p365 = por %p363, %p364
    %p366 = scmp.ne.s32.totalorder %s358, %s360
    %p367 = scmp.eq.s32.totalorder %s72, 1
    %p368 = por %p366, %p367
    %p369 = scmp.ne.s32.totalorder %s360, %s361
    %p370 = scmp.eq.s32.totalorder %s72, 0
    %p371 = por %p369, %p370
    %p372 = scmp.ne.s32.totalorder %s360, %s361
    %p373 = scmp.eq.s32.totalorder %s73, 1
    %p374 = por %p372, %p373
    %p376 = scmp.ne.s32.totalorder %s361, %s375
    %p377 = scmp.eq.s32.totalorder %s73, 0
    %p378 = por %p376, %p377
    %s380 = sadd.s32 %s379, 1
    %p383 = scmp.eq.s32.totalorder %s67, 1
    %p384 = scmp.ne.s32.totalorder %s379, %s381
    %p385 = scmp.eq.s32.totalorder %s67, 0
    %p386 = por %p384, %p385
    %p387 = scmp.ne.s32.totalorder %s379, %s381
    %p388 = scmp.eq.s32.totalorder %s72, 1
    %p389 = por %p387, %p388
    %p390 = scmp.ne.s32.totalorder %s381, %s382
    %p391 = scmp.eq.s32.totalorder %s72, 0
    %p392 = por %p390, %p391
    %p393 = scmp.ne.s32.totalorder %s381, %s382
    %p394 = scmp.eq.s32.totalorder %s73, 1
    %p395 = por %p393, %p394
    %p397 = scmp.ne.s32.totalorder %s382, %s396
    %p398 = scmp.eq.s32.totalorder %s73, 0
    %p399 = por %p397, %p398
    %s401 = sadd.s32 %s400, 1
    %p404 = scmp.eq.s32.totalorder %s67, 1
    %p405 = scmp.ne.s32.totalorder %s400, %s402
    %p406 = scmp.eq.s32.totalorder %s67, 0
    %p407 = por %p405, %p406
    %p408 = scmp.ne.s32.totalorder %s400, %s402
    %p409 = scmp.eq.s32.totalorder %s72, 1
    %p410 = por %p408, %p409
    %p411 = scmp.ne.s32.totalorder %s402, %s403
    %p412 = scmp.eq.s32.totalorder %s72, 0
    %p413 = por %p411, %p412
    %p414 = scmp.ne.s32.totalorder %s402, %s403
    %p415 = scmp.eq.s32.totalorder %s73, 1
    %p416 = por %p414, %p415
    %p418 = scmp.ne.s32.totalorder %s403, %s417
    %p419 = scmp.eq.s32.totalorder %s73, 0
    %p420 = por %p418, %p419
    %s422 = sadd.s32 %s421, 1
    %p425 = scmp.eq.s32.totalorder %s67, 1
    %p426 = scmp.ne.s32.totalorder %s421, %s423
    %p427 = scmp.eq.s32.totalorder %s67, 0
    %p428 = por %p426, %p427
    %p429 = scmp.ne.s32.totalorder %s421, %s423
    %p430 = scmp.eq.s32.totalorder %s72, 1
    %p431 = por %p429, %p430
    %p432 = scmp.ne.s32.totalorder %s423, %s424
    %p433 = scmp.eq.s32.totalorder %s72, 0
    %p434 = por %p432, %p433
    %p435 = scmp.ne.s32.totalorder %s423, %s424
    %p436 = scmp.eq.s32.totalorder %s73, 1
    %p437 = por %p435, %p436
    %p439 = scmp.ne.s32.totalorder %s424, %s438
    %p440 = scmp.eq.s32.totalorder %s73, 0
    %p441 = por %p439, %p440
    %s443 = sadd.s32 %s442, 1
    %p446 = scmp.eq.s32.totalorder %s67, 1
    %p447 = scmp.ne.s32.totalorder %s442, %s444
    %p448 = scmp.eq.s32.totalorder %s67, 0
    %p449 = por %p447, %p448
    %p450 = scmp.ne.s32.totalorder %s442, %s444
    %p451 = scmp.eq.s32.totalorder %s72, 1
    %p452 = por %p450, %p451
    %p453 = scmp.ne.s32.totalorder %s444, %s445
    %p454 = scmp.eq.s32.totalorder %s72, 0
    %p455 = por %p453, %p454
    %p456 = scmp.ne.s32.totalorder %s444, %s445
    %p457 = scmp.eq.s32.totalorder %s73, 1
    %p458 = por %p456, %p457
    %p460 = scmp.ne.s32.totalorder %s445, %s459
    %p461 = scmp.eq.s32.totalorder %s73, 0
    %p462 = por %p460, %p461
    %s464 = sadd.s32 %s463, 1
    %p467 = scmp.eq.s32.totalorder %s67, 1
    %p468 = scmp.ne.s32.totalorder %s463, %s465
    %p469 = scmp.eq.s32.totalorder %s67, 0
    %p470 = por %p468, %p469
    %p471 = scmp.ne.s32.totalorder %s463, %s465
    %p472 = scmp.eq.s32.totalorder %s72, 1
    %p473 = por %p471, %p472
    %p474 = scmp.ne.s32.totalorder %s465, %s466
    %p475 = scmp.eq.s32.totalorder %s72, 0
    %p476 = por %p474, %p475
    %p477 = scmp.ne.s32.totalorder %s465, %s466
    %p478 = scmp.eq.s32.totalorder %s73, 1
    %p479 = por %p477, %p478
    %p481 = scmp.ne.s32.totalorder %s466, %s480
    %p482 = scmp.eq.s32.totalorder %s73, 0
    %p483 = por %p481, %p482
    %s485 = sadd.s32 %s484, 1
    %p488 = scmp.eq.s32.totalorder %s67, 1
    %p489 = scmp.ne.s32.totalorder %s484, %s486
    %p490 = scmp.eq.s32.totalorder %s67, 0
    %p491 = por %p489, %p490
    %p492 = scmp.ne.s32.totalorder %s484, %s486
    %p493 = scmp.eq.s32.totalorder %s72, 1
    %p494 = por %p492, %p493
    %p495 = scmp.ne.s32.totalorder %s486, %s487
    %p496 = scmp.eq.s32.totalorder %s72, 0
    %p497 = por %p495, %p496
    %p498 = scmp.ne.s32.totalorder %s486, %s487
    %p499 = scmp.eq.s32.totalorder %s73, 1
    %p500 = por %p498, %p499
    %p502 = scmp.ne.s32.totalorder %s487, %s501
    %p503 = scmp.eq.s32.totalorder %s73, 0
    %p504 = por %p502, %p503
    %s506 = sadd.s32 %s505, 1
    %p509 = scmp.eq.s32.totalorder %s67, 1
    %p510 = scmp.ne.s32.totalorder %s505, %s507
    %p511 = scmp.eq.s32.totalorder %s67, 0
    %p512 = por %p510, %p511
    %p513 = scmp.ne.s32.totalorder %s505, %s507
    %p514 = scmp.eq.s32.totalorder %s72, 1
    %p515 = por %p513, %p514
    %p516 = scmp.ne.s32.totalorder %s507, %s508
    %p517 = scmp.eq.s32.totalorder %s72, 0
    %p518 = por %p516, %p517
    %p519 = scmp.ne.s32.totalorder %s507, %s508
    %p520 = scmp.eq.s32.totalorder %s73, 1
    %p521 = por %p519, %p520
    %p523 = scmp.ne.s32.totalorder %s508, %s522
    %p524 = scmp.eq.s32.totalorder %s73, 0
    %p525 = por %p523, %p524
    %s527 = sadd.s32 %s526, 1
    %p530 = scmp.eq.s32.totalorder %s67, 1
    %p531 = scmp.ne.s32.totalorder %s526, %s528
    %p532 = scmp.eq.s32.totalorder %s67, 0
    %p533 = por %p531, %p532
    %p534 = scmp.ne.s32.totalorder %s526, %s528
    %p535 = scmp.eq.s32.totalorder %s72, 1
    %p536 = por %p534, %p535
    %p537 = scmp.ne.s32.totalorder %s528, %s529
    %p538 = scmp.eq.s32.totalorder %s72, 0
    %p539 = por %p537, %p538
    %p540 = scmp.ne.s32.totalorder %s528, %s529
    %p541 = scmp.eq.s32.totalorder %s73, 1
    %p542 = por %p540, %p541
    %p544 = scmp.ne.s32.totalorder %s529, %s543
    %p545 = scmp.eq.s32.totalorder %s73, 0
    %p546 = por %p544, %p545
    %s548 = sadd.s32 %s547, 1
    %p551 = scmp.eq.s32.totalorder %s67, 1
    %p552 = scmp.ne.s32.totalorder %s547, %s549
    %p553 = scmp.eq.s32.totalorder %s67, 0
    %p554 = por %p552, %p553
    %p555 = scmp.ne.s32.totalorder %s547, %s549
    %p556 = scmp.eq.s32.totalorder %s72, 1
    %p557 = por %p555, %p556
    %p558 = scmp.ne.s32.totalorder %s549, %s550
    %p559 = scmp.eq.s32.totalorder %s72, 0
    %p560 = por %p558, %p559
    %p561 = scmp.ne.s32.totalorder %s549, %s550
    %p562 = scmp.eq.s32.totalorder %s73, 1
    %p563 = por %p561, %p562
    %p565 = scmp.ne.s32.totalorder %s550, %s564
    %p566 = scmp.eq.s32.totalorder %s73, 0
    %p567 = por %p565, %p566
    %s569 = sadd.s32 %s568, 1
    %p572 = scmp.eq.s32.totalorder %s67, 1
    %p573 = scmp.ne.s32.totalorder %s568, %s570
    %p574 = scmp.eq.s32.totalorder %s67, 0
    %p575 = por %p573, %p574
    %p576 = scmp.ne.s32.totalorder %s568, %s570
    %p577 = scmp.eq.s32.totalorder %s72, 1
    %p578 = por %p576, %p577
    %p579 = scmp.ne.s32.totalorder %s570, %s571
    %p580 = scmp.eq.s32.totalorder %s72, 0
    %p581 = por %p579, %p580
    %p582 = scmp.ne.s32.totalorder %s570, %s571
    %p583 = scmp.eq.s32.totalorder %s73, 1
    %p584 = por %p582, %p583
    %p586 = scmp.ne.s32.totalorder %s571, %s585
    %p587 = scmp.eq.s32.totalorder %s73, 0
    %p588 = por %p586, %p587
    %s590 = sadd.s32 %s589, 1
    %p593 = scmp.eq.s32.totalorder %s67, 1
    %p594 = scmp.ne.s32.totalorder %s589, %s591
    %p595 = scmp.eq.s32.totalorder %s67, 0
    %p596 = por %p594, %p595
    %p597 = scmp.ne.s32.totalorder %s589, %s591
    %p598 = scmp.eq.s32.totalorder %s72, 1
    %p599 = por %p597, %p598
    %p600 = scmp.ne.s32.totalorder %s591, %s592
    %p601 = scmp.eq.s32.totalorder %s72, 0
    %p602 = por %p600, %p601
    %p603 = scmp.ne.s32.totalorder %s591, %s592
    %p604 = scmp.eq.s32.totalorder %s73, 1
    %p605 = por %p603, %p604
    %p607 = scmp.ne.s32.totalorder %s592, %s606
    %p608 = scmp.eq.s32.totalorder %s73, 0
    %p609 = por %p607, %p608
    %s611 = sadd.s32 %s610, 1
    %p614 = scmp.eq.s32.totalorder %s67, 1
    %p615 = scmp.ne.s32.totalorder %s610, %s612
    %p616 = scmp.eq.s32.totalorder %s67, 0
    %p617 = por %p615, %p616
    %p618 = scmp.ne.s32.totalorder %s610, %s612
    %p619 = scmp.eq.s32.totalorder %s72, 1
    %p620 = por %p618, %p619
    %p621 = scmp.ne.s32.totalorder %s612, %s613
    %p622 = scmp.eq.s32.totalorder %s72, 0
    %p623 = por %p621, %p622
    %p624 = scmp.ne.s32.totalorder %s612, %s613
    %p625 = scmp.eq.s32.totalorder %s73, 1
    %p626 = por %p624, %p625
    %p628 = scmp.ne.s32.totalorder %s613, %s627
    %p629 = scmp.eq.s32.totalorder %s73, 0
    %p630 = por %p628, %p629
    %s632 = sadd.s32 %s631, 1
    %p635 = scmp.eq.s32.totalorder %s67, 1
    %p636 = scmp.ne.s32.totalorder %s631, %s633
    %p637 = scmp.eq.s32.totalorder %s67, 0
    %p638 = por %p636, %p637
    %p639 = scmp.ne.s32.totalorder %s631, %s633
    %p640 = scmp.eq.s32.totalorder %s72, 1
    %p641 = por %p639, %p640
    %p642 = scmp.ne.s32.totalorder %s633, %s634
    %p643 = scmp.eq.s32.totalorder %s72, 0
    %p644 = por %p642, %p643
    %p645 = scmp.ne.s32.totalorder %s633, %s634
    %p646 = scmp.eq.s32.totalorder %s73, 1
    %p647 = por %p645, %p646
    %p649 = scmp.ne.s32.totalorder %s634, %s648
    %p650 = scmp.eq.s32.totalorder %s73, 0
    %p651 = por %p649, %p650
    %s653 = sadd.s32 %s652, 1
    %p656 = scmp.eq.s32.totalorder %s67, 1
    %p657 = scmp.ne.s32.totalorder %s652, %s654
    %p658 = scmp.eq.s32.totalorder %s67, 0
    %p659 = por %p657, %p658
    %p660 = scmp.ne.s32.totalorder %s652, %s654
    %p661 = scmp.eq.s32.totalorder %s72, 1
    %p662 = por %p660, %p661
    %p663 = scmp.ne.s32.totalorder %s654, %s655
    %p664 = scmp.eq.s32.totalorder %s72, 0
    %p665 = por %p663, %p664
    %p666 = scmp.ne.s32.totalorder %s654, %s655
    %p667 = scmp.eq.s32.totalorder %s73, 1
    %p668 = por %p666, %p667
    %p670 = scmp.ne.s32.totalorder %s655, %s669
    %p671 = scmp.eq.s32.totalorder %s73, 0
    %p672 = por %p670, %p671
    %s674 = sadd.s32 %s673, 1
    %p677 = scmp.eq.s32.totalorder %s67, 1
    %p678 = scmp.ne.s32.totalorder %s673, %s675
    %p679 = scmp.eq.s32.totalorder %s67, 0
    %p680 = por %p678, %p679
    %p681 = scmp.ne.s32.totalorder %s673, %s675
    %p682 = scmp.eq.s32.totalorder %s72, 1
    %p683 = por %p681, %p682
    %p684 = scmp.ne.s32.totalorder %s675, %s676
    %p685 = scmp.eq.s32.totalorder %s72, 0
    %p686 = por %p684, %p685
    %p687 = scmp.ne.s32.totalorder %s675, %s676
    %p688 = scmp.eq.s32.totalorder %s73, 1
    %p689 = por %p687, %p688
    %p691 = scmp.ne.s32.totalorder %s676, %s690
    %p692 = scmp.eq.s32.totalorder %s73, 0
    %p693 = por %p691, %p692
    %s695 = sadd.s32 %s694, 1
    %p698 = scmp.eq.s32.totalorder %s67, 1
    %p699 = scmp.ne.s32.totalorder %s694, %s696
    %p700 = scmp.eq.s32.totalorder %s67, 0
    %p701 = por %p699, %p700
    %p702 = scmp.ne.s32.totalorder %s694, %s696
    %p703 = scmp.eq.s32.totalorder %s72, 1
    %p704 = por %p702, %p703
    %p705 = scmp.ne.s32.totalorder %s696, %s697
    %p706 = scmp.eq.s32.totalorder %s72, 0
    %p707 = por %p705, %p706
    %p708 = scmp.ne.s32.totalorder %s696, %s697
    %p709 = scmp.eq.s32.totalorder %s73, 1
    %p710 = por %p708, %p709
    %p712 = scmp.ne.s32.totalorder %s697, %s711
    %p713 = scmp.eq.s32.totalorder %s73, 0
    %p714 = por %p712, %p713
    %s715 = ssub.s32 %s67, %s74
    %p716 = scmp.eq.s32.totalorder %s715, 0
    %s718 = sadd.s32 %s717, 1
    %s719 = scalar_select %p716, %s717, %s718
    %p722 = pneg %p716
    %p723 = scmp.eq.s32.totalorder %s67, 1
    %p724 = por %p722, %p723
    %p725 = scmp.ne.s32.totalorder %s717, %s720
    %p726 = scmp.eq.s32.totalorder %s67, 0
    %p727 = por %p725, %p726
    %p728 = scmp.ne.s32.totalorder %s717, %s720
    %p729 = scmp.eq.s32.totalorder %s72, 1
    %p730 = por %p728, %p729
    %p731 = scmp.ne.s32.totalorder %s720, %s721
    %p732 = scmp.eq.s32.totalorder %s72, 0
    %p733 = por %p731, %p732
    %p734 = scmp.ne.s32.totalorder %s720, %s721
    %p735 = scmp.eq.s32.totalorder %s73, 1
    %p736 = por %p734, %p735
    %p738 = scmp.ne.s32.totalorder %s721, %s737
    %p739 = scmp.eq.s32.totalorder %s73, 0
    %p740 = por %p738, %p739
    %p741 = scmp.le.s32.totalorder 1, %s67
    %p742 = scmp.lt.s32.totalorder %s67, 3
    %p743 = pnand %p741, %p742
    %p744 = pneg %p743
    // Predicated region
    $region9: #{mid_block_forward.1} parent=5 // pred_check
      _
    $region10: #{mid_block_forward.1} parent=5 // pred_check_branch
      %746 = sbr.rel (%p743) target = $region12
    $region11: #{mid_block_forward.1} parent=5 // pred_region
      %s747 = ssub.s32 %s67, 1
      // Predicated region
      $region13: #{mid_block_forward.1} parent=11 // pred_check
        %p748 = pneg %p140
      $region14: #{mid_block_forward.1} parent=11 // pred_check_branch
        %750 = sbr.rel (%p748) target = $region16
      $region15: #{mid_block_forward.1} parent=11 // pred_region
        _
      $region16: #{mid_block_forward.1} parent=11 // pred_fallthru
        _
      // Predicated region
      $region17: #{mid_block_forward.1} parent=11 // pred_check
        %p751 = pneg %p161
      $region18: #{mid_block_forward.1} parent=11 // pred_check_branch
        %753 = sbr.rel (%p751) target = $region20
      $region19: #{mid_block_forward.1} parent=11 // pred_region
        _
      $region20: #{mid_block_forward.1} parent=11 // pred_fallthru
        _
      // Predicated region
      $region21: #{mid_block_forward.1} parent=11 // pred_check
        %p754 = pneg %p182
      $region22: #{mid_block_forward.1} parent=11 // pred_check_branch
        %756 = sbr.rel (%p754) target = $region24
      $region23: #{mid_block_forward.1} parent=11 // pred_region
        _
      $region24: #{mid_block_forward.1} parent=11 // pred_fallthru
        _
      // Predicated region
      $region25: #{mid_block_forward.1} parent=11 // pred_check
        %p757 = pneg %p203
      $region26: #{mid_block_forward.1} parent=11 // pred_check_branch
        %759 = sbr.rel (%p757) target = $region28
      $region27: #{mid_block_forward.1} parent=11 // pred_region
        _
      $region28: #{mid_block_forward.1} parent=11 // pred_fallthru
        _
      // Predicated region
      $region29: #{mid_block_forward.1} parent=11 // pred_check
        %p760 = pneg %p224
      $region30: #{mid_block_forward.1} parent=11 // pred_check_branch
        %762 = sbr.rel (%p760) target = $region32
      $region31: #{mid_block_forward.1} parent=11 // pred_region
        _
      $region32: #{mid_block_forward.1} parent=11 // pred_fallthru
        _
      // Predicated region
      $region33: #{mid_block_forward.1} parent=11 // pred_check
        %p763 = pneg %p245
      $region34: #{mid_block_forward.1} parent=11 // pred_check_branch
        %765 = sbr.rel (%p763) target = $region36
      $region35: #{mid_block_forward.1} parent=11 // pred_region
        _
      $region36: #{mid_block_forward.1} parent=11 // pred_fallthru
        _
      // Predicated region
      $region37: #{mid_block_forward.1} parent=11 // pred_check
        %p766 = pneg %p266
      $region38: #{mid_block_forward.1} parent=11 // pred_check_branch
        %768 = sbr.rel (%p766) target = $region40
      $region39: #{mid_block_forward.1} parent=11 // pred_region
        _
      $region40: #{mid_block_forward.1} parent=11 // pred_fallthru
        _
      // Predicated region
      $region41: #{mid_block_forward.1} parent=11 // pred_check
        %p769 = pneg %p287
      $region42: #{mid_block_forward.1} parent=11 // pred_check_branch
        %771 = sbr.rel (%p769) target = $region44
      $region43: #{mid_block_forward.1} parent=11 // pred_region
        _
      $region44: #{mid_block_forward.1} parent=11 // pred_fallthru
        _
      // Predicated region
      $region45: #{mid_block_forward.1} parent=11 // pred_check
        %p772 = pneg %p308
      $region46: #{mid_block_forward.1} parent=11 // pred_check_branch
        %774 = sbr.rel (%p772) target = $region48
      $region47: #{mid_block_forward.1} parent=11 // pred_region
        _
      $region48: #{mid_block_forward.1} parent=11 // pred_fallthru
        _
      // Predicated region
      $region49: #{mid_block_forward.1} parent=11 // pred_check
        %p775 = pneg %p329
      $region50: #{mid_block_forward.1} parent=11 // pred_check_branch
        %777 = sbr.rel (%p775) target = $region52
      $region51: #{mid_block_forward.1} parent=11 // pred_region
        _
      $region52: #{mid_block_forward.1} parent=11 // pred_fallthru
        _
      // Predicated region
      $region53: #{mid_block_forward.1} parent=11 // pred_check
        %p778 = pneg %p350
      $region54: #{mid_block_forward.1} parent=11 // pred_check_branch
        %780 = sbr.rel (%p778) target = $region56
      $region55: #{mid_block_forward.1} parent=11 // pred_region
        _
      $region56: #{mid_block_forward.1} parent=11 // pred_fallthru
        _
      // Predicated region
      $region57: #{mid_block_forward.1} parent=11 // pred_check
        %p781 = pneg %p371
      $region58: #{mid_block_forward.1} parent=11 // pred_check_branch
        %783 = sbr.rel (%p781) target = $region60
      $region59: #{mid_block_forward.1} parent=11 // pred_region
        _
      $region60: #{mid_block_forward.1} parent=11 // pred_fallthru
        _
      // Predicated region
      $region61: #{mid_block_forward.1} parent=11 // pred_check
        %p784 = pneg %p392
      $region62: #{mid_block_forward.1} parent=11 // pred_check_branch
        %786 = sbr.rel (%p784) target = $region64
      $region63: #{mid_block_forward.1} parent=11 // pred_region
        _
      $region64: #{mid_block_forward.1} parent=11 // pred_fallthru
        _
      // Predicated region
      $region65: #{mid_block_forward.1} parent=11 // pred_check
        %p787 = pneg %p413
      $region66: #{mid_block_forward.1} parent=11 // pred_check_branch
        %789 = sbr.rel (%p787) target = $region68
      $region67: #{mid_block_forward.1} parent=11 // pred_region
        _
      $region68: #{mid_block_forward.1} parent=11 // pred_fallthru
        _
      // Predicated region
      $region69: #{mid_block_forward.1} parent=11 // pred_check
        %p790 = pneg %p434
      $region70: #{mid_block_forward.1} parent=11 // pred_check_branch
        %792 = sbr.rel (%p790) target = $region72
      $region71: #{mid_block_forward.1} parent=11 // pred_region
        _
      $region72: #{mid_block_forward.1} parent=11 // pred_fallthru
        _
      // Predicated region
      $region73: #{mid_block_forward.1} parent=11 // pred_check
        %p793 = pneg %p455
      $region74: #{mid_block_forward.1} parent=11 // pred_check_branch
        %795 = sbr.rel (%p793) target = $region76
      $region75: #{mid_block_forward.1} parent=11 // pred_region
        _
      $region76: #{mid_block_forward.1} parent=11 // pred_fallthru
        _
      // Predicated region
      $region77: #{mid_block_forward.1} parent=11 // pred_check
        %p796 = pneg %p476
      $region78: #{mid_block_forward.1} parent=11 // pred_check_branch
        %798 = sbr.rel (%p796) target = $region80
      $region79: #{mid_block_forward.1} parent=11 // pred_region
        _
      $region80: #{mid_block_forward.1} parent=11 // pred_fallthru
        _
      // Predicated region
      $region81: #{mid_block_forward.1} parent=11 // pred_check
        %p799 = pneg %p497
      $region82: #{mid_block_forward.1} parent=11 // pred_check_branch
        %801 = sbr.rel (%p799) target = $region84
      $region83: #{mid_block_forward.1} parent=11 // pred_region
        _
      $region84: #{mid_block_forward.1} parent=11 // pred_fallthru
        _
      // Predicated region
      $region85: #{mid_block_forward.1} parent=11 // pred_check
        %p802 = pneg %p518
      $region86: #{mid_block_forward.1} parent=11 // pred_check_branch
        %804 = sbr.rel (%p802) target = $region88
      $region87: #{mid_block_forward.1} parent=11 // pred_region
        _
      $region88: #{mid_block_forward.1} parent=11 // pred_fallthru
        _
      // Predicated region
      $region89: #{mid_block_forward.1} parent=11 // pred_check
        %p805 = pneg %p539
      $region90: #{mid_block_forward.1} parent=11 // pred_check_branch
        %807 = sbr.rel (%p805) target = $region92
      $region91: #{mid_block_forward.1} parent=11 // pred_region
        _
      $region92: #{mid_block_forward.1} parent=11 // pred_fallthru
        _
      // Predicated region
      $region93: #{mid_block_forward.1} parent=11 // pred_check
        %p808 = pneg %p560
      $region94: #{mid_block_forward.1} parent=11 // pred_check_branch
        %810 = sbr.rel (%p808) target = $region96
      $region95: #{mid_block_forward.1} parent=11 // pred_region
        _
      $region96: #{mid_block_forward.1} parent=11 // pred_fallthru
        _
      // Predicated region
      $region97: #{mid_block_forward.1} parent=11 // pred_check
        %p811 = pneg %p581
      $region98: #{mid_block_forward.1} parent=11 // pred_check_branch
        %813 = sbr.rel (%p811) target = $region100
      $region99: #{mid_block_forward.1} parent=11 // pred_region
        _
      $region100: #{mid_block_forward.1} parent=11 // pred_fallthru
        _
      // Predicated region
      $region101: #{mid_block_forward.1} parent=11 // pred_check
        %p814 = pneg %p602
      $region102: #{mid_block_forward.1} parent=11 // pred_check_branch
        %816 = sbr.rel (%p814) target = $region104
      $region103: #{mid_block_forward.1} parent=11 // pred_region
        _
      $region104: #{mid_block_forward.1} parent=11 // pred_fallthru
        _
      // Predicated region
      $region105: #{mid_block_forward.1} parent=11 // pred_check
        %p817 = pneg %p623
      $region106: #{mid_block_forward.1} parent=11 // pred_check_branch
        %819 = sbr.rel (%p817) target = $region108
      $region107: #{mid_block_forward.1} parent=11 // pred_region
        _
      $region108: #{mid_block_forward.1} parent=11 // pred_fallthru
        _
      // Predicated region
      $region109: #{mid_block_forward.1} parent=11 // pred_check
        %p820 = pneg %p644
      $region110: #{mid_block_forward.1} parent=11 // pred_check_branch
        %822 = sbr.rel (%p820) target = $region112
      $region111: #{mid_block_forward.1} parent=11 // pred_region
        _
      $region112: #{mid_block_forward.1} parent=11 // pred_fallthru
        _
      // Predicated region
      $region113: #{mid_block_forward.1} parent=11 // pred_check
        %p823 = pneg %p665
      $region114: #{mid_block_forward.1} parent=11 // pred_check_branch
        %825 = sbr.rel (%p823) target = $region116
      $region115: #{mid_block_forward.1} parent=11 // pred_region
        _
      $region116: #{mid_block_forward.1} parent=11 // pred_fallthru
        _
      // Predicated region
      $region117: #{mid_block_forward.1} parent=11 // pred_check
        %p826 = pneg %p686
      $region118: #{mid_block_forward.1} parent=11 // pred_check_branch
        %828 = sbr.rel (%p826) target = $region120
      $region119: #{mid_block_forward.1} parent=11 // pred_region
        _
      $region120: #{mid_block_forward.1} parent=11 // pred_fallthru
        _
      // Predicated region
      $region121: #{mid_block_forward.1} parent=11 // pred_check
        %p829 = pneg %p707
      $region122: #{mid_block_forward.1} parent=11 // pred_check_branch
        %831 = sbr.rel (%p829) target = $region124
      $region123: #{mid_block_forward.1} parent=11 // pred_region
        _
      $region124: #{mid_block_forward.1} parent=11 // pred_fallthru
        _
    $region12: #{mid_block_forward.1} parent=5 // pred_fallthru
      _
    %p832 = scmp.lt.s32.totalorder %s67, 2
    // Predicated region
    $region125: #{mid_block_forward.1} parent=5 // pred_check
      %p833 = pneg %p832
    $region126: #{mid_block_forward.1} parent=5 // pred_check_branch
      %835 = sbr.rel (%p833) target = $region128
    $region127: #{mid_block_forward.1} parent=5 // pred_region
      // Predicated region
      $region129: #{mid_block_forward.1} parent=127 // pred_check
        %p836 = pneg %p87
      $region130: #{mid_block_forward.1} parent=127 // pred_check_branch
        %838 = sbr.rel (%p836) target = $region132
      $region131: #{mid_block_forward.1} parent=127 // pred_region
        %p839 = scmp.lt.s32.totalorder %s67, 1
        %s840 = scalar_select %p839, %s67, 1
        %s841 = smul.addr %s840, 2
        %s842 = smul.addr %s841, 4
        %s843 = scalar_lea.vmem %s1, %s842
      $region132: #{mid_block_forward.1} parent=127 // pred_fallthru
        _
      // Predicated region
      $region133: #{mid_block_forward.1} parent=127 // pred_check
        %p844 = pneg %p113
      $region134: #{mid_block_forward.1} parent=127 // pred_check_branch
        %846 = sbr.rel (%p844) target = $region136
      $region135: #{mid_block_forward.1} parent=127 // pred_region
        %p847 = scmp.lt.s32.totalorder %s67, 1
        %s848 = scalar_select %p847, %s67, 1
        %s849 = smul.addr %s848, 2
        %s850 = smul.addr %s849, 8
        %s851 = scalar_lea.vmem %s3, %s850
      $region136: #{mid_block_forward.1} parent=127 // pred_fallthru
        _
    $region128: #{mid_block_forward.1} parent=5 // pred_fallthru
      _
    %p852 = scmp.le.s32.totalorder 1, %s67
    %p853 = scmp.lt.s32.totalorder %s67, 3
    %p854 = pnand %p852, %p853
    %p855 = pneg %p854
    // Predicated region
    $region137: #{mid_block_forward.1} parent=5 // pred_check
      _
    $region138: #{mid_block_forward.1} parent=5 // pred_check_branch
      %857 = sbr.rel (%p854) target = $region140
    $region139: #{mid_block_forward.1} parent=5 // pred_region
      %s858 = ssub.s32 %s67, 1
      %p859 = scmp.lt.s32.totalorder %s72, 1
      %s860 = scalar_select %p859, %s72, 1
      %s861 = smul.addr %s860, 2
      %s862 = smul.addr %s861, 4
      %s863 = scalar_lea.vmem %s1, %s862
      %p864 = pneg %p93
      %p865 = pneg %p90
      %p866 = scmp.lt.s32.totalorder %s72, 1
      %s867 = scalar_select %p866, %s72, 1
      %s868 = smul.addr %s867, 2
      %s869 = smul.addr %s868, 8
      %s870 = scalar_lea.vmem %s3, %s869
      %p871 = pneg %p119
      %p872 = pneg %p116
      %p873 = pneg %p140
      %p874 = pneg %p137
      %p875 = pneg %p161
      %p876 = pneg %p158
      %p877 = pneg %p182
      %p878 = pneg %p179
      %p879 = pneg %p203
      %p880 = pneg %p200
      %p881 = pneg %p224
      %p882 = pneg %p221
      %p883 = pneg %p245
      %p884 = pneg %p242
      %p885 = pneg %p266
      %p886 = pneg %p263
      %p887 = pneg %p287
      %p888 = pneg %p284
      %p889 = pneg %p308
      %p890 = pneg %p305
      %p891 = pneg %p329
      %p892 = pneg %p326
      %p893 = pneg %p350
      %p894 = pneg %p347
      %p895 = pneg %p371
      %p896 = pneg %p368
      %p897 = pneg %p392
      %p898 = pneg %p389
      %p899 = pneg %p413
      %p900 = pneg %p410
      %p901 = pneg %p434
      %p902 = pneg %p431
      %p903 = pneg %p455
      %p904 = pneg %p452
      %p905 = pneg %p476
      %p906 = pneg %p473
      %p907 = pneg %p497
      %p908 = pneg %p494
      %p909 = pneg %p518
      %p910 = pneg %p515
      %p911 = pneg %p539
      %p912 = pneg %p536
      %p913 = pneg %p560
      %p914 = pneg %p557
      %p915 = pneg %p581
      %p916 = pneg %p578
      %p917 = pneg %p602
      %p918 = pneg %p599
      %p919 = pneg %p623
      %p920 = pneg %p620
      %p921 = pneg %p644
      %p922 = pneg %p641
      %p923 = pneg %p665
      %p924 = pneg %p662
      %p925 = pneg %p686
      %p926 = pneg %p683
      %p927 = pneg %p707
      %p928 = pneg %p704
      %p929 = pneg %p733
      %p930 = pneg %p730
      %p931 = scmp.lt.s32.totalorder %s72, 1
      %s932 = scalar_select %p931, %s72, 1
      %s933 = smul.addr %s932, 2
      %s934 = smul.addr %s933, 8
      %s935 = scalar_lea.vmem %s61, %s934
      %p936 = scmp.lt.s32.totalorder %s72, 1
      %s937 = scalar_select %p936, %s72, 1
      %s938 = smul.addr %s937, 2
      %s939 = smul.addr %s938, 4
      %s940 = scalar_lea.vmem %s1, %s939
      %p941 = scmp.lt.s32.totalorder %s72, 1
      %s942 = scalar_select %p941, %s72, 1
      %s943 = smul.addr %s942, 2
      %s944 = smul.addr %s943, 8
      %s945 = scalar_lea.vmem %s3, %s944
      %p946 = scmp.lt.s32.totalorder %s72, 1
      %s947 = scalar_select %p946, %s72, 1
      %s948 = smul.addr %s947, 2
      %s949 = smul.addr %s948, 8
      %s950 = scalar_lea.vmem %s61, %s949
      %v952 = vld [vmem:[%s5] sm:$0xf]
      %v953 = vld [vmem:[%s7] sm:$0xff]
      %v954 = vld [vmem:[%s940] sm:$0xff]
      %v955 = vld [vmem:[%s945] sm:$0xff]
      %v956 = vld [vmem:[%s9] sm:$0xf]
      %v957 = vld [vmem:[%s11] sm:$0xf]
      %v959 = vcombine.high %v954, %v954
      %vm961 = vcmask 1043456
      %v962 = vsel %vm961, %v954, 0.0
      %v963 = vsel %vm961, %v959, 0.0
      %v964 = vadd.f32 %v962, %v963
      %965 = vadd.xlane.f32.xlu0 %v964
      %v966 = vpop.xlane.xlu0 %965
      %v967 = vmul.f32 %v954, %v954
      %v969 = vcombine.high %v967, %v967
      %v971 = vsel %vm961, %v967, 0.0
      %v972 = vsel %vm961, %v969, 0.0
      %v973 = vadd.f32 %v971, %v972
      %974 = vadd.xlane.f32.xlu0 %v973
      %v975 = vpop.xlane.xlu0 %974
      %vm976 = vcmask 31744
      %v978 = vsel %vm976, %v952, 0
      %v981 = vsel %vm961, %v966, 0
      %983 = vmatprep.subr.mxu0 0.0
      %984 = vmatpush1.msra.mxu0 0.0
      %985 = vmatprep.subr.mxu0 0.0
      %986 = vmatpush1.msra.mxu0 0.0
      %987 = vmatprep.subr.mxu0 0.0
      %988 = vmatpush1.msra.mxu0 0.0
      %989 = vmatprep.subr.mxu0 0.0
      %990 = vmatpush1.msra.mxu0 0.0
      %991 = vmatprep.subr.mxu0 0.0
      %992 = vmatpush1.msra.mxu0 0.0
      %993 = vmatprep.subr.mxu0 0.0
      %994 = vmatpush1.msra.mxu0 0.0
      %995 = vmatprep.subr.mxu0 0.0
      %996 = vmatpush1.msra.mxu0 0.0
      %997 = vmatprep.subr.mxu0 0.0
      %998 = vmatpush1.msra.mxu0 0.0
      %999 = vmatprep.subr.mxu0 0.0
      %1000 = vmatpush1.msra.mxu0 0.0
      %1001 = vmatprep.subr.mxu0 0.0
      %1002 = vmatpush1.msra.mxu0 0.0
      %1003 = vmatprep.subr.mxu0 0.0
      %1004 = vmatpush1.msra.mxu0 0.0
      %1005 = vmatprep.subr.mxu0 0.0
      %1006 = vmatpush1.msra.mxu0 0.0
      %1007 = vmatprep.subr.mxu0 0.0
      %1008 = vmatpush1.msra.mxu0 0.0
      %1009 = vmatprep.subr.mxu0 0.0
      %1010 = vmatpush1.msra.mxu0 0.0
      %1011 = vmatprep.subr.mxu0 0.0
      %1012 = vmatpush1.msra.mxu0 0.0
      %1013 = vmatprep.subr.mxu0 0.0
      %1014 = vmatpush1.msra.mxu0 %v981
      %1015 = vmatprep.subr.mxu0 0.0
      %1016 = vmatpush2.msra.mxu0 0.0
      %1017 = vmatprep.subr.mxu0 0.0
      %1018 = vmatpush2.msra.mxu0 0.0
      %1019 = vmatprep.subr.mxu0 0.0
      %1020 = vmatpush2.msra.mxu0 0.0
      %1021 = vmatprep.subr.mxu0 0.0
      %1022 = vmatpush2.msra.mxu0 0.0
      %1023 = vmatprep.subr.mxu0 0.0
      %1024 = vmatpush2.msra.mxu0 0.0
      %1025 = vmatprep.subr.mxu0 0.0
      %1026 = vmatpush2.msra.mxu0 0.0
      %1027 = vmatprep.subr.mxu0 0.0
      %1028 = vmatpush2.msra.mxu0 0.0
      %1029 = vmatprep.subr.mxu0 0.0
      %1030 = vmatpush2.msra.mxu0 0.0
      %1031 = vmatprep.subr.mxu0 0.0
      %1032 = vmatpush2.msra.mxu0 0.0
      %1033 = vmatprep.subr.mxu0 0.0
      %1034 = vmatpush2.msra.mxu0 0.0
      %1035 = vmatprep.subr.mxu0 0.0
      %1036 = vmatpush2.msra.mxu0 0.0
      %1037 = vmatprep.subr.mxu0 0.0
      %1038 = vmatpush2.msra.mxu0 0.0
      %1039 = vmatprep.subr.mxu0 0.0
      %1040 = vmatpush2.msra.mxu0 0.0
      %1041 = vmatprep.subr.mxu0 0.0
      %1042 = vmatpush2.msra.mxu0 0.0
      %1043 = vmatprep.subr.mxu0 0.0
      %1044 = vmatpush2.msra.mxu0 0.0
      %1045 = vmatprep.subr.mxu0 0.0
      %1046 = vmatpush2.msra.mxu0 0.0
      %1047 = vmatprep.mubr.f32.mxu0 0.0
      %1048 = vmatmul.mubr.f32.gmra.mxu0 %v978
      %v1049 = vpop.f32.mrf.mxu0
      %v1050 = vadd.f32 0.0, %v1049
      %v1051 = vpop.f32.mrf.mxu0
      %1052 = vdwg.mxu0
      %v1053 = vmul.f32 %v1050, 0.00390625
      %v1055 = vsel %vm961, %v975, 0
      %1057 = vmatprep.subr.mxu0 0.0
      %1058 = vmatpush1.msra.mxu0 0.0
      %1059 = vmatprep.subr.mxu0 0.0
      %1060 = vmatpush1.msra.mxu0 0.0
      %1061 = vmatprep.subr.mxu0 0.0
      %1062 = vmatpush1.msra.mxu0 0.0
      %1063 = vmatprep.subr.mxu0 0.0
      %1064 = vmatpush1.msra.mxu0 0.0
      %1065 = vmatprep.subr.mxu0 0.0
      %1066 = vmatpush1.msra.mxu0 0.0
      %1067 = vmatprep.subr.mxu0 0.0
      %1068 = vmatpush1.msra.mxu0 0.0
      %1069 = vmatprep.subr.mxu0 0.0
      %1070 = vmatpush1.msra.mxu0 0.0
      %1071 = vmatprep.subr.mxu0 0.0
      %1072 = vmatpush1.msra.mxu0 0.0
      %1073 = vmatprep.subr.mxu0 0.0
      %1074 = vmatpush1.msra.mxu0 0.0
      %1075 = vmatprep.subr.mxu0 0.0
      %1076 = vmatpush1.msra.mxu0 0.0
      %1077 = vmatprep.subr.mxu0 0.0
      %1078 = vmatpush1.msra.mxu0 0.0
      %1079 = vmatprep.subr.mxu0 0.0
      %1080 = vmatpush1.msra.mxu0 0.0
      %1081 = vmatprep.subr.mxu0 0.0
      %1082 = vmatpush1.msra.mxu0 0.0
      %1083 = vmatprep.subr.mxu0 0.0
      %1084 = vmatpush1.msra.mxu0 0.0
      %1085 = vmatprep.subr.mxu0 0.0
      %1086 = vmatpush1.msra.mxu0 0.0
      %1087 = vmatprep.subr.mxu0 0.0
      %1088 = vmatpush1.msra.mxu0 %v1055
      %1089 = vmatprep.subr.mxu0 0.0
      %1090 = vmatpush2.msra.mxu0 0.0
      %1091 = vmatprep.subr.mxu0 0.0
      %1092 = vmatpush2.msra.mxu0 0.0
      %1093 = vmatprep.subr.mxu0 0.0
      %1094 = vmatpush2.msra.mxu0 0.0
      %1095 = vmatprep.subr.mxu0 0.0
      %1096 = vmatpush2.msra.mxu0 0.0
      %1097 = vmatprep.subr.mxu0 0.0
      %1098 = vmatpush2.msra.mxu0 0.0
      %1099 = vmatprep.subr.mxu0 0.0
      %1100 = vmatpush2.msra.mxu0 0.0
      %1101 = vmatprep.subr.mxu0 0.0
      %1102 = vmatpush2.msra.mxu0 0.0
      %1103 = vmatprep.subr.mxu0 0.0
      %1104 = vmatpush2.msra.mxu0 0.0
      %1105 = vmatprep.subr.mxu0 0.0
      %1106 = vmatpush2.msra.mxu0 0.0
      %1107 = vmatprep.subr.mxu0 0.0
      %1108 = vmatpush2.msra.mxu0 0.0
      %1109 = vmatprep.subr.mxu0 0.0
      %1110 = vmatpush2.msra.mxu0 0.0
      %1111 = vmatprep.subr.mxu0 0.0
      %1112 = vmatpush2.msra.mxu0 0.0
      %1113 = vmatprep.subr.mxu0 0.0
      %1114 = vmatpush2.msra.mxu0 0.0
      %1115 = vmatprep.subr.mxu0 0.0
      %1116 = vmatpush2.msra.mxu0 0.0
      %1117 = vmatprep.subr.mxu0 0.0
      %1118 = vmatpush2.msra.mxu0 0.0
      %1119 = vmatprep.subr.mxu0 0.0
      %1120 = vmatpush2.msra.mxu0 0.0
      %1121 = vmatprep.mubr.f32.mxu0 0.0
      %1122 = vmatmul.mubr.f32.gmra.mxu0 %v978
      %v1123 = vpop.f32.mrf.mxu0
      %v1124 = vadd.f32 0.0, %v1123
      %v1125 = vpop.f32.mrf.mxu0
      %1126 = vdwg.mxu0
      %v1127 = vmul.f32 %v1124, 0.00390625
      %v1128 = vmul.f32 %v1053, %v1053
      %v1129 = vsub.f32 %v1127, %v1128
      %v1130 = vadd.f32 %v1129, 1e-05
      %v1131 = vrsqrt.pop %v1130
      %1133 = vset.pattern.permute.xlu0 0
      %1134 = vperm.xlu0 %1133, %v1053
      %v1135 = vpop.permute.xlu0 %1134
      %v1137 = vunpack.c.l.s4 839922192
      %v1138 = vunpack.c.0.s8 %v1137
      %v1139 = vlaneseq
      %v1140 = vshrl.u32 %v1139, 7
      %v1141 = vsub.s32 %v1138, %v1140
      %v1142 = vrot.slane %v1135, %v1141
      %v1144 = vsub.f32 %v954, %v1142
      %v1145 = vmul.f32 %v1131, %v956
      %1147 = vset.pattern.permute.xlu0 0
      %1148 = vperm.xlu0 %1147, %v1145
      %v1149 = vpop.permute.xlu0 %1148
      %v1151 = vunpack.c.l.s4 839922192
      %v1152 = vunpack.c.0.s8 %v1151
      %v1153 = vlaneseq
      %v1154 = vshrl.u32 %v1153, 7
      %v1155 = vsub.s32 %v1152, %v1154
      %v1156 = vrot.slane %v1149, %v1155
      %v1158 = vmul.f32 %v1144, %v1156
      %1160 = vset.pattern.permute.xlu0 0
      %1161 = vperm.xlu0 %1160, %v957
      %v1162 = vpop.permute.xlu0 %1161
      %v1164 = vunpack.c.l.s4 839922192
      %v1165 = vunpack.c.0.s8 %v1164
      %v1166 = vlaneseq
      %v1167 = vshrl.u32 %v1166, 7
      %v1168 = vsub.s32 %v1165, %v1167
      %v1169 = vrot.slane %v1162, %v1168
      %v1171 = vadd.f32 %v1158, %v1169
      %v1172 = vxor.u32 %v1171, 2147483648
      %v1173 = vmul.f32 %v1172, 1.442695
      %v1174 = vpow.pop %v1173
      %v1175 = vadd.f32 %v1174, 1.0
      %v1176 = vrcp.pop %v1175
      %v1177 = vmul.f32 1.0, %v1176
      %v1178 = vmul.f32 %v1171, %v1177
      %v1179 = vld [vmem:[%s13] sm:$0xf]
      %v1180 = vlaneseq
      %v1181 = vand.u32 %v1180, 127
      %v1182 = vadd.s32 %v1181, 128
      %vm1183 = vcmp.lt.s32.totalorder %v1181, 0
      %v1184 = vsub.s32 0, %v1181
      %v1185 = vsel %vm1183, %v1184, %v1181
      %v1186 = vshrl.u32 %v1185, 4
      %v1187 = vand.u32 %v1185, 15
      %v1188 = vsub.s32 0, %v1187
      %v1189 = vsel %vm1183, %v1188, %v1187
      %vm1190 = vcmp.lt.s32.totalorder %v1182, 0
      %v1191 = vsub.s32 0, %v1182
      %v1192 = vsel %vm1190, %v1191, %v1182
      %v1193 = vshrl.u32 %v1192, 4
      %v1194 = vand.u32 %v1192, 15
      %v1195 = vsub.s32 0, %v1194
      %v1196 = vsel %vm1190, %v1195, %v1194
      %vm1197 = vcmp.ne.s32.totalorder %v1189, 0
      %vm1198 = vcmp.ne.s32.totalorder %v1196, 0
      %vm1199 = vcmp.lt.s32.totalorder %v1189, 0
      %vm1200 = vcmp.lt.s32.totalorder %v1196, 0
      %vm1201 = vmand %vm1199, %vm1197
      %vm1202 = vmand %vm1200, %vm1198
      %v1203 = vadd.s32 %v1189, 16
      %v1204 = vadd.s32 %v1196, 16
      %v1205 = vsel %vm1201, %v1203, %v1189
      %v1206 = vsel %vm1202, %v1204, %v1196
      %vm1207 = vcmp.ge.s32.totalorder %v1205, 1
      %vm1208 = vcmp.ge.s32.totalorder %v1206, 1
      %vm1209 = vcmp.lt.s32.totalorder %v1205, 15
      %vm1210 = vcmp.lt.s32.totalorder %v1206, 15
      %v1212 = vcombine.high %v1178, %v1178
      %1213 = vrot.lane.b32.xlu0 %v1178, 17
      %v1214 = vpop.permute.xlu0 %1213
      %1215 = vrot.lane.b32.xlu0 %v1212, 17
      %v1216 = vpop.permute.xlu0 %1215
      %vm1217 = vcmask 138240
      %v1218 = vsel %vm1217, %v1214, %v1216
      %v1221 = vsel %vm1217, 0.0, %v1214
      %v1222 = vsel %vm1207, 1, 0
      %v1223 = vsel %vm1208, 1, 0
      %vm1224 = vcmp.eq.s32.totalorder %v1222, 1
      %vm1225 = vcmp.eq.s32.totalorder %v1223, 1
      %v1226 = vsel %vm1224, %v1221, 0.0
      %v1227 = vsel %vm1225, %v1218, 0.0
      %1228 = vrot.lane.b32.xlu0 %v1178, 16
      %v1229 = vpop.permute.xlu0 %1228
      %1230 = vrot.lane.b32.xlu0 %v1212, 16
      %v1231 = vpop.permute.xlu0 %1230
      %vm1232 = vcmask 130048
      %v1233 = vsel %vm1232, %v1229, %v1231
      %v1235 = vsel %vm1232, 0.0, %v1229
      %1236 = vrot.lane.b32.xlu0 %v1178, 15
      %v1237 = vpop.permute.xlu0 %1236
      %1238 = vrot.lane.b32.xlu0 %v1212, 15
      %v1239 = vpop.permute.xlu0 %1238
      %vm1240 = vcmask 121856
      %v1241 = vsel %vm1240, %v1237, %v1239
      %v1244 = vsel %vm1240, 0.0, %v1237
      %v1245 = vsel %vm1209, 1, 0
      %v1246 = vsel %vm1210, 1, 0
      %vm1247 = vcmp.eq.s32.totalorder %v1245, 1
      %vm1248 = vcmp.eq.s32.totalorder %v1246, 1
      %v1249 = vsel %vm1247, %v1244, 0.0
      %v1250 = vsel %vm1248, %v1241, 0.0
      %1251 = vrot.lane.b32.xlu0 %v1178, 1
      %v1252 = vpop.permute.xlu0 %1251
      %1253 = vrot.lane.b32.xlu0 %v1212, 1
      %v1254 = vpop.permute.xlu0 %1253
      %vm1255 = vcmask 7168
      %v1256 = vsel %vm1255, %v1252, %v1254
      %v1259 = vsel %vm1255, 0.0, %v1252
      %v1260 = vsel %vm1224, %v1259, 0.0
      %v1261 = vsel %vm1225, %v1256, 0.0
      %1262 = vrot.lane.b32.xlu0 %v1178, 127
      %v1263 = vpop.permute.xlu0 %1262
      %1264 = vrot.lane.b32.xlu0 %v1212, 127
      %v1265 = vpop.permute.xlu0 %1264
      %vm1266 = vcmask 1039360
      %v1267 = vsel %vm1266, %v1263, %v1265
      %v1270 = vsel %vm1266, %v1265, 0.0
      %v1271 = vsel %vm1247, %v1267, 0.0
      %v1272 = vsel %vm1248, %v1270, 0.0
      %1273 = vrot.lane.b32.xlu0 %v1178, 113
      %v1274 = vpop.permute.xlu0 %1273
      %1275 = vrot.lane.b32.xlu0 %v1212, 113
      %v1276 = vpop.permute.xlu0 %1275
      %vm1277 = vcmask 924672
      %v1278 = vsel %vm1277, %v1274, %v1276
      %v1281 = vsel %vm1277, %v1276, 0.0
      %v1282 = vsel %vm1224, %v1278, 0.0
      %v1283 = vsel %vm1225, %v1281, 0.0
      %1284 = vrot.lane.b32.xlu0 %v1178, 112
      %v1285 = vpop.permute.xlu0 %1284
      %1286 = vrot.lane.b32.xlu0 %v1212, 112
      %v1287 = vpop.permute.xlu0 %1286
      %vm1288 = vcmask 916480
      %v1289 = vsel %vm1288, %v1285, %v1287
      %v1291 = vsel %vm1288, %v1287, 0.0
      %1292 = vrot.lane.b32.xlu0 %v1178, 111
      %v1293 = vpop.permute.xlu0 %1292
      %1294 = vrot.lane.b32.xlu0 %v1212, 111
      %v1295 = vpop.permute.xlu0 %1294
      %vm1296 = vcmask 908288
      %v1297 = vsel %vm1296, %v1293, %v1295
      %v1300 = vsel %vm1296, %v1295, 0.0
      %v1301 = vsel %vm1247, %v1297, 0.0
      %v1302 = vsel %vm1248, %v1300, 0.0
      %v1304 = vrot.slane %v1235, 4
      %v1305 = vrot.slane %v1233, 4
      %v1310 = vrot.slane %v1260, 4
      %v1311 = vrot.slane %v1261, 4
      %v1317 = vrot.slane %v1271, 4
      %v1318 = vrot.slane %v1272, 4
      %v1322 = vrot.slane %v1289, 4
      %v1323 = vrot.slane %v1291, 4
      %v1326 = vsel %vm961, %v1226, %v1304
      %v1327 = vsel %vm961, %v1227, %v1305
      %v1328 = vsel %vm961, %v1249, %v1310
      %v1329 = vsel %vm961, %v1250, %v1311
      %v1330 = vsel %vm961, %v1178, %v1317
      %v1331 = vsel %vm961, %v1212, %v1318
      %v1332 = vsel %vm961, %v1282, %v1322
      %v1333 = vsel %vm961, %v1283, %v1323
      %v1334 = vpack.c.bf16 %v1328, %v1326
      %v1335 = vpack.c.bf16 %v1329, %v1327
      %v1336 = vpack.c.bf16 %v1332, %v1330
      %v1337 = vpack.c.bf16 %v1333, %v1331
      %v1338 = vpack.c.bf16 %v1301, %v1301
      %v1339 = vpack.c.bf16 %v1302, %v1302
      %v1340 = vld [vmem:[%s15] sm:$0xff]
      %1342 = vset.pattern.permute.xlu0 0
      %1343 = vperm.xlu0 %1342, %v1340
      %v1344 = vpop.permute.xlu0 %1343
      %vm1346 = vcmask 293888
      %v1348 = vsel %vm1346, %v1179, 0
      %vm1350 = vcmask 1041408
      %v1352 = vsel %vm1350, %v1338, 0
      %v1355 = vsel %vm1350, %v1339, 0
      %1357 = vmatprep.subr.bf16.mxu0 0
      %1358 = vmatpush1.bf16.msra.mxu0 0
      %1359 = vmatprep.subr.bf16.mxu0 0
      %1360 = vmatpush1.bf16.msra.mxu0 0
      %1361 = vmatprep.subr.bf16.mxu0 0
      %1362 = vmatpush1.bf16.msra.mxu0 0
      %1363 = vmatprep.subr.bf16.mxu0 0
      %1364 = vmatpush1.bf16.msra.mxu0 0
      %1365 = vmatprep.subr.bf16.mxu0 0
      %1366 = vmatpush1.bf16.msra.mxu0 0
      %1367 = vmatprep.subr.bf16.mxu0 %v1355
      %1368 = vmatpush1.bf16.msra.mxu0 %v1352
      %1369 = vmatprep.subr.bf16.mxu0 %v1337
      %1370 = vmatpush1.bf16.msra.mxu0 %v1336
      %1371 = vmatprep.subr.bf16.mxu0 %v1335
      %1372 = vmatpush1.bf16.msra.mxu0 %v1334
      %1373 = vmatprep.subr.bf16.mxu0 0
      %1374 = vmatpush2.bf16.msra.mxu0 0
      %1375 = vmatprep.subr.bf16.mxu0 0
      %1376 = vmatpush2.bf16.msra.mxu0 0
      %1377 = vmatprep.subr.bf16.mxu0 0
      %1378 = vmatpush2.bf16.msra.mxu0 0
      %1379 = vmatprep.subr.bf16.mxu0 0
      %1380 = vmatpush2.bf16.msra.mxu0 0
      %1381 = vmatprep.subr.bf16.mxu0 0
      %1382 = vmatpush2.bf16.msra.mxu0 0
      %1383 = vmatprep.subr.bf16.mxu0 0
      %1384 = vmatpush2.bf16.msra.mxu0 0
      %1385 = vmatprep.subr.bf16.mxu0 0
      %1386 = vmatpush2.bf16.msra.mxu0 0
      %1387 = vmatprep.subr.bf16.mxu0 0
      %1388 = vmatpush2.bf16.msra.mxu0 0
      %1389 = vmatprep.mubr.bf16.mxu0 0
      %1390 = vmatmul.mubr.bf16.gmra.mxu0 %v1348
      %v1391 = vpop.f32.mrf.mxu0
      %v1392 = vadd.f32 %v1344, %v1391
      %v1393 = vpop.f32.mrf.mxu0
      %v1394 = vadd.f32 %v1344, %v1393
      %v1395 = vpop.f32.mrf.mxu0
      %v1396 = vpop.f32.mrf.mxu0
      %1397 = vdwg.mxu0
      %1399 = vset.pattern.permute.xlu0 0
      %1400 = vperm.xlu0 %1399, %v955
      %v1401 = vpop.permute.xlu0 %1400
      %v1403 = vadd.f32 %v1392, %v1401
      %v1404 = vadd.f32 %v1394, %v1401
      %v1405 = vld [vmem:[%s17] sm:$0xff]
      %v1406 = vld [vmem:[%s19] sm:$0xff]
      %v1407 = vadd.f32 %v1403, %v1404
      %1408 = vadd.xlane.f32.xlu0 %v1407
      %v1409 = vpop.xlane.xlu0 %1408
      %v1410 = vmul.f32 %v1403, %v1403
      %v1411 = vmul.f32 %v1404, %v1404
      %v1412 = vadd.f32 %v1410, %v1411
      %1413 = vadd.xlane.f32.xlu0 %v1412
      %v1414 = vpop.xlane.xlu0 %1413
      %vm1415 = vcmask 64512
      %v1417 = vsel %vm1415, %v953, 0
      %1419 = vmatprep.subr.mxu0 0.0
      %1420 = vmatpush1.msra.mxu0 0.0
      %1421 = vmatprep.subr.mxu0 0.0
      %1422 = vmatpush1.msra.mxu0 0.0
      %1423 = vmatprep.subr.mxu0 0.0
      %1424 = vmatpush1.msra.mxu0 0.0
      %1425 = vmatprep.subr.mxu0 0.0
      %1426 = vmatpush1.msra.mxu0 0.0
      %1427 = vmatprep.subr.mxu0 0.0
      %1428 = vmatpush1.msra.mxu0 0.0
      %1429 = vmatprep.subr.mxu0 0.0
      %1430 = vmatpush1.msra.mxu0 0.0
      %1431 = vmatprep.subr.mxu0 0.0
      %1432 = vmatpush1.msra.mxu0 0.0
      %1433 = vmatprep.subr.mxu0 0.0
      %1434 = vmatpush1.msra.mxu0 0.0
      %1435 = vmatprep.subr.mxu0 0.0
      %1436 = vmatpush1.msra.mxu0 0.0
      %1437 = vmatprep.subr.mxu0 0.0
      %1438 = vmatpush1.msra.mxu0 0.0
      %1439 = vmatprep.subr.mxu0 0.0
      %1440 = vmatpush1.msra.mxu0 0.0
      %1441 = vmatprep.subr.mxu0 0.0
      %1442 = vmatpush1.msra.mxu0 0.0
      %1443 = vmatprep.subr.mxu0 0.0
      %1444 = vmatpush1.msra.mxu0 0.0
      %1445 = vmatprep.subr.mxu0 0.0
      %1446 = vmatpush1.msra.mxu0 0.0
      %1447 = vmatprep.subr.mxu0 0.0
      %1448 = vmatpush1.msra.mxu0 0.0
      %1449 = vmatprep.subr.mxu0 0.0
      %1450 = vmatpush1.msra.mxu0 %v1409
      %1451 = vmatprep.subr.mxu0 0.0
      %1452 = vmatpush2.msra.mxu0 0.0
      %1453 = vmatprep.subr.mxu0 0.0
      %1454 = vmatpush2.msra.mxu0 0.0
      %1455 = vmatprep.subr.mxu0 0.0
      %1456 = vmatpush2.msra.mxu0 0.0
      %1457 = vmatprep.subr.mxu0 0.0
      %1458 = vmatpush2.msra.mxu0 0.0
      %1459 = vmatprep.subr.mxu0 0.0
      %1460 = vmatpush2.msra.mxu0 0.0
      %1461 = vmatprep.subr.mxu0 0.0
      %1462 = vmatpush2.msra.mxu0 0.0
      %1463 = vmatprep.subr.mxu0 0.0
      %1464 = vmatpush2.msra.mxu0 0.0
      %1465 = vmatprep.subr.mxu0 0.0
      %1466 = vmatpush2.msra.mxu0 0.0
      %1467 = vmatprep.subr.mxu0 0.0
      %1468 = vmatpush2.msra.mxu0 0.0
      %1469 = vmatprep.subr.mxu0 0.0
      %1470 = vmatpush2.msra.mxu0 0.0
      %1471 = vmatprep.subr.mxu0 0.0
      %1472 = vmatpush2.msra.mxu0 0.0
      %1473 = vmatprep.subr.mxu0 0.0
      %1474 = vmatpush2.msra.mxu0 0.0
      %1475 = vmatprep.subr.mxu0 0.0
      %1476 = vmatpush2.msra.mxu0 0.0
      %1477 = vmatprep.subr.mxu0 0.0
      %1478 = vmatpush2.msra.mxu0 0.0
      %1479 = vmatprep.subr.mxu0 0.0
      %1480 = vmatpush2.msra.mxu0 0.0
      %1481 = vmatprep.subr.mxu0 0.0
      %1482 = vmatpush2.msra.mxu0 0.0
      %1483 = vmatprep.mubr.f32.mxu0 0.0
      %1484 = vmatmul.mubr.f32.gmra.mxu0 %v1417
      %v1485 = vpop.f32.mrf.mxu0
      %v1486 = vadd.f32 0.0, %v1485
      %v1487 = vpop.f32.mrf.mxu0
      %1488 = vdwg.mxu0
      %v1489 = vmul.f32 %v1486, 0.001953125
      %1490 = vmatprep.subr.mxu0 0.0
      %1491 = vmatpush1.msra.mxu0 0.0
      %1492 = vmatprep.subr.mxu0 0.0
      %1493 = vmatpush1.msra.mxu0 0.0
      %1494 = vmatprep.subr.mxu0 0.0
      %1495 = vmatpush1.msra.mxu0 0.0
      %1496 = vmatprep.subr.mxu0 0.0
      %1497 = vmatpush1.msra.mxu0 0.0
      %1498 = vmatprep.subr.mxu0 0.0
      %1499 = vmatpush1.msra.mxu0 0.0
      %1500 = vmatprep.subr.mxu0 0.0
      %1501 = vmatpush1.msra.mxu0 0.0
      %1502 = vmatprep.subr.mxu0 0.0
      %1503 = vmatpush1.msra.mxu0 0.0
      %1504 = vmatprep.subr.mxu0 0.0
      %1505 = vmatpush1.msra.mxu0 0.0
      %1506 = vmatprep.subr.mxu0 0.0
      %1507 = vmatpush1.msra.mxu0 0.0
      %1508 = vmatprep.subr.mxu0 0.0
      %1509 = vmatpush1.msra.mxu0 0.0
      %1510 = vmatprep.subr.mxu0 0.0
      %1511 = vmatpush1.msra.mxu0 0.0
      %1512 = vmatprep.subr.mxu0 0.0
      %1513 = vmatpush1.msra.mxu0 0.0
      %1514 = vmatprep.subr.mxu0 0.0
      %1515 = vmatpush1.msra.mxu0 0.0
      %1516 = vmatprep.subr.mxu0 0.0
      %1517 = vmatpush1.msra.mxu0 0.0
      %1518 = vmatprep.subr.mxu0 0.0
      %1519 = vmatpush1.msra.mxu0 0.0
      %1520 = vmatprep.subr.mxu0 0.0
      %1521 = vmatpush1.msra.mxu0 %v1414
      %1522 = vmatprep.subr.mxu0 0.0
      %1523 = vmatpush2.msra.mxu0 0.0
      %1524 = vmatprep.subr.mxu0 0.0
      %1525 = vmatpush2.msra.mxu0 0.0
      %1526 = vmatprep.subr.mxu0 0.0
      %1527 = vmatpush2.msra.mxu0 0.0
      %1528 = vmatprep.subr.mxu0 0.0
      %1529 = vmatpush2.msra.mxu0 0.0
      %1530 = vmatprep.subr.mxu0 0.0
      %1531 = vmatpush2.msra.mxu0 0.0
      %1532 = vmatprep.subr.mxu0 0.0
      %1533 = vmatpush2.msra.mxu0 0.0
      %1534 = vmatprep.subr.mxu0 0.0
      %1535 = vmatpush2.msra.mxu0 0.0
      %1536 = vmatprep.subr.mxu0 0.0
      %1537 = vmatpush2.msra.mxu0 0.0
      %1538 = vmatprep.subr.mxu0 0.0
      %1539 = vmatpush2.msra.mxu0 0.0
      %1540 = vmatprep.subr.mxu0 0.0
      %1541 = vmatpush2.msra.mxu0 0.0
      %1542 = vmatprep.subr.mxu0 0.0
      %1543 = vmatpush2.msra.mxu0 0.0
      %1544 = vmatprep.subr.mxu0 0.0
      %1545 = vmatpush2.msra.mxu0 0.0
      %1546 = vmatprep.subr.mxu0 0.0
      %1547 = vmatpush2.msra.mxu0 0.0
      %1548 = vmatprep.subr.mxu0 0.0
      %1549 = vmatpush2.msra.mxu0 0.0
      %1550 = vmatprep.subr.mxu0 0.0
      %1551 = vmatpush2.msra.mxu0 0.0
      %1552 = vmatprep.subr.mxu0 0.0
      %1553 = vmatpush2.msra.mxu0 0.0
      %1554 = vmatprep.mubr.f32.mxu0 0.0
      %1555 = vmatmul.mubr.f32.gmra.mxu0 %v1417
      %v1556 = vpop.f32.mrf.mxu0
      %v1557 = vadd.f32 0.0, %v1556
      %v1558 = vpop.f32.mrf.mxu0
      %1559 = vdwg.mxu0
      %v1560 = vmul.f32 %v1557, 0.001953125
      %v1561 = vmul.f32 %v1489, %v1489
      %v1562 = vsub.f32 %v1560, %v1561
      %v1563 = vadd.f32 %v1562, 1e-05
      %v1564 = vrsqrt.pop %v1563
      %1566 = vset.pattern.permute.xlu0 0
      %1567 = vperm.xlu0 %1566, %v1489
      %v1568 = vpop.permute.xlu0 %1567
      %v1570 = vsub.f32 %v1403, %v1568
      %v1571 = vsub.f32 %v1404, %v1568
      %v1572 = vmul.f32 %v1564, %v1405
      %1574 = vset.pattern.permute.xlu0 0
      %1575 = vperm.xlu0 %1574, %v1572
      %v1576 = vpop.permute.xlu0 %1575
      %v1578 = vmul.f32 %v1570, %v1576
      %v1579 = vmul.f32 %v1571, %v1576
      %1581 = vset.pattern.permute.xlu0 0
      %1582 = vperm.xlu0 %1581, %v1406
      %v1583 = vpop.permute.xlu0 %1582
      %v1585 = vadd.f32 %v1578, %v1583
      %v1586 = vadd.f32 %v1579, %v1583
      %v1587 = vxor.u32 %v1585, 2147483648
      %v1588 = vxor.u32 %v1586, 2147483648
      %v1589 = vmul.f32 %v1587, 1.442695
      %v1590 = vpow.pop %v1589
      %v1591 = vmul.f32 %v1588, 1.442695
      %v1592 = vpow.pop %v1591
      %v1593 = vadd.f32 %v1590, 1.0
      %v1594 = vadd.f32 %v1592, 1.0
      %v1595 = vrcp.pop %v1593
      %v1596 = vmul.f32 1.0, %v1595
      %v1597 = vrcp.pop %v1594
      %v1598 = vmul.f32 1.0, %v1597
      %v1599 = vmul.f32 %v1585, %v1596
      %v1600 = vmul.f32 %v1586, %v1598
      %v1601 = vld [vmem:[%s21] sm:$0xf]
      %1604 = vrot.lane.b32.xlu0 %v1599, 17
      %v1605 = vpop.permute.xlu0 %1604
      %1606 = vrot.lane.b32.xlu0 %v1600, 17
      %v1607 = vpop.permute.xlu0 %1606
      %v1608 = vsel %vm1217, %v1605, %v1607
      %v1611 = vsel %vm1217, 0.0, %v1605
      %v1612 = vsel %vm1224, %v1611, 0.0
      %v1613 = vsel %vm1225, %v1608, 0.0
      %1614 = vrot.lane.b32.xlu0 %v1599, 16
      %v1615 = vpop.permute.xlu0 %1614
      %1616 = vrot.lane.b32.xlu0 %v1600, 16
      %v1617 = vpop.permute.xlu0 %1616
      %v1618 = vsel %vm1232, %v1615, %v1617
      %v1621 = vsel %vm1232, 0.0, %v1615
      %1622 = vrot.lane.b32.xlu0 %v1599, 15
      %v1623 = vpop.permute.xlu0 %1622
      %1624 = vrot.lane.b32.xlu0 %v1600, 15
      %v1625 = vpop.permute.xlu0 %1624
      %v1626 = vsel %vm1240, %v1623, %v1625
      %v1629 = vsel %vm1240, 0.0, %v1623
      %v1630 = vsel %vm1247, %v1629, 0.0
      %v1631 = vsel %vm1248, %v1626, 0.0
      %1632 = vrot.lane.b32.xlu0 %v1599, 1
      %v1633 = vpop.permute.xlu0 %1632
      %1634 = vrot.lane.b32.xlu0 %v1600, 1
      %v1635 = vpop.permute.xlu0 %1634
      %v1636 = vsel %vm1255, %v1633, %v1635
      %v1639 = vsel %vm1255, 0.0, %v1633
      %v1640 = vsel %vm1224, %v1639, 0.0
      %v1641 = vsel %vm1225, %v1636, 0.0
      %1642 = vrot.lane.b32.xlu0 %v1599, 127
      %v1643 = vpop.permute.xlu0 %1642
      %1644 = vrot.lane.b32.xlu0 %v1600, 127
      %v1645 = vpop.permute.xlu0 %1644
      %v1646 = vsel %vm1266, %v1643, %v1645
      %v1649 = vsel %vm1266, %v1645, 0.0
      %v1650 = vsel %vm1247, %v1646, 0.0
      %v1651 = vsel %vm1248, %v1649, 0.0
      %1652 = vrot.lane.b32.xlu0 %v1599, 113
      %v1653 = vpop.permute.xlu0 %1652
      %1654 = vrot.lane.b32.xlu0 %v1600, 113
      %v1655 = vpop.permute.xlu0 %1654
      %v1656 = vsel %vm1277, %v1653, %v1655
      %v1659 = vsel %vm1277, %v1655, 0.0
      %v1660 = vsel %vm1224, %v1656, 0.0
      %v1661 = vsel %vm1225, %v1659, 0.0
      %1662 = vrot.lane.b32.xlu0 %v1599, 112
      %v1663 = vpop.permute.xlu0 %1662
      %1664 = vrot.lane.b32.xlu0 %v1600, 112
      %v1665 = vpop.permute.xlu0 %1664
      %v1666 = vsel %vm1288, %v1663, %v1665
      %v1669 = vsel %vm1288, %v1665, 0.0
      %1670 = vrot.lane.b32.xlu0 %v1599, 111
      %v1671 = vpop.permute.xlu0 %1670
      %1672 = vrot.lane.b32.xlu0 %v1600, 111
      %v1673 = vpop.permute.xlu0 %1672
      %v1674 = vsel %vm1296, %v1671, %v1673
      %v1677 = vsel %vm1296, %v1673, 0.0
      %v1678 = vsel %vm1247, %v1674, 0.0
      %v1679 = vsel %vm1248, %v1677, 0.0
      %v1680 = vpack.c.bf16 %v1621, %v1612
      %v1681 = vpack.c.bf16 %v1618, %v1613
      %v1682 = vpack.c.bf16 %v1640, %v1630
      %v1683 = vpack.c.bf16 %v1641, %v1631
      %v1684 = vpack.c.bf16 %v1650, %v1599
      %v1685 = vpack.c.bf16 %v1651, %v1600
      %v1686 = vpack.c.bf16 %v1666, %v1660
      %v1687 = vpack.c.bf16 %v1669, %v1661
      %v1688 = vpack.c.bf16 %v1678, %v1678
      %v1689 = vpack.c.bf16 %v1679, %v1679
      %v1690 = vld [vmem:[%s23] sm:$0xff]
      %1692 = vset.pattern.permute.xlu0 0
      %1693 = vperm.xlu0 %1692, %v1690
      %v1694 = vpop.permute.xlu0 %1693
      %vm1696 = vcmask 588800
      %v1698 = vsel %vm1696, %v1601, 0
      %v1701 = vsel %vm961, %v1688, 0
      %v1704 = vsel %vm961, %v1689, 0
      %1706 = vmatprep.subr.bf16.mxu0 0
      %1707 = vmatpush1.bf16.msra.mxu0 0
      %1708 = vmatprep.subr.bf16.mxu0 0
      %1709 = vmatpush1.bf16.msra.mxu0 0
      %1710 = vmatprep.subr.bf16.mxu0 0
      %1711 = vmatpush1.bf16.msra.mxu0 0
      %1712 = vmatprep.subr.bf16.mxu0 %v1704
      %1713 = vmatpush1.bf16.msra.mxu0 %v1701
      %1714 = vmatprep.subr.bf16.mxu0 %v1687
      %1715 = vmatpush1.bf16.msra.mxu0 %v1686
      %1716 = vmatprep.subr.bf16.mxu0 %v1685
      %1717 = vmatpush1.bf16.msra.mxu0 %v1684
      %1718 = vmatprep.subr.bf16.mxu0 %v1683
      %1719 = vmatpush1.bf16.msra.mxu0 %v1682
      %1720 = vmatprep.subr.bf16.mxu0 %v1681
      %1721 = vmatpush1.bf16.msra.mxu0 %v1680
      %1722 = vmatprep.subr.bf16.mxu0 0
      %1723 = vmatpush2.bf16.msra.mxu0 0
      %1724 = vmatprep.subr.bf16.mxu0 0
      %1725 = vmatpush2.bf16.msra.mxu0 0
      %1726 = vmatprep.subr.bf16.mxu0 0
      %1727 = vmatpush2.bf16.msra.mxu0 0
      %1728 = vmatprep.subr.bf16.mxu0 0
      %1729 = vmatpush2.bf16.msra.mxu0 0
      %1730 = vmatprep.subr.bf16.mxu0 0
      %1731 = vmatpush2.bf16.msra.mxu0 0
      %1732 = vmatprep.subr.bf16.mxu0 0
      %1733 = vmatpush2.bf16.msra.mxu0 0
      %1734 = vmatprep.subr.bf16.mxu0 0
      %1735 = vmatpush2.bf16.msra.mxu0 0
      %1736 = vmatprep.subr.bf16.mxu0 0
      %1737 = vmatpush2.bf16.msra.mxu0 0
      %1738 = vmatprep.mubr.bf16.mxu0 0
      %1739 = vmatmul.mubr.bf16.gmra.mxu0 %v1698
      %v1740 = vpop.f32.mrf.mxu0
      %v1741 = vadd.f32 %v1694, %v1740
      %v1742 = vpop.f32.mrf.mxu0
      %v1743 = vadd.f32 %v1694, %v1742
      %v1744 = vpop.f32.mrf.mxu0
      %v1745 = vpop.f32.mrf.mxu0
      %1746 = vdwg.mxu0
      %v1747 = vld [vmem:[%s25] sm:$0xf]
      %v1748 = vpack.c.bf16 %v954, %v954
      %v1749 = vpack.c.bf16 %v959, %v959
      %v1750 = vld [vmem:[%s27] sm:$0xff]
      %1752 = vset.pattern.permute.xlu0 0
      %1753 = vperm.xlu0 %1752, %v1750
      %v1754 = vpop.permute.xlu0 %1753
      %v1757 = vsel %vm976, %v1747, 0
      %v1760 = vsel %vm1350, %v1748, 0
      %v1763 = vsel %vm1350, %v1749, 0
      %1765 = vmatprep.subr.bf16.mxu0 0
      %1766 = vmatpush1.bf16.msra.mxu0 0
      %1767 = vmatprep.subr.bf16.mxu0 0
      %1768 = vmatpush1.bf16.msra.mxu0 0
      %1769 = vmatprep.subr.bf16.mxu0 0
      %1770 = vmatpush1.bf16.msra.mxu0 0
      %1771 = vmatprep.subr.bf16.mxu0 0
      %1772 = vmatpush1.bf16.msra.mxu0 0
      %1773 = vmatprep.subr.bf16.mxu0 0
      %1774 = vmatpush1.bf16.msra.mxu0 0
      %1775 = vmatprep.subr.bf16.mxu0 0
      %1776 = vmatpush1.bf16.msra.mxu0 0
      %1777 = vmatprep.subr.bf16.mxu0 0
      %1778 = vmatpush1.bf16.msra.mxu0 0
      %1779 = vmatprep.subr.bf16.mxu0 %v1763
      %1780 = vmatpush1.bf16.msra.mxu0 %v1760
      %1781 = vmatprep.subr.bf16.mxu0 0
      %1782 = vmatpush2.bf16.msra.mxu0 0
      %1783 = vmatprep.subr.bf16.mxu0 0
      %1784 = vmatpush2.bf16.msra.mxu0 0
      %1785 = vmatprep.subr.bf16.mxu0 0
      %1786 = vmatpush2.bf16.msra.mxu0 0
      %1787 = vmatprep.subr.bf16.mxu0 0
      %1788 = vmatpush2.bf16.msra.mxu0 0
      %1789 = vmatprep.subr.bf16.mxu0 0
      %1790 = vmatpush2.bf16.msra.mxu0 0
      %1791 = vmatprep.subr.bf16.mxu0 0
      %1792 = vmatpush2.bf16.msra.mxu0 0
      %1793 = vmatprep.subr.bf16.mxu0 0
      %1794 = vmatpush2.bf16.msra.mxu0 0
      %1795 = vmatprep.subr.bf16.mxu0 0
      %1796 = vmatpush2.bf16.msra.mxu0 0
      %1797 = vmatprep.mubr.bf16.mxu0 0
      %1798 = vmatmul.mubr.bf16.gmra.mxu0 %v1757
      %v1799 = vpop.f32.mrf.mxu0
      %v1800 = vadd.f32 %v1754, %v1799
      %v1801 = vpop.f32.mrf.mxu0
      %v1802 = vadd.f32 %v1754, %v1801
      %v1803 = vpop.f32.mrf.mxu0
      %v1804 = vpop.f32.mrf.mxu0
      %1805 = vdwg.mxu0
      %v1806 = vadd.f32 %v1741, %v1800
      %v1807 = vadd.f32 %v1743, %v1802
      %v1808 = vld [vmem:[%s49] sm:$0xff]
      %v1809 = vld [vmem:[%s51] sm:$0xff]
      %v1810 = vadd.f32 %v1806, %v1807
      %1811 = vadd.xlane.f32.xlu0 %v1810
      %v1812 = vpop.xlane.xlu0 %1811
      %v1813 = vmul.f32 %v1806, %v1806
      %v1814 = vmul.f32 %v1807, %v1807
      %v1815 = vadd.f32 %v1813, %v1814
      %1816 = vadd.xlane.f32.xlu0 %v1815
      %v1817 = vpop.xlane.xlu0 %1816
      %1818 = vmatprep.subr.mxu0 0.0
      %1819 = vmatpush1.msra.mxu0 0.0
      %1820 = vmatprep.subr.mxu0 0.0
      %1821 = vmatpush1.msra.mxu0 0.0
      %1822 = vmatprep.subr.mxu0 0.0
      %1823 = vmatpush1.msra.mxu0 0.0
      %1824 = vmatprep.subr.mxu0 0.0
      %1825 = vmatpush1.msra.mxu0 0.0
      %1826 = vmatprep.subr.mxu0 0.0
      %1827 = vmatpush1.msra.mxu0 0.0
      %1828 = vmatprep.subr.mxu0 0.0
      %1829 = vmatpush1.msra.mxu0 0.0
      %1830 = vmatprep.subr.mxu0 0.0
      %1831 = vmatpush1.msra.mxu0 0.0
      %1832 = vmatprep.subr.mxu0 0.0
      %1833 = vmatpush1.msra.mxu0 0.0
      %1834 = vmatprep.subr.mxu0 0.0
      %1835 = vmatpush1.msra.mxu0 0.0
      %1836 = vmatprep.subr.mxu0 0.0
      %1837 = vmatpush1.msra.mxu0 0.0
      %1838 = vmatprep.subr.mxu0 0.0
      %1839 = vmatpush1.msra.mxu0 0.0
      %1840 = vmatprep.subr.mxu0 0.0
      %1841 = vmatpush1.msra.mxu0 0.0
      %1842 = vmatprep.subr.mxu0 0.0
      %1843 = vmatpush1.msra.mxu0 0.0
      %1844 = vmatprep.subr.mxu0 0.0
      %1845 = vmatpush1.msra.mxu0 0.0
      %1846 = vmatprep.subr.mxu0 0.0
      %1847 = vmatpush1.msra.mxu0 0.0
      %1848 = vmatprep.subr.mxu0 0.0
      %1849 = vmatpush1.msra.mxu0 %v1812
      %1850 = vmatprep.subr.mxu0 0.0
      %1851 = vmatpush2.msra.mxu0 0.0
      %1852 = vmatprep.subr.mxu0 0.0
      %1853 = vmatpush2.msra.mxu0 0.0
      %1854 = vmatprep.subr.mxu0 0.0
      %1855 = vmatpush2.msra.mxu0 0.0
      %1856 = vmatprep.subr.mxu0 0.0
      %1857 = vmatpush2.msra.mxu0 0.0
      %1858 = vmatprep.subr.mxu0 0.0
      %1859 = vmatpush2.msra.mxu0 0.0
      %1860 = vmatprep.subr.mxu0 0.0
      %1861 = vmatpush2.msra.mxu0 0.0
      %1862 = vmatprep.subr.mxu0 0.0
      %1863 = vmatpush2.msra.mxu0 0.0
      %1864 = vmatprep.subr.mxu0 0.0
      %1865 = vmatpush2.msra.mxu0 0.0
      %1866 = vmatprep.subr.mxu0 0.0
      %1867 = vmatpush2.msra.mxu0 0.0
      %1868 = vmatprep.subr.mxu0 0.0
      %1869 = vmatpush2.msra.mxu0 0.0
      %1870 = vmatprep.subr.mxu0 0.0
      %1871 = vmatpush2.msra.mxu0 0.0
      %1872 = vmatprep.subr.mxu0 0.0
      %1873 = vmatpush2.msra.mxu0 0.0
      %1874 = vmatprep.subr.mxu0 0.0
      %1875 = vmatpush2.msra.mxu0 0.0
      %1876 = vmatprep.subr.mxu0 0.0
      %1877 = vmatpush2.msra.mxu0 0.0
      %1878 = vmatprep.subr.mxu0 0.0
      %1879 = vmatpush2.msra.mxu0 0.0
      %1880 = vmatprep.subr.mxu0 0.0
      %1881 = vmatpush2.msra.mxu0 0.0
      %1882 = vmatprep.mubr.f32.mxu0 0.0
      %1883 = vmatmul.mubr.f32.gmra.mxu0 %v1417
      %v1884 = vpop.f32.mrf.mxu0
      %v1885 = vadd.f32 0.0, %v1884
      %v1886 = vpop.f32.mrf.mxu0
      %1887 = vdwg.mxu0
      %v1888 = vmul.f32 %v1885, 0.001953125
      %1889 = vmatprep.subr.mxu0 0.0
      %1890 = vmatpush1.msra.mxu0 0.0
      %1891 = vmatprep.subr.mxu0 0.0
      %1892 = vmatpush1.msra.mxu0 0.0
      %1893 = vmatprep.subr.mxu0 0.0
      %1894 = vmatpush1.msra.mxu0 0.0
      %1895 = vmatprep.subr.mxu0 0.0
      %1896 = vmatpush1.msra.mxu0 0.0
      %1897 = vmatprep.subr.mxu0 0.0
      %1898 = vmatpush1.msra.mxu0 0.0
      %1899 = vmatprep.subr.mxu0 0.0
      %1900 = vmatpush1.msra.mxu0 0.0
      %1901 = vmatprep.subr.mxu0 0.0
      %1902 = vmatpush1.msra.mxu0 0.0
      %1903 = vmatprep.subr.mxu0 0.0
      %1904 = vmatpush1.msra.mxu0 0.0
      %1905 = vmatprep.subr.mxu0 0.0
      %1906 = vmatpush1.msra.mxu0 0.0
      %1907 = vmatprep.subr.mxu0 0.0
      %1908 = vmatpush1.msra.mxu0 0.0
      %1909 = vmatprep.subr.mxu0 0.0
      %1910 = vmatpush1.msra.mxu0 0.0
      %1911 = vmatprep.subr.mxu0 0.0
      %1912 = vmatpush1.msra.mxu0 0.0
      %1913 = vmatprep.subr.mxu0 0.0
      %1914 = vmatpush1.msra.mxu0 0.0
      %1915 = vmatprep.subr.mxu0 0.0
      %1916 = vmatpush1.msra.mxu0 0.0
      %1917 = vmatprep.subr.mxu0 0.0
      %1918 = vmatpush1.msra.mxu0 0.0
      %1919 = vmatprep.subr.mxu0 0.0
      %1920 = vmatpush1.msra.mxu0 %v1817
      %1921 = vmatprep.subr.mxu0 0.0
      %1922 = vmatpush2.msra.mxu0 0.0
      %1923 = vmatprep.subr.mxu0 0.0
      %1924 = vmatpush2.msra.mxu0 0.0
      %1925 = vmatprep.subr.mxu0 0.0
      %1926 = vmatpush2.msra.mxu0 0.0
      %1927 = vmatprep.subr.mxu0 0.0
      %1928 = vmatpush2.msra.mxu0 0.0
      %1929 = vmatprep.subr.mxu0 0.0
      %1930 = vmatpush2.msra.mxu0 0.0
      %1931 = vmatprep.subr.mxu0 0.0
      %1932 = vmatpush2.msra.mxu0 0.0
      %1933 = vmatprep.subr.mxu0 0.0
      %1934 = vmatpush2.msra.mxu0 0.0
      %1935 = vmatprep.subr.mxu0 0.0
      %1936 = vmatpush2.msra.mxu0 0.0
      %1937 = vmatprep.subr.mxu0 0.0
      %1938 = vmatpush2.msra.mxu0 0.0
      %1939 = vmatprep.subr.mxu0 0.0
      %1940 = vmatpush2.msra.mxu0 0.0
      %1941 = vmatprep.subr.mxu0 0.0
      %1942 = vmatpush2.msra.mxu0 0.0
      %1943 = vmatprep.subr.mxu0 0.0
      %1944 = vmatpush2.msra.mxu0 0.0
      %1945 = vmatprep.subr.mxu0 0.0
      %1946 = vmatpush2.msra.mxu0 0.0
      %1947 = vmatprep.subr.mxu0 0.0
      %1948 = vmatpush2.msra.mxu0 0.0
      %1949 = vmatprep.subr.mxu0 0.0
      %1950 = vmatpush2.msra.mxu0 0.0
      %1951 = vmatprep.subr.mxu0 0.0
      %1952 = vmatpush2.msra.mxu0 0.0
      %1953 = vmatprep.mubr.f32.mxu0 0.0
      %1954 = vmatmul.mubr.f32.gmra.mxu0 %v1417
      %v1955 = vpop.f32.mrf.mxu0
      %v1956 = vadd.f32 0.0, %v1955
      %v1957 = vpop.f32.mrf.mxu0
      %1958 = vdwg.mxu0
      %v1959 = vmul.f32 %v1956, 0.001953125
      %v1960 = vmul.f32 %v1888, %v1888
      %v1961 = vsub.f32 %v1959, %v1960
      %v1962 = vadd.f32 %v1961, 1e-05
      %v1963 = vrsqrt.pop %v1962
      %1965 = vset.pattern.permute.xlu0 0
      %1966 = vperm.xlu0 %1965, %v1888
      %v1967 = vpop.permute.xlu0 %1966
      %v1969 = vsub.f32 %v1806, %v1967
      %v1970 = vsub.f32 %v1807, %v1967
      %v1971 = vmul.f32 %v1963, %v1808
      %1973 = vset.pattern.permute.xlu0 0
      %1974 = vperm.xlu0 %1973, %v1971
      %v1975 = vpop.permute.xlu0 %1974
      %v1977 = vmul.f32 %v1969, %v1975
      %v1978 = vmul.f32 %v1970, %v1975
      %1980 = vset.pattern.permute.xlu0 0
      %1981 = vperm.xlu0 %1980, %v1809
      %v1982 = vpop.permute.xlu0 %1981
      %v1984 = vadd.f32 %v1977, %v1982
      %v1985 = vadd.f32 %v1978, %v1982
      %v1986 = vld [vmem:[%s53] sm:$0xf]
      %v1987 = vld [vmem:[%s53 + $0x4] sm:$0xf]
      %v1988 = vld [vmem:[%s53 + $0x8] sm:$0xf]
      %v1989 = vpack.c.bf16 %v1984, %v1984
      %v1990 = vpack.c.bf16 %v1985, %v1985
      %v1991 = vld [vmem:[%s55] sm:$0xff]
      %v1992 = vld [vmem:[%s55 + $0x8] sm:$0xff]
      %v1993 = vld [vmem:[%s55 + $0x10] sm:$0xff]
      %1995 = vset.pattern.permute.xlu0 0
      %1996 = vperm.xlu0 %1995, %v1991
      %v1997 = vpop.permute.xlu0 %1996
      %2000 = vset.pattern.permute.xlu0 0
      %2001 = vperm.xlu0 %2000, %v1992
      %v2002 = vpop.permute.xlu0 %2001
      %2005 = vset.pattern.permute.xlu0 0
      %2006 = vperm.xlu0 %2005, %v1993
      %v2007 = vpop.permute.xlu0 %2006
      %v2012 = vunpack.c.l.b16 %v1986
      %v2013 = vunpack.c.l.b16 %v1987
      %v2014 = vunpack.c.l.b16 %v1988
      %v2015 = vpack.c.b16 %v2013, %v2012
      %v2016 = vpack.c.b16 %v2014, %v2014
      %v2018 = vsel %vm1415, %v2015, 0
      %v2021 = vsel %vm1415, %v2016, 0
      %v2024 = vsel %vm961, %v1989, 0
      %v2027 = vsel %vm961, %v1990, 0
      %2029 = vmatprep.subr.bf16.mxu0 0
      %2030 = vmatpush1.bf16.msra.mxu0 0
      %2031 = vmatprep.subr.bf16.mxu0 0
      %2032 = vmatpush1.bf16.msra.mxu0 0
      %2033 = vmatprep.subr.bf16.mxu0 0
      %2034 = vmatpush1.bf16.msra.mxu0 0
      %2035 = vmatprep.subr.bf16.mxu0 0
      %2036 = vmatpush1.bf16.msra.mxu0 0
      %2037 = vmatprep.subr.bf16.mxu0 0
      %2038 = vmatpush1.bf16.msra.mxu0 0
      %2039 = vmatprep.subr.bf16.mxu0 0
      %2040 = vmatpush1.bf16.msra.mxu0 0
      %2041 = vmatprep.subr.bf16.mxu0 0
      %2042 = vmatpush1.bf16.msra.mxu0 0
      %2043 = vmatprep.subr.bf16.mxu0 %v2027
      %2044 = vmatpush1.bf16.msra.mxu0 %v2024
      %2045 = vmatprep.subr.bf16.mxu0 0
      %2046 = vmatpush2.bf16.msra.mxu0 0
      %2047 = vmatprep.subr.bf16.mxu0 0
      %2048 = vmatpush2.bf16.msra.mxu0 0
      %2049 = vmatprep.subr.bf16.mxu0 0
      %2050 = vmatpush2.bf16.msra.mxu0 0
      %2051 = vmatprep.subr.bf16.mxu0 0
      %2052 = vmatpush2.bf16.msra.mxu0 0
      %2053 = vmatprep.subr.bf16.mxu0 0
      %2054 = vmatpush2.bf16.msra.mxu0 0
      %2055 = vmatprep.subr.bf16.mxu0 0
      %2056 = vmatpush2.bf16.msra.mxu0 0
      %2057 = vmatprep.subr.bf16.mxu0 0
      %2058 = vmatpush2.bf16.msra.mxu0 0
      %2059 = vmatprep.subr.bf16.mxu0 0
      %2060 = vmatpush2.bf16.msra.mxu0 0
      %2061 = vmatprep.mubr.bf16.mxu0 0
      %2062 = vmatmul.mubr.bf16.gmra.mxu0 %v2018
      %v2063 = vpop.f32.mrf.mxu0
      %v2064 = vadd.f32 %v1997, %v2063
      %v2065 = vpop.f32.mrf.mxu0
      %v2066 = vadd.f32 %v1997, %v2065
      %v2067 = vpop.f32.mrf.mxu0
      %v2068 = vadd.f32 %v2002, %v2067
      %v2069 = vpop.f32.mrf.mxu0
      %v2070 = vadd.f32 %v2002, %v2069
      %2071 = vmatprep.mubr.bf16.mxu0 0
      %2072 = vmatmul.mubr.bf16.gmra.mxu0 %v2021
      %v2073 = vpop.f32.mrf.mxu0
      %v2074 = vadd.f32 %v2007, %v2073
      %v2075 = vpop.f32.mrf.mxu0
      %v2076 = vadd.f32 %v2007, %v2075
      %v2077 = vpop.f32.mrf.mxu0
      %v2078 = vpop.f32.mrf.mxu0
      %2079 = vdwg.mxu0
      %v2080 = vld [vmem:[%s59] sm:$0xff]
      %2082 = vset.pattern.permute.xlu0 0
      %2083 = vperm.xlu0 %2082, %v2080
      %v2084 = vpop.permute.xlu0 %2083
      %v2086 = vadd.f32 %v1806, %v2084
      %v2087 = vadd.f32 %v1807, %v2084
      %v2088 = vpack.c.bf16 %v2064, %v2064
      %v2089 = vpack.c.bf16 %v2066, %v2066
      %v2090 = vpack.c.bf16 %v2068, %v2068
      %v2091 = vpack.c.bf16 %v2070, %v2070
      %v2092 = vpack.c.bf16 %v2074, %v2074
      %v2093 = vpack.c.bf16 %v2076, %v2076
      %2094 = vxpose.xlu0.c.b16.start [1/8] %v2088, 128
      %2095 = vxpose.xlu0.c.b16.cont [2/8] 0, 128
      %2096 = vxpose.xlu0.c.b16.cont [3/8] 0, 128
      %2097 = vxpose.xlu0.c.b16.cont [4/8] 0, 128
      %2098 = vxpose.xlu0.c.b16.cont [5/8] 0, 128
      %2099 = vxpose.xlu0.c.b16.cont [6/8] 0, 128
      %2100 = vxpose.xlu0.c.b16.cont [7/8] 0, 128
      %2101 = vxpose.xlu0.c.b16.end [8/8] 0, 128
      %v2102 = vpop.trf.xlu0
      %v2103 = vpop.trf.xlu0
      %v2104 = vpop.trf.xlu0
      %v2105 = vpop.trf.xlu0
      %v2106 = vpop.trf.xlu0
      %v2107 = vpop.trf.xlu0
      %v2108 = vpop.trf.xlu0
      %v2109 = vpop.trf.xlu0
      %2110 = vxpose.xlu0.c.b16.start [1/8] %v2089, 128
      %2111 = vxpose.xlu0.c.b16.cont [2/8] 0, 128
      %2112 = vxpose.xlu0.c.b16.cont [3/8] 0, 128
      %2113 = vxpose.xlu0.c.b16.cont [4/8] 0, 128
      %2114 = vxpose.xlu0.c.b16.cont [5/8] 0, 128
      %2115 = vxpose.xlu0.c.b16.cont [6/8] 0, 128
      %2116 = vxpose.xlu0.c.b16.cont [7/8] 0, 128
      %2117 = vxpose.xlu0.c.b16.end [8/8] 0, 128
      %v2118 = vpop.trf.xlu0
      %v2119 = vpop.trf.xlu0
      %v2120 = vpop.trf.xlu0
      %v2121 = vpop.trf.xlu0
      %v2122 = vpop.trf.xlu0
      %v2123 = vpop.trf.xlu0
      %v2124 = vpop.trf.xlu0
      %v2125 = vpop.trf.xlu0
      %v2127 = vsel %vm976, %v2102, 0
      %v2130 = vsel %vm976, %v2103, 0
      %v2133 = vsel %vm976, %v2104, 0
      %v2136 = vsel %vm976, %v2105, 0
      %v2139 = vsel %vm976, %v2106, 0
      %v2142 = vsel %vm976, %v2107, 0
      %v2145 = vsel %vm976, %v2108, 0
      %v2148 = vsel %vm976, %v2109, 0
      %v2151 = vsel %vm976, %v2118, 0
      %v2154 = vsel %vm976, %v2119, 0
      %v2157 = vsel %vm976, %v2120, 0
      %v2160 = vsel %vm976, %v2121, 0
      %v2163 = vsel %vm976, %v2122, 0
      %v2166 = vsel %vm976, %v2123, 0
      %v2169 = vsel %vm976, %v2124, 0
      %v2172 = vsel %vm976, %v2125, 0
      %v2175 = vsel %vm1350, %v2090, 0
      %v2178 = vsel %vm1350, %v2091, 0
      %2180 = vmatprep.subr.bf16.mxu0 0
      %2181 = vmatpush1.bf16.msra.mxu0 0
      %2182 = vmatprep.subr.bf16.mxu0 0
      %2183 = vmatpush1.bf16.msra.mxu0 0
      %2184 = vmatprep.subr.bf16.mxu0 0
      %2185 = vmatpush1.bf16.msra.mxu0 0
      %2186 = vmatprep.subr.bf16.mxu0 0
      %2187 = vmatpush1.bf16.msra.mxu0 0
      %2188 = vmatprep.subr.bf16.mxu0 0
      %2189 = vmatpush1.bf16.msra.mxu0 0
      %2190 = vmatprep.subr.bf16.mxu0 0
      %2191 = vmatpush1.bf16.msra.mxu0 0
      %2192 = vmatprep.subr.bf16.mxu0 0
      %2193 = vmatpush1.bf16.msra.mxu0 0
      %2194 = vmatprep.subr.bf16.mxu0 %v2178
      %2195 = vmatpush1.bf16.msra.mxu0 %v2175
      %2196 = vmatprep.subr.bf16.mxu0 0
      %2197 = vmatpush2.bf16.msra.mxu0 0
      %2198 = vmatprep.subr.bf16.mxu0 0
      %2199 = vmatpush2.bf16.msra.mxu0 0
      %2200 = vmatprep.subr.bf16.mxu0 0
      %2201 = vmatpush2.bf16.msra.mxu0 0
      %2202 = vmatprep.subr.bf16.mxu0 0
      %2203 = vmatpush2.bf16.msra.mxu0 0
      %2204 = vmatprep.subr.bf16.mxu0 0
      %2205 = vmatpush2.bf16.msra.mxu0 0
      %2206 = vmatprep.subr.bf16.mxu0 0
      %2207 = vmatpush2.bf16.msra.mxu0 0
      %2208 = vmatprep.subr.bf16.mxu0 0
      %2209 = vmatpush2.bf16.msra.mxu0 0
      %2210 = vmatprep.subr.bf16.mxu0 0
      %2211 = vmatpush2.bf16.msra.mxu0 0
      %2212 = vmatprep.mubr.bf16.mxu0 0
      %2213 = vmatmul.mubr.bf16.gmra.mxu0 %v2127
      %v2214 = vpop.f32.mrf.mxu0
      %v2215 = vadd.f32 0.0, %v2214
      %v2216 = vpop.f32.mrf.mxu0
      %v2217 = vadd.f32 0.0, %v2216
      %v2218 = vpop.f32.mrf.mxu0
      %v2219 = vadd.f32 0.0, %v2218
      %v2220 = vpop.f32.mrf.mxu0
      %v2221 = vadd.f32 0.0, %v2220
      %2222 = vmatprep.mubr.bf16.mxu0 0
      %2223 = vmatmul.mubr.bf16.gmra.mxu0 %v2130
      %v2224 = vpop.f32.mrf.mxu0
      %v2225 = vadd.f32 0.0, %v2224
      %v2226 = vpop.f32.mrf.mxu0
      %v2227 = vadd.f32 0.0, %v2226
      %v2228 = vpop.f32.mrf.mxu0
      %v2229 = vadd.f32 0.0, %v2228
      %v2230 = vpop.f32.mrf.mxu0
      %v2231 = vadd.f32 0.0, %v2230
      %2232 = vmatprep.mubr.bf16.mxu0 0
      %2233 = vmatmul.mubr.bf16.gmra.mxu0 %v2133
      %v2234 = vpop.f32.mrf.mxu0
      %v2235 = vadd.f32 0.0, %v2234
      %v2236 = vpop.f32.mrf.mxu0
      %v2237 = vadd.f32 0.0, %v2236
      %v2238 = vpop.f32.mrf.mxu0
      %v2239 = vadd.f32 0.0, %v2238
      %v2240 = vpop.f32.mrf.mxu0
      %v2241 = vadd.f32 0.0, %v2240
      %2242 = vmatprep.mubr.bf16.mxu0 0
      %2243 = vmatmul.mubr.bf16.gmra.mxu0 %v2136
      %v2244 = vpop.f32.mrf.mxu0
      %v2245 = vadd.f32 0.0, %v2244
      %v2246 = vpop.f32.mrf.mxu0
      %v2247 = vadd.f32 0.0, %v2246
      %v2248 = vpop.f32.mrf.mxu0
      %v2249 = vadd.f32 0.0, %v2248
      %v2250 = vpop.f32.mrf.mxu0
      %v2251 = vadd.f32 0.0, %v2250
      %2252 = vmatprep.mubr.bf16.mxu0 0
      %2253 = vmatmul.mubr.bf16.gmra.mxu0 %v2139
      %v2254 = vpop.f32.mrf.mxu0
      %v2255 = vadd.f32 0.0, %v2254
      %v2256 = vpop.f32.mrf.mxu0
      %v2257 = vadd.f32 0.0, %v2256
      %v2258 = vpop.f32.mrf.mxu0
      %v2259 = vadd.f32 0.0, %v2258
      %v2260 = vpop.f32.mrf.mxu0
      %v2261 = vadd.f32 0.0, %v2260
      %2262 = vmatprep.mubr.bf16.mxu0 0
      %2263 = vmatmul.mubr.bf16.gmra.mxu0 %v2142
      %v2264 = vpop.f32.mrf.mxu0
      %v2265 = vadd.f32 0.0, %v2264
      %v2266 = vpop.f32.mrf.mxu0
      %v2267 = vadd.f32 0.0, %v2266
      %v2268 = vpop.f32.mrf.mxu0
      %v2269 = vadd.f32 0.0, %v2268
      %v2270 = vpop.f32.mrf.mxu0
      %v2271 = vadd.f32 0.0, %v2270
      %2272 = vmatprep.mubr.bf16.mxu0 0
      %2273 = vmatmul.mubr.bf16.gmra.mxu0 %v2145
      %v2274 = vpop.f32.mrf.mxu0
      %v2275 = vadd.f32 0.0, %v2274
      %v2276 = vpop.f32.mrf.mxu0
      %v2277 = vadd.f32 0.0, %v2276
      %v2278 = vpop.f32.mrf.mxu0
      %v2279 = vadd.f32 0.0, %v2278
      %v2280 = vpop.f32.mrf.mxu0
      %v2281 = vadd.f32 0.0, %v2280
      %2282 = vmatprep.mubr.bf16.mxu0 0
      %2283 = vmatmul.mubr.bf16.gmra.mxu0 %v2148
      %v2284 = vpop.f32.mrf.mxu0
      %v2285 = vadd.f32 0.0, %v2284
      %v2286 = vpop.f32.mrf.mxu0
      %v2287 = vadd.f32 0.0, %v2286
      %v2288 = vpop.f32.mrf.mxu0
      %v2289 = vadd.f32 0.0, %v2288
      %v2290 = vpop.f32.mrf.mxu0
      %v2291 = vadd.f32 0.0, %v2290
      %2292 = vmatprep.mubr.bf16.mxu0 0
      %2293 = vmatmul.mubr.bf16.gmra.mxu0 %v2151
      %v2294 = vpop.f32.mrf.mxu0
      %v2295 = vadd.f32 0.0, %v2294
      %v2296 = vpop.f32.mrf.mxu0
      %v2297 = vadd.f32 0.0, %v2296
      %v2298 = vpop.f32.mrf.mxu0
      %v2299 = vadd.f32 0.0, %v2298
      %v2300 = vpop.f32.mrf.mxu0
      %v2301 = vadd.f32 0.0, %v2300
      %2302 = vmatprep.mubr.bf16.mxu0 0
      %2303 = vmatmul.mubr.bf16.gmra.mxu0 %v2154
      %v2304 = vpop.f32.mrf.mxu0
      %v2305 = vadd.f32 0.0, %v2304
      %v2306 = vpop.f32.mrf.mxu0
      %v2307 = vadd.f32 0.0, %v2306
      %v2308 = vpop.f32.mrf.mxu0
      %v2309 = vadd.f32 0.0, %v2308
      %v2310 = vpop.f32.mrf.mxu0
      %v2311 = vadd.f32 0.0, %v2310
      %2312 = vmatprep.mubr.bf16.mxu0 0
      %2313 = vmatmul.mubr.bf16.gmra.mxu0 %v2157
      %v2314 = vpop.f32.mrf.mxu0
      %v2315 = vadd.f32 0.0, %v2314
      %v2316 = vpop.f32.mrf.mxu0
      %v2317 = vadd.f32 0.0, %v2316
      %v2318 = vpop.f32.mrf.mxu0
      %v2319 = vadd.f32 0.0, %v2318
      %v2320 = vpop.f32.mrf.mxu0
      %v2321 = vadd.f32 0.0, %v2320
      %2322 = vmatprep.mubr.bf16.mxu0 0
      %2323 = vmatmul.mubr.bf16.gmra.mxu0 %v2160
      %v2324 = vpop.f32.mrf.mxu0
      %v2325 = vadd.f32 0.0, %v2324
      %v2326 = vpop.f32.mrf.mxu0
      %v2327 = vadd.f32 0.0, %v2326
      %v2328 = vpop.f32.mrf.mxu0
      %v2329 = vadd.f32 0.0, %v2328
      %v2330 = vpop.f32.mrf.mxu0
      %v2331 = vadd.f32 0.0, %v2330
      %2332 = vmatprep.mubr.bf16.mxu0 0
      %2333 = vmatmul.mubr.bf16.gmra.mxu0 %v2163
      %v2334 = vpop.f32.mrf.mxu0
      %v2335 = vadd.f32 0.0, %v2334
      %v2336 = vpop.f32.mrf.mxu0
      %v2337 = vadd.f32 0.0, %v2336
      %v2338 = vpop.f32.mrf.mxu0
      %v2339 = vadd.f32 0.0, %v2338
      %v2340 = vpop.f32.mrf.mxu0
      %v2341 = vadd.f32 0.0, %v2340
      %2342 = vmatprep.mubr.bf16.mxu0 0
      %2343 = vmatmul.mubr.bf16.gmra.mxu0 %v2166
      %v2344 = vpop.f32.mrf.mxu0
      %v2345 = vadd.f32 0.0, %v2344
      %v2346 = vpop.f32.mrf.mxu0
      %v2347 = vadd.f32 0.0, %v2346
      %v2348 = vpop.f32.mrf.mxu0
      %v2349 = vadd.f32 0.0, %v2348
      %v2350 = vpop.f32.mrf.mxu0
      %v2351 = vadd.f32 0.0, %v2350
      %2352 = vmatprep.mubr.bf16.mxu0 0
      %2353 = vmatmul.mubr.bf16.gmra.mxu0 %v2169
      %v2354 = vpop.f32.mrf.mxu0
      %v2355 = vadd.f32 0.0, %v2354
      %v2356 = vpop.f32.mrf.mxu0
      %v2357 = vadd.f32 0.0, %v2356
      %v2358 = vpop.f32.mrf.mxu0
      %v2359 = vadd.f32 0.0, %v2358
      %v2360 = vpop.f32.mrf.mxu0
      %v2361 = vadd.f32 0.0, %v2360
      %2362 = vmatprep.mubr.bf16.mxu0 0
      %2363 = vmatmul.mubr.bf16.gmra.mxu0 %v2172
      %v2364 = vpop.f32.mrf.mxu0
      %v2365 = vadd.f32 0.0, %v2364
      %v2366 = vpop.f32.mrf.mxu0
      %v2367 = vadd.f32 0.0, %v2366
      %v2368 = vpop.f32.mrf.mxu0
      %v2369 = vadd.f32 0.0, %v2368
      %v2370 = vpop.f32.mrf.mxu0
      %v2371 = vadd.f32 0.0, %v2370
      %2372 = vdwg.mxu0
      %v2373 = vmax.f32 %v2215, %v2217
      %2374 = vmax.xlane.f32.xlu0 %v2373
      %v2375 = vpop.xlane.xlu0 %2374
      %v2376 = vmax.f32 %v2219, %v2221
      %2377 = vmax.xlane.f32.xlu0 %v2376
      %v2378 = vpop.xlane.xlu0 %2377
      %v2379 = vmax.f32 %v2225, %v2227
      %2380 = vmax.xlane.f32.xlu0 %v2379
      %v2381 = vpop.xlane.xlu0 %2380
      %v2382 = vmax.f32 %v2229, %v2231
      %2383 = vmax.xlane.f32.xlu0 %v2382
      %v2384 = vpop.xlane.xlu0 %2383
      %v2385 = vmax.f32 %v2235, %v2237
      %2386 = vmax.xlane.f32.xlu0 %v2385
      %v2387 = vpop.xlane.xlu0 %2386
      %v2388 = vmax.f32 %v2239, %v2241
      %2389 = vmax.xlane.f32.xlu0 %v2388
      %v2390 = vpop.xlane.xlu0 %2389
      %v2391 = vmax.f32 %v2245, %v2247
      %2392 = vmax.xlane.f32.xlu0 %v2391
      %v2393 = vpop.xlane.xlu0 %2392
      %v2394 = vmax.f32 %v2249, %v2251
      %2395 = vmax.xlane.f32.xlu0 %v2394
      %v2396 = vpop.xlane.xlu0 %2395
      %v2397 = vmax.f32 %v2255, %v2257
      %2398 = vmax.xlane.f32.xlu0 %v2397
      %v2399 = vpop.xlane.xlu0 %2398
      %v2400 = vmax.f32 %v2259, %v2261
      %2401 = vmax.xlane.f32.xlu0 %v2400
      %v2402 = vpop.xlane.xlu0 %2401
      %v2403 = vmax.f32 %v2265, %v2267
      %2404 = vmax.xlane.f32.xlu0 %v2403
      %v2405 = vpop.xlane.xlu0 %2404
      %v2406 = vmax.f32 %v2269, %v2271
      %2407 = vmax.xlane.f32.xlu0 %v2406
      %v2408 = vpop.xlane.xlu0 %2407
      %v2409 = vmax.f32 %v2275, %v2277
      %2410 = vmax.xlane.f32.xlu0 %v2409
      %v2411 = vpop.xlane.xlu0 %2410
      %v2412 = vmax.f32 %v2279, %v2281
      %2413 = vmax.xlane.f32.xlu0 %v2412
      %v2414 = vpop.xlane.xlu0 %2413
      %v2415 = vmax.f32 %v2285, %v2287
      %2416 = vmax.xlane.f32.xlu0 %v2415
      %v2417 = vpop.xlane.xlu0 %2416
      %v2418 = vmax.f32 %v2289, %v2291
      %2419 = vmax.xlane.f32.xlu0 %v2418
      %v2420 = vpop.xlane.xlu0 %2419
      %v2421 = vmax.f32 %v2295, %v2297
      %2422 = vmax.xlane.f32.xlu0 %v2421
      %v2423 = vpop.xlane.xlu0 %2422
      %v2424 = vmax.f32 %v2299, %v2301
      %2425 = vmax.xlane.f32.xlu0 %v2424
      %v2426 = vpop.xlane.xlu0 %2425
      %v2427 = vmax.f32 %v2305, %v2307
      %2428 = vmax.xlane.f32.xlu0 %v2427
      %v2429 = vpop.xlane.xlu0 %2428
      %v2430 = vmax.f32 %v2309, %v2311
      %2431 = vmax.xlane.f32.xlu0 %v2430
      %v2432 = vpop.xlane.xlu0 %2431
      %v2433 = vmax.f32 %v2315, %v2317
      %2434 = vmax.xlane.f32.xlu0 %v2433
      %v2435 = vpop.xlane.xlu0 %2434
      %v2436 = vmax.f32 %v2319, %v2321
      %2437 = vmax.xlane.f32.xlu0 %v2436
      %v2438 = vpop.xlane.xlu0 %2437
      %v2439 = vmax.f32 %v2325, %v2327
      %2440 = vmax.xlane.f32.xlu0 %v2439
      %v2441 = vpop.xlane.xlu0 %2440
      %v2442 = vmax.f32 %v2329, %v2331
      %2443 = vmax.xlane.f32.xlu0 %v2442
      %v2444 = vpop.xlane.xlu0 %2443
      %v2445 = vmax.f32 %v2335, %v2337
      %2446 = vmax.xlane.f32.xlu0 %v2445
      %v2447 = vpop.xlane.xlu0 %2446
      %v2448 = vmax.f32 %v2339, %v2341
      %2449 = vmax.xlane.f32.xlu0 %v2448
      %v2450 = vpop.xlane.xlu0 %2449
      %v2451 = vmax.f32 %v2345, %v2347
      %2452 = vmax.xlane.f32.xlu0 %v2451
      %v2453 = vpop.xlane.xlu0 %2452
      %v2454 = vmax.f32 %v2349, %v2351
      %2455 = vmax.xlane.f32.xlu0 %v2454
      %v2456 = vpop.xlane.xlu0 %2455
      %v2457 = vmax.f32 %v2355, %v2357
      %2458 = vmax.xlane.f32.xlu0 %v2457
      %v2459 = vpop.xlane.xlu0 %2458
      %v2460 = vmax.f32 %v2359, %v2361
      %2461 = vmax.xlane.f32.xlu0 %v2460
      %v2462 = vpop.xlane.xlu0 %2461
      %v2463 = vmax.f32 %v2365, %v2367
      %2464 = vmax.xlane.f32.xlu0 %v2463
      %v2465 = vpop.xlane.xlu0 %2464
      %v2466 = vmax.f32 %v2369, %v2371
      %2467 = vmax.xlane.f32.xlu0 %v2466
      %v2468 = vpop.xlane.xlu0 %2467
      %v2469 = vsub.f32 %v2215, %v2375
      %v2470 = vsub.f32 %v2217, %v2375
      %v2471 = vsub.f32 %v2219, %v2378
      %v2472 = vsub.f32 %v2221, %v2378
      %v2473 = vsub.f32 %v2225, %v2381
      %v2474 = vsub.f32 %v2227, %v2381
      %v2475 = vsub.f32 %v2229, %v2384
      %v2476 = vsub.f32 %v2231, %v2384
      %v2477 = vsub.f32 %v2235, %v2387
      %v2478 = vsub.f32 %v2237, %v2387
      %v2479 = vsub.f32 %v2239, %v2390
      %v2480 = vsub.f32 %v2241, %v2390
      %v2481 = vsub.f32 %v2245, %v2393
      %v2482 = vsub.f32 %v2247, %v2393
      %v2483 = vsub.f32 %v2249, %v2396
      %v2484 = vsub.f32 %v2251, %v2396
      %v2485 = vsub.f32 %v2255, %v2399
      %v2486 = vsub.f32 %v2257, %v2399
      %v2487 = vsub.f32 %v2259, %v2402
      %v2488 = vsub.f32 %v2261, %v2402
      %v2489 = vsub.f32 %v2265, %v2405
      %v2490 = vsub.f32 %v2267, %v2405
      %v2491 = vsub.f32 %v2269, %v2408
      %v2492 = vsub.f32 %v2271, %v2408
      %v2493 = vsub.f32 %v2275, %v2411
      %v2494 = vsub.f32 %v2277, %v2411
      %v2495 = vsub.f32 %v2279, %v2414
      %v2496 = vsub.f32 %v2281, %v2414
      %v2497 = vsub.f32 %v2285, %v2417
      %v2498 = vsub.f32 %v2287, %v2417
      %v2499 = vsub.f32 %v2289, %v2420
      %v2500 = vsub.f32 %v2291, %v2420
      %v2501 = vsub.f32 %v2295, %v2423
      %v2502 = vsub.f32 %v2297, %v2423
      %v2503 = vsub.f32 %v2299, %v2426
      %v2504 = vsub.f32 %v2301, %v2426
      %v2505 = vsub.f32 %v2305, %v2429
      %v2506 = vsub.f32 %v2307, %v2429
      %v2507 = vsub.f32 %v2309, %v2432
      %v2508 = vsub.f32 %v2311, %v2432
      %v2509 = vsub.f32 %v2315, %v2435
      %v2510 = vsub.f32 %v2317, %v2435
      %v2511 = vsub.f32 %v2319, %v2438
      %v2512 = vsub.f32 %v2321, %v2438
      %v2513 = vsub.f32 %v2325, %v2441
      %v2514 = vsub.f32 %v2327, %v2441
      %v2515 = vsub.f32 %v2329, %v2444
      %v2516 = vsub.f32 %v2331, %v2444
      %v2517 = vsub.f32 %v2335, %v2447
      %v2518 = vsub.f32 %v2337, %v2447
      %v2519 = vsub.f32 %v2339, %v2450
      %v2520 = vsub.f32 %v2341, %v2450
      %v2521 = vsub.f32 %v2345, %v2453
      %v2522 = vsub.f32 %v2347, %v2453
      %v2523 = vsub.f32 %v2349, %v2456
      %v2524 = vsub.f32 %v2351, %v2456
      %v2525 = vsub.f32 %v2355, %v2459
      %v2526 = vsub.f32 %v2357, %v2459
      %v2527 = vsub.f32 %v2359, %v2462
      %v2528 = vsub.f32 %v2361, %v2462
      %v2529 = vsub.f32 %v2365, %v2465
      %v2530 = vsub.f32 %v2367, %v2465
      %v2531 = vsub.f32 %v2369, %v2468
      %v2532 = vsub.f32 %v2371, %v2468
      %v2533 = vmul.f32 %v2469, 1.442695
      %v2534 = vpow.pop %v2533
      %v2535 = vmul.f32 %v2470, 1.442695
      %v2536 = vpow.pop %v2535
      %v2537 = vmul.f32 %v2471, 1.442695
      %v2538 = vpow.pop %v2537
      %v2539 = vmul.f32 %v2472, 1.442695
      %v2540 = vpow.pop %v2539
      %v2541 = vmul.f32 %v2473, 1.442695
      %v2542 = vpow.pop %v2541
      %v2543 = vmul.f32 %v2474, 1.442695
      %v2544 = vpow.pop %v2543
      %v2545 = vmul.f32 %v2475, 1.442695
      %v2546 = vpow.pop %v2545
      %v2547 = vmul.f32 %v2476, 1.442695
      %v2548 = vpow.pop %v2547
      %v2549 = vmul.f32 %v2477, 1.442695
      %v2550 = vpow.pop %v2549
      %v2551 = vmul.f32 %v2478, 1.442695
      %v2552 = vpow.pop %v2551
      %v2553 = vmul.f32 %v2479, 1.442695
      %v2554 = vpow.pop %v2553
      %v2555 = vmul.f32 %v2480, 1.442695
      %v2556 = vpow.pop %v2555
      %v2557 = vmul.f32 %v2481, 1.442695
      %v2558 = vpow.pop %v2557
      %v2559 = vmul.f32 %v2482, 1.442695
      %v2560 = vpow.pop %v2559
      %v2561 = vmul.f32 %v2483, 1.442695
      %v2562 = vpow.pop %v2561
      %v2563 = vmul.f32 %v2484, 1.442695
      %v2564 = vpow.pop %v2563
      %v2565 = vmul.f32 %v2485, 1.442695
      %v2566 = vpow.pop %v2565
      %v2567 = vmul.f32 %v2486, 1.442695
      %v2568 = vpow.pop %v2567
      %v2569 = vmul.f32 %v2487, 1.442695
      %v2570 = vpow.pop %v2569
      %v2571 = vmul.f32 %v2488, 1.442695
      %v2572 = vpow.pop %v2571
      %v2573 = vmul.f32 %v2489, 1.442695
      %v2574 = vpow.pop %v2573
      %v2575 = vmul.f32 %v2490, 1.442695
      %v2576 = vpow.pop %v2575
      %v2577 = vmul.f32 %v2491, 1.442695
      %v2578 = vpow.pop %v2577
      %v2579 = vmul.f32 %v2492, 1.442695
      %v2580 = vpow.pop %v2579
      %v2581 = vmul.f32 %v2493, 1.442695
      %v2582 = vpow.pop %v2581
      %v2583 = vmul.f32 %v2494, 1.442695
      %v2584 = vpow.pop %v2583
      %v2585 = vmul.f32 %v2495, 1.442695
      %v2586 = vpow.pop %v2585
      %v2587 = vmul.f32 %v2496, 1.442695
      %v2588 = vpow.pop %v2587
      %v2589 = vmul.f32 %v2497, 1.442695
      %v2590 = vpow.pop %v2589
      %v2591 = vmul.f32 %v2498, 1.442695
      %v2592 = vpow.pop %v2591
      %v2593 = vmul.f32 %v2499, 1.442695
      %v2594 = vpow.pop %v2593
      %v2595 = vmul.f32 %v2500, 1.442695
      %v2596 = vpow.pop %v2595
      %v2597 = vmul.f32 %v2501, 1.442695
      %v2598 = vpow.pop %v2597
      %v2599 = vmul.f32 %v2502, 1.442695
      %v2600 = vpow.pop %v2599
      %v2601 = vmul.f32 %v2503, 1.442695
      %v2602 = vpow.pop %v2601
      %v2603 = vmul.f32 %v2504, 1.442695
      %v2604 = vpow.pop %v2603
      %v2605 = vmul.f32 %v2505, 1.442695
      %v2606 = vpow.pop %v2605
      %v2607 = vmul.f32 %v2506, 1.442695
      %v2608 = vpow.pop %v2607
      %v2609 = vmul.f32 %v2507, 1.442695
      %v2610 = vpow.pop %v2609
      %v2611 = vmul.f32 %v2508, 1.442695
      %v2612 = vpow.pop %v2611
      %v2613 = vmul.f32 %v2509, 1.442695
      %v2614 = vpow.pop %v2613
      %v2615 = vmul.f32 %v2510, 1.442695
      %v2616 = vpow.pop %v2615
      %v2617 = vmul.f32 %v2511, 1.442695
      %v2618 = vpow.pop %v2617
      %v2619 = vmul.f32 %v2512, 1.442695
      %v2620 = vpow.pop %v2619
      %v2621 = vmul.f32 %v2513, 1.442695
      %v2622 = vpow.pop %v2621
      %v2623 = vmul.f32 %v2514, 1.442695
      %v2624 = vpow.pop %v2623
      %v2625 = vmul.f32 %v2515, 1.442695
      %v2626 = vpow.pop %v2625
      %v2627 = vmul.f32 %v2516, 1.442695
      %v2628 = vpow.pop %v2627
      %v2629 = vmul.f32 %v2517, 1.442695
      %v2630 = vpow.pop %v2629
      %v2631 = vmul.f32 %v2518, 1.442695
      %v2632 = vpow.pop %v2631
      %v2633 = vmul.f32 %v2519, 1.442695
      %v2634 = vpow.pop %v2633
      %v2635 = vmul.f32 %v2520, 1.442695
      %v2636 = vpow.pop %v2635
      %v2637 = vmul.f32 %v2521, 1.442695
      %v2638 = vpow.pop %v2637
      %v2639 = vmul.f32 %v2522, 1.442695
      %v2640 = vpow.pop %v2639
      %v2641 = vmul.f32 %v2523, 1.442695
      %v2642 = vpow.pop %v2641
      %v2643 = vmul.f32 %v2524, 1.442695
      %v2644 = vpow.pop %v2643
      %v2645 = vmul.f32 %v2525, 1.442695
      %v2646 = vpow.pop %v2645
      %v2647 = vmul.f32 %v2526, 1.442695
      %v2648 = vpow.pop %v2647
      %v2649 = vmul.f32 %v2527, 1.442695
      %v2650 = vpow.pop %v2649
      %v2651 = vmul.f32 %v2528, 1.442695
      %v2652 = vpow.pop %v2651
      %v2653 = vmul.f32 %v2529, 1.442695
      %v2654 = vpow.pop %v2653
      %v2655 = vmul.f32 %v2530, 1.442695
      %v2656 = vpow.pop %v2655
      %v2657 = vmul.f32 %v2531, 1.442695
      %v2658 = vpow.pop %v2657
      %v2659 = vmul.f32 %v2532, 1.442695
      %v2660 = vpow.pop %v2659
      %v2661 = vadd.f32 %v2534, %v2536
      %2662 = vadd.xlane.f32.xlu0 %v2661
      %v2663 = vpop.xlane.xlu0 %2662
      %v2664 = vadd.f32 %v2538, %v2540
      %2665 = vadd.xlane.f32.xlu0 %v2664
      %v2666 = vpop.xlane.xlu0 %2665
      %v2667 = vadd.f32 %v2542, %v2544
      %2668 = vadd.xlane.f32.xlu0 %v2667
      %v2669 = vpop.xlane.xlu0 %2668
      %v2670 = vadd.f32 %v2546, %v2548
      %2671 = vadd.xlane.f32.xlu0 %v2670
      %v2672 = vpop.xlane.xlu0 %2671
      %v2673 = vadd.f32 %v2550, %v2552
      %2674 = vadd.xlane.f32.xlu0 %v2673
      %v2675 = vpop.xlane.xlu0 %2674
      %v2676 = vadd.f32 %v2554, %v2556
      %2677 = vadd.xlane.f32.xlu0 %v2676
      %v2678 = vpop.xlane.xlu0 %2677
      %v2679 = vadd.f32 %v2558, %v2560
      %2680 = vadd.xlane.f32.xlu0 %v2679
      %v2681 = vpop.xlane.xlu0 %2680
      %v2682 = vadd.f32 %v2562, %v2564
      %2683 = vadd.xlane.f32.xlu0 %v2682
      %v2684 = vpop.xlane.xlu0 %2683
      %v2685 = vadd.f32 %v2566, %v2568
      %2686 = vadd.xlane.f32.xlu0 %v2685
      %v2687 = vpop.xlane.xlu0 %2686
      %v2688 = vadd.f32 %v2570, %v2572
      %2689 = vadd.xlane.f32.xlu0 %v2688
      %v2690 = vpop.xlane.xlu0 %2689
      %v2691 = vadd.f32 %v2574, %v2576
      %2692 = vadd.xlane.f32.xlu0 %v2691
      %v2693 = vpop.xlane.xlu0 %2692
      %v2694 = vadd.f32 %v2578, %v2580
      %2695 = vadd.xlane.f32.xlu0 %v2694
      %v2696 = vpop.xlane.xlu0 %2695
      %v2697 = vadd.f32 %v2582, %v2584
      %2698 = vadd.xlane.f32.xlu0 %v2697
      %v2699 = vpop.xlane.xlu0 %2698
      %v2700 = vadd.f32 %v2586, %v2588
      %2701 = vadd.xlane.f32.xlu0 %v2700
      %v2702 = vpop.xlane.xlu0 %2701
      %v2703 = vadd.f32 %v2590, %v2592
      %2704 = vadd.xlane.f32.xlu0 %v2703
      %v2705 = vpop.xlane.xlu0 %2704
      %v2706 = vadd.f32 %v2594, %v2596
      %2707 = vadd.xlane.f32.xlu0 %v2706
      %v2708 = vpop.xlane.xlu0 %2707
      %v2709 = vadd.f32 %v2598, %v2600
      %2710 = vadd.xlane.f32.xlu0 %v2709
      %v2711 = vpop.xlane.xlu0 %2710
      %v2712 = vadd.f32 %v2602, %v2604
      %2713 = vadd.xlane.f32.xlu0 %v2712
      %v2714 = vpop.xlane.xlu0 %2713
      %v2715 = vadd.f32 %v2606, %v2608
      %2716 = vadd.xlane.f32.xlu0 %v2715
      %v2717 = vpop.xlane.xlu0 %2716
      %v2718 = vadd.f32 %v2610, %v2612
      %2719 = vadd.xlane.f32.xlu0 %v2718
      %v2720 = vpop.xlane.xlu0 %2719
      %v2721 = vadd.f32 %v2614, %v2616
      %2722 = vadd.xlane.f32.xlu0 %v2721
      %v2723 = vpop.xlane.xlu0 %2722
      %v2724 = vadd.f32 %v2618, %v2620
      %2725 = vadd.xlane.f32.xlu0 %v2724
      %v2726 = vpop.xlane.xlu0 %2725
      %v2727 = vadd.f32 %v2622, %v2624
      %2728 = vadd.xlane.f32.xlu0 %v2727
      %v2729 = vpop.xlane.xlu0 %2728
      %v2730 = vadd.f32 %v2626, %v2628
      %2731 = vadd.xlane.f32.xlu0 %v2730
      %v2732 = vpop.xlane.xlu0 %2731
      %v2733 = vadd.f32 %v2630, %v2632
      %2734 = vadd.xlane.f32.xlu0 %v2733
      %v2735 = vpop.xlane.xlu0 %2734
      %v2736 = vadd.f32 %v2634, %v2636
      %2737 = vadd.xlane.f32.xlu0 %v2736
      %v2738 = vpop.xlane.xlu0 %2737
      %v2739 = vadd.f32 %v2638, %v2640
      %2740 = vadd.xlane.f32.xlu0 %v2739
      %v2741 = vpop.xlane.xlu0 %2740
      %v2742 = vadd.f32 %v2642, %v2644
      %2743 = vadd.xlane.f32.xlu0 %v2742
      %v2744 = vpop.xlane.xlu0 %2743
      %v2745 = vadd.f32 %v2646, %v2648
      %2746 = vadd.xlane.f32.xlu0 %v2745
      %v2747 = vpop.xlane.xlu0 %2746
      %v2748 = vadd.f32 %v2650, %v2652
      %2749 = vadd.xlane.f32.xlu0 %v2748
      %v2750 = vpop.xlane.xlu0 %2749
      %v2751 = vadd.f32 %v2654, %v2656
      %2752 = vadd.xlane.f32.xlu0 %v2751
      %v2753 = vpop.xlane.xlu0 %2752
      %v2754 = vadd.f32 %v2658, %v2660
      %2755 = vadd.xlane.f32.xlu0 %v2754
      %v2756 = vpop.xlane.xlu0 %2755
      %v2757 = vrcp.pop %v2663
      %v2758 = vrcp.pop %v2666
      %v2759 = vrcp.pop %v2669
      %v2760 = vrcp.pop %v2672
      %v2761 = vrcp.pop %v2675
      %v2762 = vrcp.pop %v2678
      %v2763 = vrcp.pop %v2681
      %v2764 = vrcp.pop %v2684
      %v2765 = vrcp.pop %v2687
      %v2766 = vrcp.pop %v2690
      %v2767 = vrcp.pop %v2693
      %v2768 = vrcp.pop %v2696
      %v2769 = vrcp.pop %v2699
      %v2770 = vrcp.pop %v2702
      %v2771 = vrcp.pop %v2705
      %v2772 = vrcp.pop %v2708
      %v2773 = vrcp.pop %v2711
      %v2774 = vrcp.pop %v2714
      %v2775 = vrcp.pop %v2717
      %v2776 = vrcp.pop %v2720
      %v2777 = vrcp.pop %v2723
      %v2778 = vrcp.pop %v2726
      %v2779 = vrcp.pop %v2729
      %v2780 = vrcp.pop %v2732
      %v2781 = vrcp.pop %v2735
      %v2782 = vrcp.pop %v2738
      %v2783 = vrcp.pop %v2741
      %v2784 = vrcp.pop %v2744
      %v2785 = vrcp.pop %v2747
      %v2786 = vrcp.pop %v2750
      %v2787 = vrcp.pop %v2753
      %v2788 = vrcp.pop %v2756
      %v2789 = vmul.f32 %v2534, %v2757
      %v2790 = vmul.f32 %v2536, %v2757
      %v2791 = vmul.f32 %v2538, %v2758
      %v2792 = vmul.f32 %v2540, %v2758
      %v2793 = vmul.f32 %v2542, %v2759
      %v2794 = vmul.f32 %v2544, %v2759
      %v2795 = vmul.f32 %v2546, %v2760
      %v2796 = vmul.f32 %v2548, %v2760
      %v2797 = vmul.f32 %v2550, %v2761
      %v2798 = vmul.f32 %v2552, %v2761
      %v2799 = vmul.f32 %v2554, %v2762
      %v2800 = vmul.f32 %v2556, %v2762
      %v2801 = vmul.f32 %v2558, %v2763
      %v2802 = vmul.f32 %v2560, %v2763
      %v2803 = vmul.f32 %v2562, %v2764
      %v2804 = vmul.f32 %v2564, %v2764
      %v2805 = vmul.f32 %v2566, %v2765
      %v2806 = vmul.f32 %v2568, %v2765
      %v2807 = vmul.f32 %v2570, %v2766
      %v2808 = vmul.f32 %v2572, %v2766
      %v2809 = vmul.f32 %v2574, %v2767
      %v2810 = vmul.f32 %v2576, %v2767
      %v2811 = vmul.f32 %v2578, %v2768
      %v2812 = vmul.f32 %v2580, %v2768
      %v2813 = vmul.f32 %v2582, %v2769
      %v2814 = vmul.f32 %v2584, %v2769
      %v2815 = vmul.f32 %v2586, %v2770
      %v2816 = vmul.f32 %v2588, %v2770
      %v2817 = vmul.f32 %v2590, %v2771
      %v2818 = vmul.f32 %v2592, %v2771
      %v2819 = vmul.f32 %v2594, %v2772
      %v2820 = vmul.f32 %v2596, %v2772
      %v2821 = vmul.f32 %v2598, %v2773
      %v2822 = vmul.f32 %v2600, %v2773
      %v2823 = vmul.f32 %v2602, %v2774
      %v2824 = vmul.f32 %v2604, %v2774
      %v2825 = vmul.f32 %v2606, %v2775
      %v2826 = vmul.f32 %v2608, %v2775
      %v2827 = vmul.f32 %v2610, %v2776
      %v2828 = vmul.f32 %v2612, %v2776
      %v2829 = vmul.f32 %v2614, %v2777
      %v2830 = vmul.f32 %v2616, %v2777
      %v2831 = vmul.f32 %v2618, %v2778
      %v2832 = vmul.f32 %v2620, %v2778
      %v2833 = vmul.f32 %v2622, %v2779
      %v2834 = vmul.f32 %v2624, %v2779
      %v2835 = vmul.f32 %v2626, %v2780
      %v2836 = vmul.f32 %v2628, %v2780
      %v2837 = vmul.f32 %v2630, %v2781
      %v2838 = vmul.f32 %v2632, %v2781
      %v2839 = vmul.f32 %v2634, %v2782
      %v2840 = vmul.f32 %v2636, %v2782
      %v2841 = vmul.f32 %v2638, %v2783
      %v2842 = vmul.f32 %v2640, %v2783
      %v2843 = vmul.f32 %v2642, %v2784
      %v2844 = vmul.f32 %v2644, %v2784
      %v2845 = vmul.f32 %v2646, %v2785
      %v2846 = vmul.f32 %v2648, %v2785
      %v2847 = vmul.f32 %v2650, %v2786
      %v2848 = vmul.f32 %v2652, %v2786
      %v2849 = vmul.f32 %v2654, %v2787
      %v2850 = vmul.f32 %v2656, %v2787
      %v2851 = vmul.f32 %v2658, %v2788
      %v2852 = vmul.f32 %v2660, %v2788
      %v2853 = vpack.c.bf16 %v2791, %v2789
      %v2854 = vpack.c.bf16 %v2792, %v2790
      %v2855 = vpack.c.bf16 %v2795, %v2793
      %v2856 = vpack.c.bf16 %v2796, %v2794
      %v2857 = vpack.c.bf16 %v2799, %v2797
      %v2858 = vpack.c.bf16 %v2800, %v2798
      %v2859 = vpack.c.bf16 %v2803, %v2801
      %v2860 = vpack.c.bf16 %v2804, %v2802
      %v2861 = vpack.c.bf16 %v2807, %v2805
      %v2862 = vpack.c.bf16 %v2808, %v2806
      %v2863 = vpack.c.bf16 %v2811, %v2809
      %v2864 = vpack.c.bf16 %v2812, %v2810
      %v2865 = vpack.c.bf16 %v2815, %v2813
      %v2866 = vpack.c.bf16 %v2816, %v2814
      %v2867 = vpack.c.bf16 %v2819, %v2817
      %v2868 = vpack.c.bf16 %v2820, %v2818
      %v2869 = vpack.c.bf16 %v2823, %v2821
      %v2870 = vpack.c.bf16 %v2824, %v2822
      %v2871 = vpack.c.bf16 %v2827, %v2825
      %v2872 = vpack.c.bf16 %v2828, %v2826
      %v2873 = vpack.c.bf16 %v2831, %v2829
      %v2874 = vpack.c.bf16 %v2832, %v2830
      %v2875 = vpack.c.bf16 %v2835, %v2833
      %v2876 = vpack.c.bf16 %v2836, %v2834
      %v2877 = vpack.c.bf16 %v2839, %v2837
      %v2878 = vpack.c.bf16 %v2840, %v2838
      %v2879 = vpack.c.bf16 %v2843, %v2841
      %v2880 = vpack.c.bf16 %v2844, %v2842
      %v2881 = vpack.c.bf16 %v2847, %v2845
      %v2882 = vpack.c.bf16 %v2848, %v2846
      %v2883 = vpack.c.bf16 %v2851, %v2849
      %v2884 = vpack.c.bf16 %v2852, %v2850
      %2885 = vmatprep.subr.bf16.mxu0 %v2868
      %2886 = vmatpush1.bf16.xpose.msra.mxu0 %v2867
      %2887 = vmatprep.subr.bf16.mxu0 %v2866
      %2888 = vmatpush1.bf16.xpose.msra.mxu0 %v2865
      %2889 = vmatprep.subr.bf16.mxu0 %v2864
      %2890 = vmatpush1.bf16.xpose.msra.mxu0 %v2863
      %2891 = vmatprep.subr.bf16.mxu0 %v2862
      %2892 = vmatpush1.bf16.xpose.msra.mxu0 %v2861
      %2893 = vmatprep.subr.bf16.mxu0 %v2860
      %2894 = vmatpush1.bf16.xpose.msra.mxu0 %v2859
      %2895 = vmatprep.subr.bf16.mxu0 %v2858
      %2896 = vmatpush1.bf16.xpose.msra.mxu0 %v2857
      %2897 = vmatprep.subr.bf16.mxu0 %v2856
      %2898 = vmatpush1.bf16.xpose.msra.mxu0 %v2855
      %2899 = vmatprep.subr.bf16.mxu0 %v2854
      %2900 = vmatpush1.bf16.xpose.msra.mxu0 %v2853
      %2901 = vmatprep.subr.bf16.mxu0 %v2884
      %2902 = vmatpush2.bf16.xpose.msra.mxu0 %v2883
      %2903 = vmatprep.subr.bf16.mxu0 %v2882
      %2904 = vmatpush2.bf16.xpose.msra.mxu0 %v2881
      %2905 = vmatprep.subr.bf16.mxu0 %v2880
      %2906 = vmatpush2.bf16.xpose.msra.mxu0 %v2879
      %2907 = vmatprep.subr.bf16.mxu0 %v2878
      %2908 = vmatpush2.bf16.xpose.msra.mxu0 %v2877
      %2909 = vmatprep.subr.bf16.mxu0 %v2876
      %2910 = vmatpush2.bf16.xpose.msra.mxu0 %v2875
      %2911 = vmatprep.subr.bf16.mxu0 %v2874
      %2912 = vmatpush2.bf16.xpose.msra.mxu0 %v2873
      %2913 = vmatprep.subr.bf16.mxu0 %v2872
      %2914 = vmatpush2.bf16.xpose.msra.mxu0 %v2871
      %2915 = vmatprep.subr.bf16.mxu0 %v2870
      %2916 = vmatpush2.bf16.xpose.msra.mxu0 %v2869
      %2917 = vmatprep.mubr.bf16.mxu0 %v2093
      %2918 = vmatmul.mubr.bf16.gmra.mxu0 %v2092
      %v2919 = vpop.f32.mrf.mxu0
      %v2920 = vadd.f32 0.0, %v2919
      %v2921 = vpop.f32.mrf.mxu0
      %v2922 = vadd.f32 0.0, %v2921
      %v2923 = vpop.f32.mrf.mxu0
      %v2924 = vpop.f32.mrf.mxu0
      %2925 = vdwg.mxu0
      %v2926 = vld [vmem:[%s57] sm:$0xf]
      %v2927 = vpack.c.bf16 %v2920, %v2920
      %v2928 = vpack.c.bf16 %v2922, %v2922
      %v2930 = vsel %vm976, %v2926, 0
      %v2933 = vsel %vm1350, %v2927, 0
      %v2936 = vsel %vm1350, %v2928, 0
      %2938 = vmatprep.subr.bf16.mxu0 0
      %2939 = vmatpush1.bf16.msra.mxu0 0
      %2940 = vmatprep.subr.bf16.mxu0 0
      %2941 = vmatpush1.bf16.msra.mxu0 0
      %2942 = vmatprep.subr.bf16.mxu0 0
      %2943 = vmatpush1.bf16.msra.mxu0 0
      %2944 = vmatprep.subr.bf16.mxu0 0
      %2945 = vmatpush1.bf16.msra.mxu0 0
      %2946 = vmatprep.subr.bf16.mxu0 0
      %2947 = vmatpush1.bf16.msra.mxu0 0
      %2948 = vmatprep.subr.bf16.mxu0 0
      %2949 = vmatpush1.bf16.msra.mxu0 0
      %2950 = vmatprep.subr.bf16.mxu0 0
      %2951 = vmatpush1.bf16.msra.mxu0 0
      %2952 = vmatprep.subr.bf16.mxu0 %v2936
      %2953 = vmatpush1.bf16.msra.mxu0 %v2933
      %2954 = vmatprep.subr.bf16.mxu0 0
      %2955 = vmatpush2.bf16.msra.mxu0 0
      %2956 = vmatprep.subr.bf16.mxu0 0
      %2957 = vmatpush2.bf16.msra.mxu0 0
      %2958 = vmatprep.subr.bf16.mxu0 0
      %2959 = vmatpush2.bf16.msra.mxu0 0
      %2960 = vmatprep.subr.bf16.mxu0 0
      %2961 = vmatpush2.bf16.msra.mxu0 0
      %2962 = vmatprep.subr.bf16.mxu0 0
      %2963 = vmatpush2.bf16.msra.mxu0 0
      %2964 = vmatprep.subr.bf16.mxu0 0
      %2965 = vmatpush2.bf16.msra.mxu0 0
      %2966 = vmatprep.subr.bf16.mxu0 0
      %2967 = vmatpush2.bf16.msra.mxu0 0
      %2968 = vmatprep.subr.bf16.mxu0 0
      %2969 = vmatpush2.bf16.msra.mxu0 0
      %2970 = vmatprep.mubr.bf16.mxu0 0
      %2971 = vmatmul.mubr.bf16.gmra.mxu0 %v2930
      %v2972 = vpop.f32.mrf.mxu0
      %v2973 = vadd.f32 0.0, %v2972
      %v2974 = vpop.f32.mrf.mxu0
      %v2975 = vadd.f32 0.0, %v2974
      %v2976 = vpop.f32.mrf.mxu0
      %v2977 = vpop.f32.mrf.mxu0
      %2978 = vdwg.mxu0
      %v2979 = vadd.f32 %v2086, %v2973
      %v2980 = vadd.f32 %v2087, %v2975
      %v2983 = vrot.slane %v2088, 2
      %v2984 = vrot.slane %v2089, 2
      %2987 = vxpose.xlu0.c.b16.start [1/8] %v2983, 128
      %2988 = vxpose.xlu0.c.b16.cont [2/8] 0, 128
      %2989 = vxpose.xlu0.c.b16.cont [3/8] 0, 128
      %2990 = vxpose.xlu0.c.b16.cont [4/8] 0, 128
      %2991 = vxpose.xlu0.c.b16.cont [5/8] 0, 128
      %2992 = vxpose.xlu0.c.b16.cont [6/8] 0, 128
      %2993 = vxpose.xlu0.c.b16.cont [7/8] 0, 128
      %2994 = vxpose.xlu0.c.b16.end [8/8] 0, 128
      %v2995 = vpop.trf.xlu0
      %v2996 = vpop.trf.xlu0
      %v2997 = vpop.trf.xlu0
      %v2998 = vpop.trf.xlu0
      %v2999 = vpop.trf.xlu0
      %v3000 = vpop.trf.xlu0
      %v3001 = vpop.trf.xlu0
      %v3002 = vpop.trf.xlu0
      %3003 = vxpose.xlu0.c.b16.start [1/8] %v2984, 128
      %3004 = vxpose.xlu0.c.b16.cont [2/8] 0, 128
      %3005 = vxpose.xlu0.c.b16.cont [3/8] 0, 128
      %3006 = vxpose.xlu0.c.b16.cont [4/8] 0, 128
      %3007 = vxpose.xlu0.c.b16.cont [5/8] 0, 128
      %3008 = vxpose.xlu0.c.b16.cont [6/8] 0, 128
      %3009 = vxpose.xlu0.c.b16.cont [7/8] 0, 128
      %3010 = vxpose.xlu0.c.b16.end [8/8] 0, 128
      %v3011 = vpop.trf.xlu0
      %v3012 = vpop.trf.xlu0
      %v3013 = vpop.trf.xlu0
      %v3014 = vpop.trf.xlu0
      %v3015 = vpop.trf.xlu0
      %v3016 = vpop.trf.xlu0
      %v3017 = vpop.trf.xlu0
      %v3018 = vpop.trf.xlu0
      %v3021 = vrot.slane %v2090, 2
      %v3022 = vrot.slane %v2091, 2
      %v3024 = vsel %vm976, %v2995, 0
      %v3027 = vsel %vm976, %v2996, 0
      %v3030 = vsel %vm976, %v2997, 0
      %v3033 = vsel %vm976, %v2998, 0
      %v3036 = vsel %vm976, %v2999, 0
      %v3039 = vsel %vm976, %v3000, 0
      %v3042 = vsel %vm976, %v3001, 0
      %v3045 = vsel %vm976, %v3002, 0
      %v3048 = vsel %vm976, %v3011, 0
      %v3051 = vsel %vm976, %v3012, 0
      %v3054 = vsel %vm976, %v3013, 0
      %v3057 = vsel %vm976, %v3014, 0
      %v3060 = vsel %vm976, %v3015, 0
      %v3063 = vsel %vm976, %v3016, 0
      %v3066 = vsel %vm976, %v3017, 0
      %v3069 = vsel %vm976, %v3018, 0
      %v3072 = vsel %vm1350, %v3021, 0
      %v3075 = vsel %vm1350, %v3022, 0
      %3077 = vmatprep.subr.bf16.mxu0 0
      %3078 = vmatpush1.bf16.msra.mxu0 0
      %3079 = vmatprep.subr.bf16.mxu0 0
      %3080 = vmatpush1.bf16.msra.mxu0 0
      %3081 = vmatprep.subr.bf16.mxu0 0
      %3082 = vmatpush1.bf16.msra.mxu0 0
      %3083 = vmatprep.subr.bf16.mxu0 0
      %3084 = vmatpush1.bf16.msra.mxu0 0
      %3085 = vmatprep.subr.bf16.mxu0 0
      %3086 = vmatpush1.bf16.msra.mxu0 0
      %3087 = vmatprep.subr.bf16.mxu0 0
      %3088 = vmatpush1.bf16.msra.mxu0 0
      %3089 = vmatprep.subr.bf16.mxu0 0
      %3090 = vmatpush1.bf16.msra.mxu0 0
      %3091 = vmatprep.subr.bf16.mxu0 %v3075
      %3092 = vmatpush1.bf16.msra.mxu0 %v3072
      %3093 = vmatprep.subr.bf16.mxu0 0
      %3094 = vmatpush2.bf16.msra.mxu0 0
      %3095 = vmatprep.subr.bf16.mxu0 0
      %3096 = vmatpush2.bf16.msra.mxu0 0
      %3097 = vmatprep.subr.bf16.mxu0 0
      %3098 = vmatpush2.bf16.msra.mxu0 0
      %3099 = vmatprep.subr.bf16.mxu0 0
      %3100 = vmatpush2.bf16.msra.mxu0 0
      %3101 = vmatprep.subr.bf16.mxu0 0
      %3102 = vmatpush2.bf16.msra.mxu0 0
      %3103 = vmatprep.subr.bf16.mxu0 0
      %3104 = vmatpush2.bf16.msra.mxu0 0
      %3105 = vmatprep.subr.bf16.mxu0 0
      %3106 = vmatpush2.bf16.msra.mxu0 0
      %3107 = vmatprep.subr.bf16.mxu0 0
      %3108 = vmatpush2.bf16.msra.mxu0 0
      %3109 = vmatprep.mubr.bf16.mxu0 0
      %3110 = vmatmul.mubr.bf16.gmra.mxu0 %v3024
      %v3111 = vpop.f32.mrf.mxu0
      %v3112 = vadd.f32 0.0, %v3111
      %v3113 = vpop.f32.mrf.mxu0
      %v3114 = vadd.f32 0.0, %v3113
      %v3115 = vpop.f32.mrf.mxu0
      %v3116 = vadd.f32 0.0, %v3115
      %v3117 = vpop.f32.mrf.mxu0
      %v3118 = vadd.f32 0.0, %v3117
      %3119 = vmatprep.mubr.bf16.mxu0 0
      %3120 = vmatmul.mubr.bf16.gmra.mxu0 %v3027
      %v3121 = vpop.f32.mrf.mxu0
      %v3122 = vadd.f32 0.0, %v3121
      %v3123 = vpop.f32.mrf.mxu0
      %v3124 = vadd.f32 0.0, %v3123
      %v3125 = vpop.f32.mrf.mxu0
      %v3126 = vadd.f32 0.0, %v3125
      %v3127 = vpop.f32.mrf.mxu0
      %v3128 = vadd.f32 0.0, %v3127
      %3129 = vmatprep.mubr.bf16.mxu0 0
      %3130 = vmatmul.mubr.bf16.gmra.mxu0 %v3030
      %v3131 = vpop.f32.mrf.mxu0
      %v3132 = vadd.f32 0.0, %v3131
      %v3133 = vpop.f32.mrf.mxu0
      %v3134 = vadd.f32 0.0, %v3133
      %v3135 = vpop.f32.mrf.mxu0
      %v3136 = vadd.f32 0.0, %v3135
      %v3137 = vpop.f32.mrf.mxu0
      %v3138 = vadd.f32 0.0, %v3137
      %3139 = vmatprep.mubr.bf16.mxu0 0
      %3140 = vmatmul.mubr.bf16.gmra.mxu0 %v3033
      %v3141 = vpop.f32.mrf.mxu0
      %v3142 = vadd.f32 0.0, %v3141
      %v3143 = vpop.f32.mrf.mxu0
      %v3144 = vadd.f32 0.0, %v3143
      %v3145 = vpop.f32.mrf.mxu0
      %v3146 = vadd.f32 0.0, %v3145
      %v3147 = vpop.f32.mrf.mxu0
      %v3148 = vadd.f32 0.0, %v3147
      %3149 = vmatprep.mubr.bf16.mxu0 0
      %3150 = vmatmul.mubr.bf16.gmra.mxu0 %v3036
      %v3151 = vpop.f32.mrf.mxu0
      %v3152 = vadd.f32 0.0, %v3151
      %v3153 = vpop.f32.mrf.mxu0
      %v3154 = vadd.f32 0.0, %v3153
      %v3155 = vpop.f32.mrf.mxu0
      %v3156 = vadd.f32 0.0, %v3155
      %v3157 = vpop.f32.mrf.mxu0
      %v3158 = vadd.f32 0.0, %v3157
      %3159 = vmatprep.mubr.bf16.mxu0 0
      %3160 = vmatmul.mubr.bf16.gmra.mxu0 %v3039
      %v3161 = vpop.f32.mrf.mxu0
      %v3162 = vadd.f32 0.0, %v3161
      %v3163 = vpop.f32.mrf.mxu0
      %v3164 = vadd.f32 0.0, %v3163
      %v3165 = vpop.f32.mrf.mxu0
      %v3166 = vadd.f32 0.0, %v3165
      %v3167 = vpop.f32.mrf.mxu0
      %v3168 = vadd.f32 0.0, %v3167
      %3169 = vmatprep.mubr.bf16.mxu0 0
      %3170 = vmatmul.mubr.bf16.gmra.mxu0 %v3042
      %v3171 = vpop.f32.mrf.mxu0
      %v3172 = vadd.f32 0.0, %v3171
      %v3173 = vpop.f32.mrf.mxu0
      %v3174 = vadd.f32 0.0, %v3173
      %v3175 = vpop.f32.mrf.mxu0
      %v3176 = vadd.f32 0.0, %v3175
      %v3177 = vpop.f32.mrf.mxu0
      %v3178 = vadd.f32 0.0, %v3177
      %3179 = vmatprep.mubr.bf16.mxu0 0
      %3180 = vmatmul.mubr.bf16.gmra.mxu0 %v3045
      %v3181 = vpop.f32.mrf.mxu0
      %v3182 = vadd.f32 0.0, %v3181
      %v3183 = vpop.f32.mrf.mxu0
      %v3184 = vadd.f32 0.0, %v3183
      %v3185 = vpop.f32.mrf.mxu0
      %v3186 = vadd.f32 0.0, %v3185
      %v3187 = vpop.f32.mrf.mxu0
      %v3188 = vadd.f32 0.0, %v3187
      %3189 = vmatprep.mubr.bf16.mxu0 0
      %3190 = vmatmul.mubr.bf16.gmra.mxu0 %v3048
      %v3191 = vpop.f32.mrf.mxu0
      %v3192 = vadd.f32 0.0, %v3191
      %v3193 = vpop.f32.mrf.mxu0
      %v3194 = vadd.f32 0.0, %v3193
      %v3195 = vpop.f32.mrf.mxu0
      %v3196 = vadd.f32 0.0, %v3195
      %v3197 = vpop.f32.mrf.mxu0
      %v3198 = vadd.f32 0.0, %v3197
      %3199 = vmatprep.mubr.bf16.mxu0 0
      %3200 = vmatmul.mubr.bf16.gmra.mxu0 %v3051
      %v3201 = vpop.f32.mrf.mxu0
      %v3202 = vadd.f32 0.0, %v3201
      %v3203 = vpop.f32.mrf.mxu0
      %v3204 = vadd.f32 0.0, %v3203
      %v3205 = vpop.f32.mrf.mxu0
      %v3206 = vadd.f32 0.0, %v3205
      %v3207 = vpop.f32.mrf.mxu0
      %v3208 = vadd.f32 0.0, %v3207
      %3209 = vmatprep.mubr.bf16.mxu0 0
      %3210 = vmatmul.mubr.bf16.gmra.mxu0 %v3054
      %v3211 = vpop.f32.mrf.mxu0
      %v3212 = vadd.f32 0.0, %v3211
      %v3213 = vpop.f32.mrf.mxu0
      %v3214 = vadd.f32 0.0, %v3213
      %v3215 = vpop.f32.mrf.mxu0
      %v3216 = vadd.f32 0.0, %v3215
      %v3217 = vpop.f32.mrf.mxu0
      %v3218 = vadd.f32 0.0, %v3217
      %3219 = vmatprep.mubr.bf16.mxu0 0
      %3220 = vmatmul.mubr.bf16.gmra.mxu0 %v3057
      %v3221 = vpop.f32.mrf.mxu0
      %v3222 = vadd.f32 0.0, %v3221
      %v3223 = vpop.f32.mrf.mxu0
      %v3224 = vadd.f32 0.0, %v3223
      %v3225 = vpop.f32.mrf.mxu0
      %v3226 = vadd.f32 0.0, %v3225
      %v3227 = vpop.f32.mrf.mxu0
      %v3228 = vadd.f32 0.0, %v3227
      %3229 = vmatprep.mubr.bf16.mxu0 0
      %3230 = vmatmul.mubr.bf16.gmra.mxu0 %v3060
      %v3231 = vpop.f32.mrf.mxu0
      %v3232 = vadd.f32 0.0, %v3231
      %v3233 = vpop.f32.mrf.mxu0
      %v3234 = vadd.f32 0.0, %v3233
      %v3235 = vpop.f32.mrf.mxu0
      %v3236 = vadd.f32 0.0, %v3235
      %v3237 = vpop.f32.mrf.mxu0
      %v3238 = vadd.f32 0.0, %v3237
      %3239 = vmatprep.mubr.bf16.mxu0 0
      %3240 = vmatmul.mubr.bf16.gmra.mxu0 %v3063
      %v3241 = vpop.f32.mrf.mxu0
      %v3242 = vadd.f32 0.0, %v3241
      %v3243 = vpop.f32.mrf.mxu0
      %v3244 = vadd.f32 0.0, %v3243
      %v3245 = vpop.f32.mrf.mxu0
      %v3246 = vadd.f32 0.0, %v3245
      %v3247 = vpop.f32.mrf.mxu0
      %v3248 = vadd.f32 0.0, %v3247
      %3249 = vmatprep.mubr.bf16.mxu0 0
      %3250 = vmatmul.mubr.bf16.gmra.mxu0 %v3066
      %v3251 = vpop.f32.mrf.mxu0
      %v3252 = vadd.f32 0.0, %v3251
      %v3253 = vpop.f32.mrf.mxu0
      %v3254 = vadd.f32 0.0, %v3253
      %v3255 = vpop.f32.mrf.mxu0
      %v3256 = vadd.f32 0.0, %v3255
      %v3257 = vpop.f32.mrf.mxu0
      %v3258 = vadd.f32 0.0, %v3257
      %3259 = vmatprep.mubr.bf16.mxu0 0
      %3260 = vmatmul.mubr.bf16.gmra.mxu0 %v3069
      %v3261 = vpop.f32.mrf.mxu0
      %v3262 = vadd.f32 0.0, %v3261
      %v3263 = vpop.f32.mrf.mxu0
      %v3264 = vadd.f32 0.0, %v3263
      %v3265 = vpop.f32.mrf.mxu0
      %v3266 = vadd.f32 0.0, %v3265
      %v3267 = vpop.f32.mrf.mxu0
      %v3268 = vadd.f32 0.0, %v3267
      %3269 = vdwg.mxu0
      %v3270 = vmax.f32 %v3112, %v3114
      %3271 = vmax.xlane.f32.xlu0 %v3270
      %v3272 = vpop.xlane.xlu0 %3271
      %v3273 = vmax.f32 %v3116, %v3118
      %3274 = vmax.xlane.f32.xlu0 %v3273
      %v3275 = vpop.xlane.xlu0 %3274
      %v3276 = vmax.f32 %v3122, %v3124
      %3277 = vmax.xlane.f32.xlu0 %v3276
      %v3278 = vpop.xlane.xlu0 %3277
      %v3279 = vmax.f32 %v3126, %v3128
      %3280 = vmax.xlane.f32.xlu0 %v3279
      %v3281 = vpop.xlane.xlu0 %3280
      %v3282 = vmax.f32 %v3132, %v3134
      %3283 = vmax.xlane.f32.xlu0 %v3282
      %v3284 = vpop.xlane.xlu0 %3283
      %v3285 = vmax.f32 %v3136, %v3138
      %3286 = vmax.xlane.f32.xlu0 %v3285
      %v3287 = vpop.xlane.xlu0 %3286
      %v3288 = vmax.f32 %v3142, %v3144
      %3289 = vmax.xlane.f32.xlu0 %v3288
      %v3290 = vpop.xlane.xlu0 %3289
      %v3291 = vmax.f32 %v3146, %v3148
      %3292 = vmax.xlane.f32.xlu0 %v3291
      %v3293 = vpop.xlane.xlu0 %3292
      %v3294 = vmax.f32 %v3152, %v3154
      %3295 = vmax.xlane.f32.xlu0 %v3294
      %v3296 = vpop.xlane.xlu0 %3295
      %v3297 = vmax.f32 %v3156, %v3158
      %3298 = vmax.xlane.f32.xlu0 %v3297
      %v3299 = vpop.xlane.xlu0 %3298
      %v3300 = vmax.f32 %v3162, %v3164
      %3301 = vmax.xlane.f32.xlu0 %v3300
      %v3302 = vpop.xlane.xlu0 %3301
      %v3303 = vmax.f32 %v3166, %v3168
      %3304 = vmax.xlane.f32.xlu0 %v3303
      %v3305 = vpop.xlane.xlu0 %3304
      %v3306 = vmax.f32 %v3172, %v3174
      %3307 = vmax.xlane.f32.xlu0 %v3306
      %v3308 = vpop.xlane.xlu0 %3307
      %v3309 = vmax.f32 %v3176, %v3178
      %3310 = vmax.xlane.f32.xlu0 %v3309
      %v3311 = vpop.xlane.xlu0 %3310
      %v3312 = vmax.f32 %v3182, %v3184
      %3313 = vmax.xlane.f32.xlu0 %v3312
      %v3314 = vpop.xlane.xlu0 %3313
      %v3315 = vmax.f32 %v3186, %v3188
      %3316 = vmax.xlane.f32.xlu0 %v3315
      %v3317 = vpop.xlane.xlu0 %3316
      %v3318 = vmax.f32 %v3192, %v3194
      %3319 = vmax.xlane.f32.xlu0 %v3318
      %v3320 = vpop.xlane.xlu0 %3319
      %v3321 = vmax.f32 %v3196, %v3198
      %3322 = vmax.xlane.f32.xlu0 %v3321
      %v3323 = vpop.xlane.xlu0 %3322
      %v3324 = vmax.f32 %v3202, %v3204
      %3325 = vmax.xlane.f32.xlu0 %v3324
      %v3326 = vpop.xlane.xlu0 %3325
      %v3327 = vmax.f32 %v3206, %v3208
      %3328 = vmax.xlane.f32.xlu0 %v3327
      %v3329 = vpop.xlane.xlu0 %3328
      %v3330 = vmax.f32 %v3212, %v3214
      %3331 = vmax.xlane.f32.xlu0 %v3330
      %v3332 = vpop.xlane.xlu0 %3331
      %v3333 = vmax.f32 %v3216, %v3218
      %3334 = vmax.xlane.f32.xlu0 %v3333
      %v3335 = vpop.xlane.xlu0 %3334
      %v3336 = vmax.f32 %v3222, %v3224
      %3337 = vmax.xlane.f32.xlu0 %v3336
      %v3338 = vpop.xlane.xlu0 %3337
      %v3339 = vmax.f32 %v3226, %v3228
      %3340 = vmax.xlane.f32.xlu0 %v3339
      %v3341 = vpop.xlane.xlu0 %3340
      %v3342 = vmax.f32 %v3232, %v3234
      %3343 = vmax.xlane.f32.xlu0 %v3342
      %v3344 = vpop.xlane.xlu0 %3343
      %v3345 = vmax.f32 %v3236, %v3238
      %3346 = vmax.xlane.f32.xlu0 %v3345
      %v3347 = vpop.xlane.xlu0 %3346
      %v3348 = vmax.f32 %v3242, %v3244
      %3349 = vmax.xlane.f32.xlu0 %v3348
      %v3350 = vpop.xlane.xlu0 %3349
      %v3351 = vmax.f32 %v3246, %v3248
      %3352 = vmax.xlane.f32.xlu0 %v3351
      %v3353 = vpop.xlane.xlu0 %3352
      %v3354 = vmax.f32 %v3252, %v3254
      %3355 = vmax.xlane.f32.xlu0 %v3354
      %v3356 = vpop.xlane.xlu0 %3355
      %v3357 = vmax.f32 %v3256, %v3258
      %3358 = vmax.xlane.f32.xlu0 %v3357
      %v3359 = vpop.xlane.xlu0 %3358
      %v3360 = vmax.f32 %v3262, %v3264
      %3361 = vmax.xlane.f32.xlu0 %v3360
      %v3362 = vpop.xlane.xlu0 %3361
      %v3363 = vmax.f32 %v3266, %v3268
      %3364 = vmax.xlane.f32.xlu0 %v3363
      %v3365 = vpop.xlane.xlu0 %3364
      %v3366 = vsub.f32 %v3112, %v3272
      %v3367 = vsub.f32 %v3114, %v3272
      %v3368 = vsub.f32 %v3116, %v3275
      %v3369 = vsub.f32 %v3118, %v3275
      %v3370 = vsub.f32 %v3122, %v3278
      %v3371 = vsub.f32 %v3124, %v3278
      %v3372 = vsub.f32 %v3126, %v3281
      %v3373 = vsub.f32 %v3128, %v3281
      %v3374 = vsub.f32 %v3132, %v3284
      %v3375 = vsub.f32 %v3134, %v3284
      %v3376 = vsub.f32 %v3136, %v3287
      %v3377 = vsub.f32 %v3138, %v3287
      %v3378 = vsub.f32 %v3142, %v3290
      %v3379 = vsub.f32 %v3144, %v3290
      %v3380 = vsub.f32 %v3146, %v3293
      %v3381 = vsub.f32 %v3148, %v3293
      %v3382 = vsub.f32 %v3152, %v3296
      %v3383 = vsub.f32 %v3154, %v3296
      %v3384 = vsub.f32 %v3156, %v3299
      %v3385 = vsub.f32 %v3158, %v3299
      %v3386 = vsub.f32 %v3162, %v3302
      %v3387 = vsub.f32 %v3164, %v3302
      %v3388 = vsub.f32 %v3166, %v3305
      %v3389 = vsub.f32 %v3168, %v3305
      %v3390 = vsub.f32 %v3172, %v3308
      %v3391 = vsub.f32 %v3174, %v3308
      %v3392 = vsub.f32 %v3176, %v3311
      %v3393 = vsub.f32 %v3178, %v3311
      %v3394 = vsub.f32 %v3182, %v3314
      %v3395 = vsub.f32 %v3184, %v3314
      %v3396 = vsub.f32 %v3186, %v3317
      %v3397 = vsub.f32 %v3188, %v3317
      %v3398 = vsub.f32 %v3192, %v3320
      %v3399 = vsub.f32 %v3194, %v3320
      %v3400 = vsub.f32 %v3196, %v3323
      %v3401 = vsub.f32 %v3198, %v3323
      %v3402 = vsub.f32 %v3202, %v3326
      %v3403 = vsub.f32 %v3204, %v3326
      %v3404 = vsub.f32 %v3206, %v3329
      %v3405 = vsub.f32 %v3208, %v3329
      %v3406 = vsub.f32 %v3212, %v3332
      %v3407 = vsub.f32 %v3214, %v3332
      %v3408 = vsub.f32 %v3216, %v3335
      %v3409 = vsub.f32 %v3218, %v3335
      %v3410 = vsub.f32 %v3222, %v3338
      %v3411 = vsub.f32 %v3224, %v3338
      %v3412 = vsub.f32 %v3226, %v3341
      %v3413 = vsub.f32 %v3228, %v3341
      %v3414 = vsub.f32 %v3232, %v3344
      %v3415 = vsub.f32 %v3234, %v3344
      %v3416 = vsub.f32 %v3236, %v3347
      %v3417 = vsub.f32 %v3238, %v3347
      %v3418 = vsub.f32 %v3242, %v3350
      %v3419 = vsub.f32 %v3244, %v3350
      %v3420 = vsub.f32 %v3246, %v3353
      %v3421 = vsub.f32 %v3248, %v3353
      %v3422 = vsub.f32 %v3252, %v3356
      %v3423 = vsub.f32 %v3254, %v3356
      %v3424 = vsub.f32 %v3256, %v3359
      %v3425 = vsub.f32 %v3258, %v3359
      %v3426 = vsub.f32 %v3262, %v3362
      %v3427 = vsub.f32 %v3264, %v3362
      %v3428 = vsub.f32 %v3266, %v3365
      %v3429 = vsub.f32 %v3268, %v3365
      %v3430 = vmul.f32 %v3366, 1.442695
      %v3431 = vpow.pop %v3430
      %v3432 = vmul.f32 %v3367, 1.442695
      %v3433 = vpow.pop %v3432
      %v3434 = vmul.f32 %v3368, 1.442695
      %v3435 = vpow.pop %v3434
      %v3436 = vmul.f32 %v3369, 1.442695
      %v3437 = vpow.pop %v3436
      %v3438 = vmul.f32 %v3370, 1.442695
      %v3439 = vpow.pop %v3438
      %v3440 = vmul.f32 %v3371, 1.442695
      %v3441 = vpow.pop %v3440
      %v3442 = vmul.f32 %v3372, 1.442695
      %v3443 = vpow.pop %v3442
      %v3444 = vmul.f32 %v3373, 1.442695
      %v3445 = vpow.pop %v3444
      %v3446 = vmul.f32 %v3374, 1.442695
      %v3447 = vpow.pop %v3446
      %v3448 = vmul.f32 %v3375, 1.442695
      %v3449 = vpow.pop %v3448
      %v3450 = vmul.f32 %v3376, 1.442695
      %v3451 = vpow.pop %v3450
      %v3452 = vmul.f32 %v3377, 1.442695
      %v3453 = vpow.pop %v3452
      %v3454 = vmul.f32 %v3378, 1.442695
      %v3455 = vpow.pop %v3454
      %v3456 = vmul.f32 %v3379, 1.442695
      %v3457 = vpow.pop %v3456
      %v3458 = vmul.f32 %v3380, 1.442695
      %v3459 = vpow.pop %v3458
      %v3460 = vmul.f32 %v3381, 1.442695
      %v3461 = vpow.pop %v3460
      %v3462 = vmul.f32 %v3382, 1.442695
      %v3463 = vpow.pop %v3462
      %v3464 = vmul.f32 %v3383, 1.442695
      %v3465 = vpow.pop %v3464
      %v3466 = vmul.f32 %v3384, 1.442695
      %v3467 = vpow.pop %v3466
      %v3468 = vmul.f32 %v3385, 1.442695
      %v3469 = vpow.pop %v3468
      %v3470 = vmul.f32 %v3386, 1.442695
      %v3471 = vpow.pop %v3470
      %v3472 = vmul.f32 %v3387, 1.442695
      %v3473 = vpow.pop %v3472
      %v3474 = vmul.f32 %v3388, 1.442695
      %v3475 = vpow.pop %v3474
      %v3476 = vmul.f32 %v3389, 1.442695
      %v3477 = vpow.pop %v3476
      %v3478 = vmul.f32 %v3390, 1.442695
      %v3479 = vpow.pop %v3478
      %v3480 = vmul.f32 %v3391, 1.442695
      %v3481 = vpow.pop %v3480
      %v3482 = vmul.f32 %v3392, 1.442695
      %v3483 = vpow.pop %v3482
      %v3484 = vmul.f32 %v3393, 1.442695
      %v3485 = vpow.pop %v3484
      %v3486 = vmul.f32 %v3394, 1.442695
      %v3487 = vpow.pop %v3486
      %v3488 = vmul.f32 %v3395, 1.442695
      %v3489 = vpow.pop %v3488
      %v3490 = vmul.f32 %v3396, 1.442695
      %v3491 = vpow.pop %v3490
      %v3492 = vmul.f32 %v3397, 1.442695
      %v3493 = vpow.pop %v3492
      %v3494 = vmul.f32 %v3398, 1.442695
      %v3495 = vpow.pop %v3494
      %v3496 = vmul.f32 %v3399, 1.442695
      %v3497 = vpow.pop %v3496
      %v3498 = vmul.f32 %v3400, 1.442695
      %v3499 = vpow.pop %v3498
      %v3500 = vmul.f32 %v3401, 1.442695
      %v3501 = vpow.pop %v3500
      %v3502 = vmul.f32 %v3402, 1.442695
      %v3503 = vpow.pop %v3502
      %v3504 = vmul.f32 %v3403, 1.442695
      %v3505 = vpow.pop %v3504
      %v3506 = vmul.f32 %v3404, 1.442695
      %v3507 = vpow.pop %v3506
      %v3508 = vmul.f32 %v3405, 1.442695
      %v3509 = vpow.pop %v3508
      %v3510 = vmul.f32 %v3406, 1.442695
      %v3511 = vpow.pop %v3510
      %v3512 = vmul.f32 %v3407, 1.442695
      %v3513 = vpow.pop %v3512
      %v3514 = vmul.f32 %v3408, 1.442695
      %v3515 = vpow.pop %v3514
      %v3516 = vmul.f32 %v3409, 1.442695
      %v3517 = vpow.pop %v3516
      %v3518 = vmul.f32 %v3410, 1.442695
      %v3519 = vpow.pop %v3518
      %v3520 = vmul.f32 %v3411, 1.442695
      %v3521 = vpow.pop %v3520
      %v3522 = vmul.f32 %v3412, 1.442695
      %v3523 = vpow.pop %v3522
      %v3524 = vmul.f32 %v3413, 1.442695
      %v3525 = vpow.pop %v3524
      %v3526 = vmul.f32 %v3414, 1.442695
      %v3527 = vpow.pop %v3526
      %v3528 = vmul.f32 %v3415, 1.442695
      %v3529 = vpow.pop %v3528
      %v3530 = vmul.f32 %v3416, 1.442695
      %v3531 = vpow.pop %v3530
      %v3532 = vmul.f32 %v3417, 1.442695
      %v3533 = vpow.pop %v3532
      %v3534 = vmul.f32 %v3418, 1.442695
      %v3535 = vpow.pop %v3534
      %v3536 = vmul.f32 %v3419, 1.442695
      %v3537 = vpow.pop %v3536
      %v3538 = vmul.f32 %v3420, 1.442695
      %v3539 = vpow.pop %v3538
      %v3540 = vmul.f32 %v3421, 1.442695
      %v3541 = vpow.pop %v3540
      %v3542 = vmul.f32 %v3422, 1.442695
      %v3543 = vpow.pop %v3542
      %v3544 = vmul.f32 %v3423, 1.442695
      %v3545 = vpow.pop %v3544
      %v3546 = vmul.f32 %v3424, 1.442695
      %v3547 = vpow.pop %v3546
      %v3548 = vmul.f32 %v3425, 1.442695
      %v3549 = vpow.pop %v3548
      %v3550 = vmul.f32 %v3426, 1.442695
      %v3551 = vpow.pop %v3550
      %v3552 = vmul.f32 %v3427, 1.442695
      %v3553 = vpow.pop %v3552
      %v3554 = vmul.f32 %v3428, 1.442695
      %v3555 = vpow.pop %v3554
      %v3556 = vmul.f32 %v3429, 1.442695
      %v3557 = vpow.pop %v3556
      %v3558 = vadd.f32 %v3431, %v3433
      %3559 = vadd.xlane.f32.xlu0 %v3558
      %v3560 = vpop.xlane.xlu0 %3559
      %v3561 = vadd.f32 %v3435, %v3437
      %3562 = vadd.xlane.f32.xlu0 %v3561
      %v3563 = vpop.xlane.xlu0 %3562
      %v3564 = vadd.f32 %v3439, %v3441
      %3565 = vadd.xlane.f32.xlu0 %v3564
      %v3566 = vpop.xlane.xlu0 %3565
      %v3567 = vadd.f32 %v3443, %v3445
      %3568 = vadd.xlane.f32.xlu0 %v3567
      %v3569 = vpop.xlane.xlu0 %3568
      %v3570 = vadd.f32 %v3447, %v3449
      %3571 = vadd.xlane.f32.xlu0 %v3570
      %v3572 = vpop.xlane.xlu0 %3571
      %v3573 = vadd.f32 %v3451, %v3453
      %3574 = vadd.xlane.f32.xlu0 %v3573
      %v3575 = vpop.xlane.xlu0 %3574
      %v3576 = vadd.f32 %v3455, %v3457
      %3577 = vadd.xlane.f32.xlu0 %v3576
      %v3578 = vpop.xlane.xlu0 %3577
      %v3579 = vadd.f32 %v3459, %v3461
      %3580 = vadd.xlane.f32.xlu0 %v3579
      %v3581 = vpop.xlane.xlu0 %3580
      %v3582 = vadd.f32 %v3463, %v3465
      %3583 = vadd.xlane.f32.xlu0 %v3582
      %v3584 = vpop.xlane.xlu0 %3583
      %v3585 = vadd.f32 %v3467, %v3469
      %3586 = vadd.xlane.f32.xlu0 %v3585
      %v3587 = vpop.xlane.xlu0 %3586
      %v3588 = vadd.f32 %v3471, %v3473
      %3589 = vadd.xlane.f32.xlu0 %v3588
      %v3590 = vpop.xlane.xlu0 %3589
      %v3591 = vadd.f32 %v3475, %v3477
      %3592 = vadd.xlane.f32.xlu0 %v3591
      %v3593 = vpop.xlane.xlu0 %3592
      %v3594 = vadd.f32 %v3479, %v3481
      %3595 = vadd.xlane.f32.xlu0 %v3594
      %v3596 = vpop.xlane.xlu0 %3595
      %v3597 = vadd.f32 %v3483, %v3485
      %3598 = vadd.xlane.f32.xlu0 %v3597
      %v3599 = vpop.xlane.xlu0 %3598
      %v3600 = vadd.f32 %v3487, %v3489
      %3601 = vadd.xlane.f32.xlu0 %v3600
      %v3602 = vpop.xlane.xlu0 %3601
      %v3603 = vadd.f32 %v3491, %v3493
      %3604 = vadd.xlane.f32.xlu0 %v3603
      %v3605 = vpop.xlane.xlu0 %3604
      %v3606 = vadd.f32 %v3495, %v3497
      %3607 = vadd.xlane.f32.xlu0 %v3606
      %v3608 = vpop.xlane.xlu0 %3607
      %v3609 = vadd.f32 %v3499, %v3501
      %3610 = vadd.xlane.f32.xlu0 %v3609
      %v3611 = vpop.xlane.xlu0 %3610
      %v3612 = vadd.f32 %v3503, %v3505
      %3613 = vadd.xlane.f32.xlu0 %v3612
      %v3614 = vpop.xlane.xlu0 %3613
      %v3615 = vadd.f32 %v3507, %v3509
      %3616 = vadd.xlane.f32.xlu0 %v3615
      %v3617 = vpop.xlane.xlu0 %3616
      %v3618 = vadd.f32 %v3511, %v3513
      %3619 = vadd.xlane.f32.xlu0 %v3618
      %v3620 = vpop.xlane.xlu0 %3619
      %v3621 = vadd.f32 %v3515, %v3517
      %3622 = vadd.xlane.f32.xlu0 %v3621
      %v3623 = vpop.xlane.xlu0 %3622
      %v3624 = vadd.f32 %v3519, %v3521
      %3625 = vadd.xlane.f32.xlu0 %v3624
      %v3626 = vpop.xlane.xlu0 %3625
      %v3627 = vadd.f32 %v3523, %v3525
      %3628 = vadd.xlane.f32.xlu0 %v3627
      %v3629 = vpop.xlane.xlu0 %3628
      %v3630 = vadd.f32 %v3527, %v3529
      %3631 = vadd.xlane.f32.xlu0 %v3630
      %v3632 = vpop.xlane.xlu0 %3631
      %v3633 = vadd.f32 %v3531, %v3533
      %3634 = vadd.xlane.f32.xlu0 %v3633
      %v3635 = vpop.xlane.xlu0 %3634
      %v3636 = vadd.f32 %v3535, %v3537
      %3637 = vadd.xlane.f32.xlu0 %v3636
      %v3638 = vpop.xlane.xlu0 %3637
      %v3639 = vadd.f32 %v3539, %v3541
      %3640 = vadd.xlane.f32.xlu0 %v3639
      %v3641 = vpop.xlane.xlu0 %3640
      %v3642 = vadd.f32 %v3543, %v3545
      %3643 = vadd.xlane.f32.xlu0 %v3642
      %v3644 = vpop.xlane.xlu0 %3643
      %v3645 = vadd.f32 %v3547, %v3549
      %3646 = vadd.xlane.f32.xlu0 %v3645
      %v3647 = vpop.xlane.xlu0 %3646
      %v3648 = vadd.f32 %v3551, %v3553
      %3649 = vadd.xlane.f32.xlu0 %v3648
      %v3650 = vpop.xlane.xlu0 %3649
      %v3651 = vadd.f32 %v3555, %v3557
      %3652 = vadd.xlane.f32.xlu0 %v3651
      %v3653 = vpop.xlane.xlu0 %3652
      %v3654 = vrcp.pop %v3560
      %v3655 = vrcp.pop %v3563
      %v3656 = vrcp.pop %v3566
      %v3657 = vrcp.pop %v3569
      %v3658 = vrcp.pop %v3572
      %v3659 = vrcp.pop %v3575
      %v3660 = vrcp.pop %v3578
      %v3661 = vrcp.pop %v3581
      %v3662 = vrcp.pop %v3584
      %v3663 = vrcp.pop %v3587
      %v3664 = vrcp.pop %v3590
      %v3665 = vrcp.pop %v3593
      %v3666 = vrcp.pop %v3596
      %v3667 = vrcp.pop %v3599
      %v3668 = vrcp.pop %v3602
      %v3669 = vrcp.pop %v3605
      %v3670 = vrcp.pop %v3608
      %v3671 = vrcp.pop %v3611
      %v3672 = vrcp.pop %v3614
      %v3673 = vrcp.pop %v3617
      %v3674 = vrcp.pop %v3620
      %v3675 = vrcp.pop %v3623
      %v3676 = vrcp.pop %v3626
      %v3677 = vrcp.pop %v3629
      %v3678 = vrcp.pop %v3632
      %v3679 = vrcp.pop %v3635
      %v3680 = vrcp.pop %v3638
      %v3681 = vrcp.pop %v3641
      %v3682 = vrcp.pop %v3644
      %v3683 = vrcp.pop %v3647
      %v3684 = vrcp.pop %v3650
      %v3685 = vrcp.pop %v3653
      %v3686 = vmul.f32 %v3431, %v3654
      %v3687 = vmul.f32 %v3433, %v3654
      %v3688 = vmul.f32 %v3435, %v3655
      %v3689 = vmul.f32 %v3437, %v3655
      %v3690 = vmul.f32 %v3439, %v3656
      %v3691 = vmul.f32 %v3441, %v3656
      %v3692 = vmul.f32 %v3443, %v3657
      %v3693 = vmul.f32 %v3445, %v3657
      %v3694 = vmul.f32 %v3447, %v3658
      %v3695 = vmul.f32 %v3449, %v3658
      %v3696 = vmul.f32 %v3451, %v3659
      %v3697 = vmul.f32 %v3453, %v3659
      %v3698 = vmul.f32 %v3455, %v3660
      %v3699 = vmul.f32 %v3457, %v3660
      %v3700 = vmul.f32 %v3459, %v3661
      %v3701 = vmul.f32 %v3461, %v3661
      %v3702 = vmul.f32 %v3463, %v3662
      %v3703 = vmul.f32 %v3465, %v3662
      %v3704 = vmul.f32 %v3467, %v3663
      %v3705 = vmul.f32 %v3469, %v3663
      %v3706 = vmul.f32 %v3471, %v3664
      %v3707 = vmul.f32 %v3473, %v3664
      %v3708 = vmul.f32 %v3475, %v3665
      %v3709 = vmul.f32 %v3477, %v3665
      %v3710 = vmul.f32 %v3479, %v3666
      %v3711 = vmul.f32 %v3481, %v3666
      %v3712 = vmul.f32 %v3483, %v3667
      %v3713 = vmul.f32 %v3485, %v3667
      %v3714 = vmul.f32 %v3487, %v3668
      %v3715 = vmul.f32 %v3489, %v3668
      %v3716 = vmul.f32 %v3491, %v3669
      %v3717 = vmul.f32 %v3493, %v3669
      %v3718 = vmul.f32 %v3495, %v3670
      %v3719 = vmul.f32 %v3497, %v3670
      %v3720 = vmul.f32 %v3499, %v3671
      %v3721 = vmul.f32 %v3501, %v3671
      %v3722 = vmul.f32 %v3503, %v3672
      %v3723 = vmul.f32 %v3505, %v3672
      %v3724 = vmul.f32 %v3507, %v3673
      %v3725 = vmul.f32 %v3509, %v3673
      %v3726 = vmul.f32 %v3511, %v3674
      %v3727 = vmul.f32 %v3513, %v3674
      %v3728 = vmul.f32 %v3515, %v3675
      %v3729 = vmul.f32 %v3517, %v3675
      %v3730 = vmul.f32 %v3519, %v3676
      %v3731 = vmul.f32 %v3521, %v3676
      %v3732 = vmul.f32 %v3523, %v3677
      %v3733 = vmul.f32 %v3525, %v3677
      %v3734 = vmul.f32 %v3527, %v3678
      %v3735 = vmul.f32 %v3529, %v3678
      %v3736 = vmul.f32 %v3531, %v3679
      %v3737 = vmul.f32 %v3533, %v3679
      %v3738 = vmul.f32 %v3535, %v3680
      %v3739 = vmul.f32 %v3537, %v3680
      %v3740 = vmul.f32 %v3539, %v3681
      %v3741 = vmul.f32 %v3541, %v3681
      %v3742 = vmul.f32 %v3543, %v3682
      %v3743 = vmul.f32 %v3545, %v3682
      %v3744 = vmul.f32 %v3547, %v3683
      %v3745 = vmul.f32 %v3549, %v3683
      %v3746 = vmul.f32 %v3551, %v3684
      %v3747 = vmul.f32 %v3553, %v3684
      %v3748 = vmul.f32 %v3555, %v3685
      %v3749 = vmul.f32 %v3557, %v3685
      %v3750 = vpack.c.bf16 %v3688, %v3686
      %v3751 = vpack.c.bf16 %v3689, %v3687
      %v3752 = vpack.c.bf16 %v3692, %v3690
      %v3753 = vpack.c.bf16 %v3693, %v3691
      %v3754 = vpack.c.bf16 %v3696, %v3694
      %v3755 = vpack.c.bf16 %v3697, %v3695
      %v3756 = vpack.c.bf16 %v3700, %v3698
      %v3757 = vpack.c.bf16 %v3701, %v3699
      %v3758 = vpack.c.bf16 %v3704, %v3702
      %v3759 = vpack.c.bf16 %v3705, %v3703
      %v3760 = vpack.c.bf16 %v3708, %v3706
      %v3761 = vpack.c.bf16 %v3709, %v3707
      %v3762 = vpack.c.bf16 %v3712, %v3710
      %v3763 = vpack.c.bf16 %v3713, %v3711
      %v3764 = vpack.c.bf16 %v3716, %v3714
      %v3765 = vpack.c.bf16 %v3717, %v3715
      %v3766 = vpack.c.bf16 %v3720, %v3718
      %v3767 = vpack.c.bf16 %v3721, %v3719
      %v3768 = vpack.c.bf16 %v3724, %v3722
      %v3769 = vpack.c.bf16 %v3725, %v3723
      %v3770 = vpack.c.bf16 %v3728, %v3726
      %v3771 = vpack.c.bf16 %v3729, %v3727
      %v3772 = vpack.c.bf16 %v3732, %v3730
      %v3773 = vpack.c.bf16 %v3733, %v3731
      %v3774 = vpack.c.bf16 %v3736, %v3734
      %v3775 = vpack.c.bf16 %v3737, %v3735
      %v3776 = vpack.c.bf16 %v3740, %v3738
      %v3777 = vpack.c.bf16 %v3741, %v3739
      %v3778 = vpack.c.bf16 %v3744, %v3742
      %v3779 = vpack.c.bf16 %v3745, %v3743
      %v3780 = vpack.c.bf16 %v3748, %v3746
      %v3781 = vpack.c.bf16 %v3749, %v3747
      %v3784 = vrot.slane %v2092, 2
      %v3785 = vrot.slane %v2093, 2
      %3788 = vmatprep.subr.bf16.mxu0 %v3765
      %3789 = vmatpush1.bf16.xpose.msra.mxu0 %v3764
      %3790 = vmatprep.subr.bf16.mxu0 %v3763
      %3791 = vmatpush1.bf16.xpose.msra.mxu0 %v3762
      %3792 = vmatprep.subr.bf16.mxu0 %v3761
      %3793 = vmatpush1.bf16.xpose.msra.mxu0 %v3760
      %3794 = vmatprep.subr.bf16.mxu0 %v3759
      %3795 = vmatpush1.bf16.xpose.msra.mxu0 %v3758
      %3796 = vmatprep.subr.bf16.mxu0 %v3757
      %3797 = vmatpush1.bf16.xpose.msra.mxu0 %v3756
      %3798 = vmatprep.subr.bf16.mxu0 %v3755
      %3799 = vmatpush1.bf16.xpose.msra.mxu0 %v3754
      %3800 = vmatprep.subr.bf16.mxu0 %v3753
      %3801 = vmatpush1.bf16.xpose.msra.mxu0 %v3752
      %3802 = vmatprep.subr.bf16.mxu0 %v3751
      %3803 = vmatpush1.bf16.xpose.msra.mxu0 %v3750
      %3804 = vmatprep.subr.bf16.mxu0 %v3781
      %3805 = vmatpush2.bf16.xpose.msra.mxu0 %v3780
      %3806 = vmatprep.subr.bf16.mxu0 %v3779
      %3807 = vmatpush2.bf16.xpose.msra.mxu0 %v3778
      %3808 = vmatprep.subr.bf16.mxu0 %v3777
      %3809 = vmatpush2.bf16.xpose.msra.mxu0 %v3776
      %3810 = vmatprep.subr.bf16.mxu0 %v3775
      %3811 = vmatpush2.bf16.xpose.msra.mxu0 %v3774
      %3812 = vmatprep.subr.bf16.mxu0 %v3773
      %3813 = vmatpush2.bf16.xpose.msra.mxu0 %v3772
      %3814 = vmatprep.subr.bf16.mxu0 %v3771
      %3815 = vmatpush2.bf16.xpose.msra.mxu0 %v3770
      %3816 = vmatprep.subr.bf16.mxu0 %v3769
      %3817 = vmatpush2.bf16.xpose.msra.mxu0 %v3768
      %3818 = vmatprep.subr.bf16.mxu0 %v3767
      %3819 = vmatpush2.bf16.xpose.msra.mxu0 %v3766
      %3820 = vmatprep.mubr.bf16.mxu0 %v3785
      %3821 = vmatmul.mubr.bf16.gmra.mxu0 %v3784
      %v3822 = vpop.f32.mrf.mxu0
      %v3823 = vadd.f32 0.0, %v3822
      %v3824 = vpop.f32.mrf.mxu0
      %v3825 = vadd.f32 0.0, %v3824
      %v3826 = vpop.f32.mrf.mxu0
      %v3827 = vpop.f32.mrf.mxu0
      %3828 = vdwg.mxu0
      %s3829 = scalar_lea.vmem %s57, 4
      %v3830 = vld [vmem:[%s3829] sm:$0xf]
      %v3831 = vpack.c.bf16 %v3823, %v3823
      %v3832 = vpack.c.bf16 %v3825, %v3825
      %v3834 = vsel %vm976, %v3830, 0
      %v3837 = vsel %vm1350, %v3831, 0
      %v3840 = vsel %vm1350, %v3832, 0
      %3842 = vmatprep.subr.bf16.mxu0 0
      %3843 = vmatpush1.bf16.msra.mxu0 0
      %3844 = vmatprep.subr.bf16.mxu0 0
      %3845 = vmatpush1.bf16.msra.mxu0 0
      %3846 = vmatprep.subr.bf16.mxu0 0
      %3847 = vmatpush1.bf16.msra.mxu0 0
      %3848 = vmatprep.subr.bf16.mxu0 0
      %3849 = vmatpush1.bf16.msra.mxu0 0
      %3850 = vmatprep.subr.bf16.mxu0 0
      %3851 = vmatpush1.bf16.msra.mxu0 0
      %3852 = vmatprep.subr.bf16.mxu0 0
      %3853 = vmatpush1.bf16.msra.mxu0 0
      %3854 = vmatprep.subr.bf16.mxu0 0
      %3855 = vmatpush1.bf16.msra.mxu0 0
      %3856 = vmatprep.subr.bf16.mxu0 %v3840
      %3857 = vmatpush1.bf16.msra.mxu0 %v3837
      %3858 = vmatprep.subr.bf16.mxu0 0
      %3859 = vmatpush2.bf16.msra.mxu0 0
      %3860 = vmatprep.subr.bf16.mxu0 0
      %3861 = vmatpush2.bf16.msra.mxu0 0
      %3862 = vmatprep.subr.bf16.mxu0 0
      %3863 = vmatpush2.bf16.msra.mxu0 0
      %3864 = vmatprep.subr.bf16.mxu0 0
      %3865 = vmatpush2.bf16.msra.mxu0 0
      %3866 = vmatprep.subr.bf16.mxu0 0
      %3867 = vmatpush2.bf16.msra.mxu0 0
      %3868 = vmatprep.subr.bf16.mxu0 0
      %3869 = vmatpush2.bf16.msra.mxu0 0
      %3870 = vmatprep.subr.bf16.mxu0 0
      %3871 = vmatpush2.bf16.msra.mxu0 0
      %3872 = vmatprep.subr.bf16.mxu0 0
      %3873 = vmatpush2.bf16.msra.mxu0 0
      %3874 = vmatprep.mubr.bf16.mxu0 0
      %3875 = vmatmul.mubr.bf16.gmra.mxu0 %v3834
      %v3876 = vpop.f32.mrf.mxu0
      %v3877 = vadd.f32 0.0, %v3876
      %v3878 = vpop.f32.mrf.mxu0
      %v3879 = vadd.f32 0.0, %v3878
      %v3880 = vpop.f32.mrf.mxu0
      %v3881 = vpop.f32.mrf.mxu0
      %3882 = vdwg.mxu0
      %v3883 = vadd.f32 %v2979, %v3877
      %v3884 = vadd.f32 %v2980, %v3879
      %s3885 = scalar_lea.vmem %s945, 8
      %v3886 = vld [vmem:[%s3885] sm:$0xff]
      %v3887 = vld [vmem:[%s29] sm:$0xff]
      %v3888 = vld [vmem:[%s31] sm:$0xff]
      %v3889 = vadd.f32 %v3883, %v3884
      %3890 = vadd.xlane.f32.xlu0 %v3889
      %v3891 = vpop.xlane.xlu0 %3890
      %v3892 = vmul.f32 %v3883, %v3883
      %v3893 = vmul.f32 %v3884, %v3884
      %v3894 = vadd.f32 %v3892, %v3893
      %3895 = vadd.xlane.f32.xlu0 %v3894
      %v3896 = vpop.xlane.xlu0 %3895
      %3897 = vmatprep.subr.mxu0 0.0
      %3898 = vmatpush1.msra.mxu0 0.0
      %3899 = vmatprep.subr.mxu0 0.0
      %3900 = vmatpush1.msra.mxu0 0.0
      %3901 = vmatprep.subr.mxu0 0.0
      %3902 = vmatpush1.msra.mxu0 0.0
      %3903 = vmatprep.subr.mxu0 0.0
      %3904 = vmatpush1.msra.mxu0 0.0
      %3905 = vmatprep.subr.mxu0 0.0
      %3906 = vmatpush1.msra.mxu0 0.0
      %3907 = vmatprep.subr.mxu0 0.0
      %3908 = vmatpush1.msra.mxu0 0.0
      %3909 = vmatprep.subr.mxu0 0.0
      %3910 = vmatpush1.msra.mxu0 0.0
      %3911 = vmatprep.subr.mxu0 0.0
      %3912 = vmatpush1.msra.mxu0 0.0
      %3913 = vmatprep.subr.mxu0 0.0
      %3914 = vmatpush1.msra.mxu0 0.0
      %3915 = vmatprep.subr.mxu0 0.0
      %3916 = vmatpush1.msra.mxu0 0.0
      %3917 = vmatprep.subr.mxu0 0.0
      %3918 = vmatpush1.msra.mxu0 0.0
      %3919 = vmatprep.subr.mxu0 0.0
      %3920 = vmatpush1.msra.mxu0 0.0
      %3921 = vmatprep.subr.mxu0 0.0
      %3922 = vmatpush1.msra.mxu0 0.0
      %3923 = vmatprep.subr.mxu0 0.0
      %3924 = vmatpush1.msra.mxu0 0.0
      %3925 = vmatprep.subr.mxu0 0.0
      %3926 = vmatpush1.msra.mxu0 0.0
      %3927 = vmatprep.subr.mxu0 0.0
      %3928 = vmatpush1.msra.mxu0 %v3891
      %3929 = vmatprep.subr.mxu0 0.0
      %3930 = vmatpush2.msra.mxu0 0.0
      %3931 = vmatprep.subr.mxu0 0.0
      %3932 = vmatpush2.msra.mxu0 0.0
      %3933 = vmatprep.subr.mxu0 0.0
      %3934 = vmatpush2.msra.mxu0 0.0
      %3935 = vmatprep.subr.mxu0 0.0
      %3936 = vmatpush2.msra.mxu0 0.0
      %3937 = vmatprep.subr.mxu0 0.0
      %3938 = vmatpush2.msra.mxu0 0.0
      %3939 = vmatprep.subr.mxu0 0.0
      %3940 = vmatpush2.msra.mxu0 0.0
      %3941 = vmatprep.subr.mxu0 0.0
      %3942 = vmatpush2.msra.mxu0 0.0
      %3943 = vmatprep.subr.mxu0 0.0
      %3944 = vmatpush2.msra.mxu0 0.0
      %3945 = vmatprep.subr.mxu0 0.0
      %3946 = vmatpush2.msra.mxu0 0.0
      %3947 = vmatprep.subr.mxu0 0.0
      %3948 = vmatpush2.msra.mxu0 0.0
      %3949 = vmatprep.subr.mxu0 0.0
      %3950 = vmatpush2.msra.mxu0 0.0
      %3951 = vmatprep.subr.mxu0 0.0
      %3952 = vmatpush2.msra.mxu0 0.0
      %3953 = vmatprep.subr.mxu0 0.0
      %3954 = vmatpush2.msra.mxu0 0.0
      %3955 = vmatprep.subr.mxu0 0.0
      %3956 = vmatpush2.msra.mxu0 0.0
      %3957 = vmatprep.subr.mxu0 0.0
      %3958 = vmatpush2.msra.mxu0 0.0
      %3959 = vmatprep.subr.mxu0 0.0
      %3960 = vmatpush2.msra.mxu0 0.0
      %3961 = vmatprep.mubr.f32.mxu0 0.0
      %3962 = vmatmul.mubr.f32.gmra.mxu0 %v1417
      %v3963 = vpop.f32.mrf.mxu0
      %v3964 = vadd.f32 0.0, %v3963
      %v3965 = vpop.f32.mrf.mxu0
      %3966 = vdwg.mxu0
      %v3967 = vmul.f32 %v3964, 0.001953125
      %3968 = vmatprep.subr.mxu0 0.0
      %3969 = vmatpush1.msra.mxu0 0.0
      %3970 = vmatprep.subr.mxu0 0.0
      %3971 = vmatpush1.msra.mxu0 0.0
      %3972 = vmatprep.subr.mxu0 0.0
      %3973 = vmatpush1.msra.mxu0 0.0
      %3974 = vmatprep.subr.mxu0 0.0
      %3975 = vmatpush1.msra.mxu0 0.0
      %3976 = vmatprep.subr.mxu0 0.0
      %3977 = vmatpush1.msra.mxu0 0.0
      %3978 = vmatprep.subr.mxu0 0.0
      %3979 = vmatpush1.msra.mxu0 0.0
      %3980 = vmatprep.subr.mxu0 0.0
      %3981 = vmatpush1.msra.mxu0 0.0
      %3982 = vmatprep.subr.mxu0 0.0
      %3983 = vmatpush1.msra.mxu0 0.0
      %3984 = vmatprep.subr.mxu0 0.0
      %3985 = vmatpush1.msra.mxu0 0.0
      %3986 = vmatprep.subr.mxu0 0.0
      %3987 = vmatpush1.msra.mxu0 0.0
      %3988 = vmatprep.subr.mxu0 0.0
      %3989 = vmatpush1.msra.mxu0 0.0
      %3990 = vmatprep.subr.mxu0 0.0
      %3991 = vmatpush1.msra.mxu0 0.0
      %3992 = vmatprep.subr.mxu0 0.0
      %3993 = vmatpush1.msra.mxu0 0.0
      %3994 = vmatprep.subr.mxu0 0.0
      %3995 = vmatpush1.msra.mxu0 0.0
      %3996 = vmatprep.subr.mxu0 0.0
      %3997 = vmatpush1.msra.mxu0 0.0
      %3998 = vmatprep.subr.mxu0 0.0
      %3999 = vmatpush1.msra.mxu0 %v3896
      %4000 = vmatprep.subr.mxu0 0.0
      %4001 = vmatpush2.msra.mxu0 0.0
      %4002 = vmatprep.subr.mxu0 0.0
      %4003 = vmatpush2.msra.mxu0 0.0
      %4004 = vmatprep.subr.mxu0 0.0
      %4005 = vmatpush2.msra.mxu0 0.0
      %4006 = vmatprep.subr.mxu0 0.0
      %4007 = vmatpush2.msra.mxu0 0.0
      %4008 = vmatprep.subr.mxu0 0.0
      %4009 = vmatpush2.msra.mxu0 0.0
      %4010 = vmatprep.subr.mxu0 0.0
      %4011 = vmatpush2.msra.mxu0 0.0
      %4012 = vmatprep.subr.mxu0 0.0
      %4013 = vmatpush2.msra.mxu0 0.0
      %4014 = vmatprep.subr.mxu0 0.0
      %4015 = vmatpush2.msra.mxu0 0.0
      %4016 = vmatprep.subr.mxu0 0.0
      %4017 = vmatpush2.msra.mxu0 0.0
      %4018 = vmatprep.subr.mxu0 0.0
      %4019 = vmatpush2.msra.mxu0 0.0
      %4020 = vmatprep.subr.mxu0 0.0
      %4021 = vmatpush2.msra.mxu0 0.0
      %4022 = vmatprep.subr.mxu0 0.0
      %4023 = vmatpush2.msra.mxu0 0.0
      %4024 = vmatprep.subr.mxu0 0.0
      %4025 = vmatpush2.msra.mxu0 0.0
      %4026 = vmatprep.subr.mxu0 0.0
      %4027 = vmatpush2.msra.mxu0 0.0
      %4028 = vmatprep.subr.mxu0 0.0
      %4029 = vmatpush2.msra.mxu0 0.0
      %4030 = vmatprep.subr.mxu0 0.0
      %4031 = vmatpush2.msra.mxu0 0.0
      %4032 = vmatprep.mubr.f32.mxu0 0.0
      %4033 = vmatmul.mubr.f32.gmra.mxu0 %v1417
      %v4034 = vpop.f32.mrf.mxu0
      %v4035 = vadd.f32 0.0, %v4034
      %v4036 = vpop.f32.mrf.mxu0
      %4037 = vdwg.mxu0
      %v4038 = vmul.f32 %v4035, 0.001953125
      %v4039 = vmul.f32 %v3967, %v3967
      %v4040 = vsub.f32 %v4038, %v4039
      %v4041 = vadd.f32 %v4040, 1e-05
      %v4042 = vrsqrt.pop %v4041
      %4044 = vset.pattern.permute.xlu0 0
      %4045 = vperm.xlu0 %4044, %v3967
      %v4046 = vpop.permute.xlu0 %4045
      %v4048 = vsub.f32 %v3883, %v4046
      %v4049 = vsub.f32 %v3884, %v4046
      %v4050 = vmul.f32 %v4042, %v3887
      %4052 = vset.pattern.permute.xlu0 0
      %4053 = vperm.xlu0 %4052, %v4050
      %v4054 = vpop.permute.xlu0 %4053
      %v4056 = vmul.f32 %v4048, %v4054
      %v4057 = vmul.f32 %v4049, %v4054
      %4059 = vset.pattern.permute.xlu0 0
      %4060 = vperm.xlu0 %4059, %v3888
      %v4061 = vpop.permute.xlu0 %4060
      %v4063 = vadd.f32 %v4056, %v4061
      %v4064 = vadd.f32 %v4057, %v4061
      %v4065 = vxor.u32 %v4063, 2147483648
      %v4066 = vxor.u32 %v4064, 2147483648
      %v4067 = vmul.f32 %v4065, 1.442695
      %v4068 = vpow.pop %v4067
      %v4069 = vmul.f32 %v4066, 1.442695
      %v4070 = vpow.pop %v4069
      %v4071 = vadd.f32 %v4068, 1.0
      %v4072 = vadd.f32 %v4070, 1.0
      %v4073 = vrcp.pop %v4071
      %v4074 = vmul.f32 1.0, %v4073
      %v4075 = vrcp.pop %v4072
      %v4076 = vmul.f32 1.0, %v4075
      %v4077 = vmul.f32 %v4063, %v4074
      %v4078 = vmul.f32 %v4064, %v4076
      %v4079 = vld [vmem:[%s33] sm:$0xf]
      %4082 = vrot.lane.b32.xlu0 %v4077, 17
      %v4083 = vpop.permute.xlu0 %4082
      %4084 = vrot.lane.b32.xlu0 %v4078, 17
      %v4085 = vpop.permute.xlu0 %4084
      %v4086 = vsel %vm1217, %v4083, %v4085
      %v4089 = vsel %vm1217, 0.0, %v4083
      %v4090 = vsel %vm1224, %v4089, 0.0
      %v4091 = vsel %vm1225, %v4086, 0.0
      %4092 = vrot.lane.b32.xlu0 %v4077, 16
      %v4093 = vpop.permute.xlu0 %4092
      %4094 = vrot.lane.b32.xlu0 %v4078, 16
      %v4095 = vpop.permute.xlu0 %4094
      %v4096 = vsel %vm1232, %v4093, %v4095
      %v4099 = vsel %vm1232, 0.0, %v4093
      %4100 = vrot.lane.b32.xlu0 %v4077, 15
      %v4101 = vpop.permute.xlu0 %4100
      %4102 = vrot.lane.b32.xlu0 %v4078, 15
      %v4103 = vpop.permute.xlu0 %4102
      %v4104 = vsel %vm1240, %v4101, %v4103
      %v4107 = vsel %vm1240, 0.0, %v4101
      %v4108 = vsel %vm1247, %v4107, 0.0
      %v4109 = vsel %vm1248, %v4104, 0.0
      %4110 = vrot.lane.b32.xlu0 %v4077, 1
      %v4111 = vpop.permute.xlu0 %4110
      %4112 = vrot.lane.b32.xlu0 %v4078, 1
      %v4113 = vpop.permute.xlu0 %4112
      %v4114 = vsel %vm1255, %v4111, %v4113
      %v4117 = vsel %vm1255, 0.0, %v4111
      %v4118 = vsel %vm1224, %v4117, 0.0
      %v4119 = vsel %vm1225, %v4114, 0.0
      %4120 = vrot.lane.b32.xlu0 %v4077, 127
      %v4121 = vpop.permute.xlu0 %4120
      %4122 = vrot.lane.b32.xlu0 %v4078, 127
      %v4123 = vpop.permute.xlu0 %4122
      %v4124 = vsel %vm1266, %v4121, %v4123
      %v4127 = vsel %vm1266, %v4123, 0.0
      %v4128 = vsel %vm1247, %v4124, 0.0
      %v4129 = vsel %vm1248, %v4127, 0.0
      %4130 = vrot.lane.b32.xlu0 %v4077, 113
      %v4131 = vpop.permute.xlu0 %4130
      %4132 = vrot.lane.b32.xlu0 %v4078, 113
      %v4133 = vpop.permute.xlu0 %4132
      %v4134 = vsel %vm1277, %v4131, %v4133
      %v4137 = vsel %vm1277, %v4133, 0.0
      %v4138 = vsel %vm1224, %v4134, 0.0
      %v4139 = vsel %vm1225, %v4137, 0.0
      %4140 = vrot.lane.b32.xlu0 %v4077, 112
      %v4141 = vpop.permute.xlu0 %4140
      %4142 = vrot.lane.b32.xlu0 %v4078, 112
      %v4143 = vpop.permute.xlu0 %4142
      %v4144 = vsel %vm1288, %v4141, %v4143
      %v4147 = vsel %vm1288, %v4143, 0.0
      %4148 = vrot.lane.b32.xlu0 %v4077, 111
      %v4149 = vpop.permute.xlu0 %4148
      %4150 = vrot.lane.b32.xlu0 %v4078, 111
      %v4151 = vpop.permute.xlu0 %4150
      %v4152 = vsel %vm1296, %v4149, %v4151
      %v4155 = vsel %vm1296, %v4151, 0.0
      %v4156 = vsel %vm1247, %v4152, 0.0
      %v4157 = vsel %vm1248, %v4155, 0.0
      %v4158 = vpack.c.bf16 %v4099, %v4090
      %v4159 = vpack.c.bf16 %v4096, %v4091
      %v4160 = vpack.c.bf16 %v4118, %v4108
      %v4161 = vpack.c.bf16 %v4119, %v4109
      %v4162 = vpack.c.bf16 %v4128, %v4077
      %v4163 = vpack.c.bf16 %v4129, %v4078
      %v4164 = vpack.c.bf16 %v4144, %v4138
      %v4165 = vpack.c.bf16 %v4147, %v4139
      %v4166 = vpack.c.bf16 %v4156, %v4156
      %v4167 = vpack.c.bf16 %v4157, %v4157
      %v4168 = vld [vmem:[%s35] sm:$0xff]
      %4170 = vset.pattern.permute.xlu0 0
      %4171 = vperm.xlu0 %4170, %v4168
      %v4172 = vpop.permute.xlu0 %4171
      %v4175 = vsel %vm1696, %v4079, 0
      %v4178 = vsel %vm961, %v4166, 0
      %v4181 = vsel %vm961, %v4167, 0
      %4183 = vmatprep.subr.bf16.mxu0 0
      %4184 = vmatpush1.bf16.msra.mxu0 0
      %4185 = vmatprep.subr.bf16.mxu0 0
      %4186 = vmatpush1.bf16.msra.mxu0 0
      %4187 = vmatprep.subr.bf16.mxu0 0
      %4188 = vmatpush1.bf16.msra.mxu0 0
      %4189 = vmatprep.subr.bf16.mxu0 %v4181
      %4190 = vmatpush1.bf16.msra.mxu0 %v4178
      %4191 = vmatprep.subr.bf16.mxu0 %v4165
      %4192 = vmatpush1.bf16.msra.mxu0 %v4164
      %4193 = vmatprep.subr.bf16.mxu0 %v4163
      %4194 = vmatpush1.bf16.msra.mxu0 %v4162
      %4195 = vmatprep.subr.bf16.mxu0 %v4161
      %4196 = vmatpush1.bf16.msra.mxu0 %v4160
      %4197 = vmatprep.subr.bf16.mxu0 %v4159
      %4198 = vmatpush1.bf16.msra.mxu0 %v4158
      %4199 = vmatprep.subr.bf16.mxu0 0
      %4200 = vmatpush2.bf16.msra.mxu0 0
      %4201 = vmatprep.subr.bf16.mxu0 0
      %4202 = vmatpush2.bf16.msra.mxu0 0
      %4203 = vmatprep.subr.bf16.mxu0 0
      %4204 = vmatpush2.bf16.msra.mxu0 0
      %4205 = vmatprep.subr.bf16.mxu0 0
      %4206 = vmatpush2.bf16.msra.mxu0 0
      %4207 = vmatprep.subr.bf16.mxu0 0
      %4208 = vmatpush2.bf16.msra.mxu0 0
      %4209 = vmatprep.subr.bf16.mxu0 0
      %4210 = vmatpush2.bf16.msra.mxu0 0
      %4211 = vmatprep.subr.bf16.mxu0 0
      %4212 = vmatpush2.bf16.msra.mxu0 0
      %4213 = vmatprep.subr.bf16.mxu0 0
      %4214 = vmatpush2.bf16.msra.mxu0 0
      %4215 = vmatprep.mubr.bf16.mxu0 0
      %4216 = vmatmul.mubr.bf16.gmra.mxu0 %v4175
      %v4217 = vpop.f32.mrf.mxu0
      %v4218 = vadd.f32 %v4172, %v4217
      %v4219 = vpop.f32.mrf.mxu0
      %v4220 = vadd.f32 %v4172, %v4219
      %v4221 = vpop.f32.mrf.mxu0
      %v4222 = vpop.f32.mrf.mxu0
      %4223 = vdwg.mxu0
      %4225 = vset.pattern.permute.xlu0 0
      %4226 = vperm.xlu0 %4225, %v3886
      %v4227 = vpop.permute.xlu0 %4226
      %v4229 = vadd.f32 %v4218, %v4227
      %v4230 = vadd.f32 %v4220, %v4227
      %v4231 = vld [vmem:[%s37] sm:$0xff]
      %v4232 = vld [vmem:[%s39] sm:$0xff]
      %v4233 = vadd.f32 %v4229, %v4230
      %4234 = vadd.xlane.f32.xlu0 %v4233
      %v4235 = vpop.xlane.xlu0 %4234
      %v4236 = vmul.f32 %v4229, %v4229
      %v4237 = vmul.f32 %v4230, %v4230
      %v4238 = vadd.f32 %v4236, %v4237
      %4239 = vadd.xlane.f32.xlu0 %v4238
      %v4240 = vpop.xlane.xlu0 %4239
      %4241 = vmatprep.subr.mxu0 0.0
      %4242 = vmatpush1.msra.mxu0 0.0
      %4243 = vmatprep.subr.mxu0 0.0
      %4244 = vmatpush1.msra.mxu0 0.0
      %4245 = vmatprep.subr.mxu0 0.0
      %4246 = vmatpush1.msra.mxu0 0.0
      %4247 = vmatprep.subr.mxu0 0.0
      %4248 = vmatpush1.msra.mxu0 0.0
      %4249 = vmatprep.subr.mxu0 0.0
      %4250 = vmatpush1.msra.mxu0 0.0
      %4251 = vmatprep.subr.mxu0 0.0
      %4252 = vmatpush1.msra.mxu0 0.0
      %4253 = vmatprep.subr.mxu0 0.0
      %4254 = vmatpush1.msra.mxu0 0.0
      %4255 = vmatprep.subr.mxu0 0.0
      %4256 = vmatpush1.msra.mxu0 0.0
      %4257 = vmatprep.subr.mxu0 0.0
      %4258 = vmatpush1.msra.mxu0 0.0
      %4259 = vmatprep.subr.mxu0 0.0
      %4260 = vmatpush1.msra.mxu0 0.0
      %4261 = vmatprep.subr.mxu0 0.0
      %4262 = vmatpush1.msra.mxu0 0.0
      %4263 = vmatprep.subr.mxu0 0.0
      %4264 = vmatpush1.msra.mxu0 0.0
      %4265 = vmatprep.subr.mxu0 0.0
      %4266 = vmatpush1.msra.mxu0 0.0
      %4267 = vmatprep.subr.mxu0 0.0
      %4268 = vmatpush1.msra.mxu0 0.0
      %4269 = vmatprep.subr.mxu0 0.0
      %4270 = vmatpush1.msra.mxu0 0.0
      %4271 = vmatprep.subr.mxu0 0.0
      %4272 = vmatpush1.msra.mxu0 %v4235
      %4273 = vmatprep.subr.mxu0 0.0
      %4274 = vmatpush2.msra.mxu0 0.0
      %4275 = vmatprep.subr.mxu0 0.0
      %4276 = vmatpush2.msra.mxu0 0.0
      %4277 = vmatprep.subr.mxu0 0.0
      %4278 = vmatpush2.msra.mxu0 0.0
      %4279 = vmatprep.subr.mxu0 0.0
      %4280 = vmatpush2.msra.mxu0 0.0
      %4281 = vmatprep.subr.mxu0 0.0
      %4282 = vmatpush2.msra.mxu0 0.0
      %4283 = vmatprep.subr.mxu0 0.0
      %4284 = vmatpush2.msra.mxu0 0.0
      %4285 = vmatprep.subr.mxu0 0.0
      %4286 = vmatpush2.msra.mxu0 0.0
      %4287 = vmatprep.subr.mxu0 0.0
      %4288 = vmatpush2.msra.mxu0 0.0
      %4289 = vmatprep.subr.mxu0 0.0
      %4290 = vmatpush2.msra.mxu0 0.0
      %4291 = vmatprep.subr.mxu0 0.0
      %4292 = vmatpush2.msra.mxu0 0.0
      %4293 = vmatprep.subr.mxu0 0.0
      %4294 = vmatpush2.msra.mxu0 0.0
      %4295 = vmatprep.subr.mxu0 0.0
      %4296 = vmatpush2.msra.mxu0 0.0
      %4297 = vmatprep.subr.mxu0 0.0
      %4298 = vmatpush2.msra.mxu0 0.0
      %4299 = vmatprep.subr.mxu0 0.0
      %4300 = vmatpush2.msra.mxu0 0.0
      %4301 = vmatprep.subr.mxu0 0.0
      %4302 = vmatpush2.msra.mxu0 0.0
      %4303 = vmatprep.subr.mxu0 0.0
      %4304 = vmatpush2.msra.mxu0 0.0
      %4305 = vmatprep.mubr.f32.mxu0 0.0
      %4306 = vmatmul.mubr.f32.gmra.mxu0 %v1417
      %v4307 = vpop.f32.mrf.mxu0
      %v4308 = vadd.f32 0.0, %v4307
      %v4309 = vpop.f32.mrf.mxu0
      %4310 = vdwg.mxu0
      %v4311 = vmul.f32 %v4308, 0.001953125
      %4312 = vmatprep.subr.mxu0 0.0
      %4313 = vmatpush1.msra.mxu0 0.0
      %4314 = vmatprep.subr.mxu0 0.0
      %4315 = vmatpush1.msra.mxu0 0.0
      %4316 = vmatprep.subr.mxu0 0.0
      %4317 = vmatpush1.msra.mxu0 0.0
      %4318 = vmatprep.subr.mxu0 0.0
      %4319 = vmatpush1.msra.mxu0 0.0
      %4320 = vmatprep.subr.mxu0 0.0
      %4321 = vmatpush1.msra.mxu0 0.0
      %4322 = vmatprep.subr.mxu0 0.0
      %4323 = vmatpush1.msra.mxu0 0.0
      %4324 = vmatprep.subr.mxu0 0.0
      %4325 = vmatpush1.msra.mxu0 0.0
      %4326 = vmatprep.subr.mxu0 0.0
      %4327 = vmatpush1.msra.mxu0 0.0
      %4328 = vmatprep.subr.mxu0 0.0
      %4329 = vmatpush1.msra.mxu0 0.0
      %4330 = vmatprep.subr.mxu0 0.0
      %4331 = vmatpush1.msra.mxu0 0.0
      %4332 = vmatprep.subr.mxu0 0.0
      %4333 = vmatpush1.msra.mxu0 0.0
      %4334 = vmatprep.subr.mxu0 0.0
      %4335 = vmatpush1.msra.mxu0 0.0
      %4336 = vmatprep.subr.mxu0 0.0
      %4337 = vmatpush1.msra.mxu0 0.0
      %4338 = vmatprep.subr.mxu0 0.0
      %4339 = vmatpush1.msra.mxu0 0.0
      %4340 = vmatprep.subr.mxu0 0.0
      %4341 = vmatpush1.msra.mxu0 0.0
      %4342 = vmatprep.subr.mxu0 0.0
      %4343 = vmatpush1.msra.mxu0 %v4240
      %4344 = vmatprep.subr.mxu0 0.0
      %4345 = vmatpush2.msra.mxu0 0.0
      %4346 = vmatprep.subr.mxu0 0.0
      %4347 = vmatpush2.msra.mxu0 0.0
      %4348 = vmatprep.subr.mxu0 0.0
      %4349 = vmatpush2.msra.mxu0 0.0
      %4350 = vmatprep.subr.mxu0 0.0
      %4351 = vmatpush2.msra.mxu0 0.0
      %4352 = vmatprep.subr.mxu0 0.0
      %4353 = vmatpush2.msra.mxu0 0.0
      %4354 = vmatprep.subr.mxu0 0.0
      %4355 = vmatpush2.msra.mxu0 0.0
      %4356 = vmatprep.subr.mxu0 0.0
      %4357 = vmatpush2.msra.mxu0 0.0
      %4358 = vmatprep.subr.mxu0 0.0
      %4359 = vmatpush2.msra.mxu0 0.0
      %4360 = vmatprep.subr.mxu0 0.0
      %4361 = vmatpush2.msra.mxu0 0.0
      %4362 = vmatprep.subr.mxu0 0.0
      %4363 = vmatpush2.msra.mxu0 0.0
      %4364 = vmatprep.subr.mxu0 0.0
      %4365 = vmatpush2.msra.mxu0 0.0
      %4366 = vmatprep.subr.mxu0 0.0
      %4367 = vmatpush2.msra.mxu0 0.0
      %4368 = vmatprep.subr.mxu0 0.0
      %4369 = vmatpush2.msra.mxu0 0.0
      %4370 = vmatprep.subr.mxu0 0.0
      %4371 = vmatpush2.msra.mxu0 0.0
      %4372 = vmatprep.subr.mxu0 0.0
      %4373 = vmatpush2.msra.mxu0 0.0
      %4374 = vmatprep.subr.mxu0 0.0
      %4375 = vmatpush2.msra.mxu0 0.0
      %4376 = vmatprep.mubr.f32.mxu0 0.0
      %4377 = vmatmul.mubr.f32.gmra.mxu0 %v1417
      %v4378 = vpop.f32.mrf.mxu0
      %v4379 = vadd.f32 0.0, %v4378
      %v4380 = vpop.f32.mrf.mxu0
      %4381 = vdwg.mxu0
      %v4382 = vmul.f32 %v4379, 0.001953125
      %v4383 = vmul.f32 %v4311, %v4311
      %v4384 = vsub.f32 %v4382, %v4383
      %v4385 = vadd.f32 %v4384, 1e-05
      %v4386 = vrsqrt.pop %v4385
      %4388 = vset.pattern.permute.xlu0 0
      %4389 = vperm.xlu0 %4388, %v4311
      %v4390 = vpop.permute.xlu0 %4389
      %v4392 = vsub.f32 %v4229, %v4390
      %v4393 = vsub.f32 %v4230, %v4390
      %v4394 = vmul.f32 %v4386, %v4231
      %4396 = vset.pattern.permute.xlu0 0
      %4397 = vperm.xlu0 %4396, %v4394
      %v4398 = vpop.permute.xlu0 %4397
      %v4400 = vmul.f32 %v4392, %v4398
      %v4401 = vmul.f32 %v4393, %v4398
      %4403 = vset.pattern.permute.xlu0 0
      %4404 = vperm.xlu0 %4403, %v4232
      %v4405 = vpop.permute.xlu0 %4404
      %v4407 = vadd.f32 %v4400, %v4405
      %v4408 = vadd.f32 %v4401, %v4405
      %v4409 = vxor.u32 %v4407, 2147483648
      %v4410 = vxor.u32 %v4408, 2147483648
      %v4411 = vmul.f32 %v4409, 1.442695
      %v4412 = vpow.pop %v4411
      %v4413 = vmul.f32 %v4410, 1.442695
      %v4414 = vpow.pop %v4413
      %v4415 = vadd.f32 %v4412, 1.0
      %v4416 = vadd.f32 %v4414, 1.0
      %v4417 = vrcp.pop %v4415
      %v4418 = vmul.f32 1.0, %v4417
      %v4419 = vrcp.pop %v4416
      %v4420 = vmul.f32 1.0, %v4419
      %v4421 = vmul.f32 %v4407, %v4418
      %v4422 = vmul.f32 %v4408, %v4420
      %v4423 = vld [vmem:[%s41] sm:$0xf]
      %4426 = vrot.lane.b32.xlu0 %v4421, 17
      %v4427 = vpop.permute.xlu0 %4426
      %4428 = vrot.lane.b32.xlu0 %v4422, 17
      %v4429 = vpop.permute.xlu0 %4428
      %v4430 = vsel %vm1217, %v4427, %v4429
      %v4433 = vsel %vm1217, 0.0, %v4427
      %v4434 = vsel %vm1224, %v4433, 0.0
      %v4435 = vsel %vm1225, %v4430, 0.0
      %4436 = vrot.lane.b32.xlu0 %v4421, 16
      %v4437 = vpop.permute.xlu0 %4436
      %4438 = vrot.lane.b32.xlu0 %v4422, 16
      %v4439 = vpop.permute.xlu0 %4438
      %v4440 = vsel %vm1232, %v4437, %v4439
      %v4443 = vsel %vm1232, 0.0, %v4437
      %4444 = vrot.lane.b32.xlu0 %v4421, 15
      %v4445 = vpop.permute.xlu0 %4444
      %4446 = vrot.lane.b32.xlu0 %v4422, 15
      %v4447 = vpop.permute.xlu0 %4446
      %v4448 = vsel %vm1240, %v4445, %v4447
      %v4451 = vsel %vm1240, 0.0, %v4445
      %v4452 = vsel %vm1247, %v4451, 0.0
      %v4453 = vsel %vm1248, %v4448, 0.0
      %4454 = vrot.lane.b32.xlu0 %v4421, 1
      %v4455 = vpop.permute.xlu0 %4454
      %4456 = vrot.lane.b32.xlu0 %v4422, 1
      %v4457 = vpop.permute.xlu0 %4456
      %v4458 = vsel %vm1255, %v4455, %v4457
      %v4461 = vsel %vm1255, 0.0, %v4455
      %v4462 = vsel %vm1224, %v4461, 0.0
      %v4463 = vsel %vm1225, %v4458, 0.0
      %4464 = vrot.lane.b32.xlu0 %v4421, 127
      %v4465 = vpop.permute.xlu0 %4464
      %4466 = vrot.lane.b32.xlu0 %v4422, 127
      %v4467 = vpop.permute.xlu0 %4466
      %v4468 = vsel %vm1266, %v4465, %v4467
      %v4471 = vsel %vm1266, %v4467, 0.0
      %v4472 = vsel %vm1247, %v4468, 0.0
      %v4473 = vsel %vm1248, %v4471, 0.0
      %4474 = vrot.lane.b32.xlu0 %v4421, 113
      %v4475 = vpop.permute.xlu0 %4474
      %4476 = vrot.lane.b32.xlu0 %v4422, 113
      %v4477 = vpop.permute.xlu0 %4476
      %v4478 = vsel %vm1277, %v4475, %v4477
      %v4481 = vsel %vm1277, %v4477, 0.0
      %v4482 = vsel %vm1224, %v4478, 0.0
      %v4483 = vsel %vm1225, %v4481, 0.0
      %4484 = vrot.lane.b32.xlu0 %v4421, 112
      %v4485 = vpop.permute.xlu0 %4484
      %4486 = vrot.lane.b32.xlu0 %v4422, 112
      %v4487 = vpop.permute.xlu0 %4486
      %v4488 = vsel %vm1288, %v4485, %v4487
      %v4491 = vsel %vm1288, %v4487, 0.0
      %4492 = vrot.lane.b32.xlu0 %v4421, 111
      %v4493 = vpop.permute.xlu0 %4492
      %4494 = vrot.lane.b32.xlu0 %v4422, 111
      %v4495 = vpop.permute.xlu0 %4494
      %v4496 = vsel %vm1296, %v4493, %v4495
      %v4499 = vsel %vm1296, %v4495, 0.0
      %v4500 = vsel %vm1247, %v4496, 0.0
      %v4501 = vsel %vm1248, %v4499, 0.0
      %v4502 = vpack.c.bf16 %v4443, %v4434
      %v4503 = vpack.c.bf16 %v4440, %v4435
      %v4504 = vpack.c.bf16 %v4462, %v4452
      %v4505 = vpack.c.bf16 %v4463, %v4453
      %v4506 = vpack.c.bf16 %v4472, %v4421
      %v4507 = vpack.c.bf16 %v4473, %v4422
      %v4508 = vpack.c.bf16 %v4488, %v4482
      %v4509 = vpack.c.bf16 %v4491, %v4483
      %v4510 = vpack.c.bf16 %v4500, %v4500
      %v4511 = vpack.c.bf16 %v4501, %v4501
      %v4512 = vld [vmem:[%s43] sm:$0xff]
      %4514 = vset.pattern.permute.xlu0 0
      %4515 = vperm.xlu0 %4514, %v4512
      %v4516 = vpop.permute.xlu0 %4515
      %v4519 = vsel %vm1696, %v4423, 0
      %v4522 = vsel %vm961, %v4510, 0
      %v4525 = vsel %vm961, %v4511, 0
      %4527 = vmatprep.subr.bf16.mxu0 0
      %4528 = vmatpush1.bf16.msra.mxu0 0
      %4529 = vmatprep.subr.bf16.mxu0 0
      %4530 = vmatpush1.bf16.msra.mxu0 0
      %4531 = vmatprep.subr.bf16.mxu0 0
      %4532 = vmatpush1.bf16.msra.mxu0 0
      %4533 = vmatprep.subr.bf16.mxu0 %v4525
      %4534 = vmatpush1.bf16.msra.mxu0 %v4522
      %4535 = vmatprep.subr.bf16.mxu0 %v4509
      %4536 = vmatpush1.bf16.msra.mxu0 %v4508
      %4537 = vmatprep.subr.bf16.mxu0 %v4507
      %4538 = vmatpush1.bf16.msra.mxu0 %v4506
      %4539 = vmatprep.subr.bf16.mxu0 %v4505
      %4540 = vmatpush1.bf16.msra.mxu0 %v4504
      %4541 = vmatprep.subr.bf16.mxu0 %v4503
      %4542 = vmatpush1.bf16.msra.mxu0 %v4502
      %4543 = vmatprep.subr.bf16.mxu0 0
      %4544 = vmatpush2.bf16.msra.mxu0 0
      %4545 = vmatprep.subr.bf16.mxu0 0
      %4546 = vmatpush2.bf16.msra.mxu0 0
      %4547 = vmatprep.subr.bf16.mxu0 0
      %4548 = vmatpush2.bf16.msra.mxu0 0
      %4549 = vmatprep.subr.bf16.mxu0 0
      %4550 = vmatpush2.bf16.msra.mxu0 0
      %4551 = vmatprep.subr.bf16.mxu0 0
      %4552 = vmatpush2.bf16.msra.mxu0 0
      %4553 = vmatprep.subr.bf16.mxu0 0
      %4554 = vmatpush2.bf16.msra.mxu0 0
      %4555 = vmatprep.subr.bf16.mxu0 0
      %4556 = vmatpush2.bf16.msra.mxu0 0
      %4557 = vmatprep.subr.bf16.mxu0 0
      %4558 = vmatpush2.bf16.msra.mxu0 0
      %4559 = vmatprep.mubr.bf16.mxu0 0
      %4560 = vmatmul.mubr.bf16.gmra.mxu0 %v4519
      %v4561 = vpop.f32.mrf.mxu0
      %v4562 = vadd.f32 %v4516, %v4561
      %v4563 = vpop.f32.mrf.mxu0
      %v4564 = vadd.f32 %v4516, %v4563
      %v4565 = vpop.f32.mrf.mxu0
      %v4566 = vpop.f32.mrf.mxu0
      %4567 = vdwg.mxu0
      %v4568 = vld [vmem:[%s45] sm:$0xf]
      %v4569 = vpack.c.bf16 %v3883, %v3883
      %v4570 = vpack.c.bf16 %v3884, %v3884
      %v4571 = vld [vmem:[%s47] sm:$0xff]
      %4573 = vset.pattern.permute.xlu0 0
      %4574 = vperm.xlu0 %4573, %v4571
      %v4575 = vpop.permute.xlu0 %4574
      %v4578 = vsel %vm1415, %v4568, 0
      %v4581 = vsel %vm961, %v4569, 0
      %v4584 = vsel %vm961, %v4570, 0
      %4586 = vmatprep.subr.bf16.mxu0 0
      %4587 = vmatpush1.bf16.msra.mxu0 0
      %4588 = vmatprep.subr.bf16.mxu0 0
      %4589 = vmatpush1.bf16.msra.mxu0 0
      %4590 = vmatprep.subr.bf16.mxu0 0
      %4591 = vmatpush1.bf16.msra.mxu0 0
      %4592 = vmatprep.subr.bf16.mxu0 0
      %4593 = vmatpush1.bf16.msra.mxu0 0
      %4594 = vmatprep.subr.bf16.mxu0 0
      %4595 = vmatpush1.bf16.msra.mxu0 0
      %4596 = vmatprep.subr.bf16.mxu0 0
      %4597 = vmatpush1.bf16.msra.mxu0 0
      %4598 = vmatprep.subr.bf16.mxu0 0
      %4599 = vmatpush1.bf16.msra.mxu0 0
      %4600 = vmatprep.subr.bf16.mxu0 %v4584
      %4601 = vmatpush1.bf16.msra.mxu0 %v4581
      %4602 = vmatprep.subr.bf16.mxu0 0
      %4603 = vmatpush2.bf16.msra.mxu0 0
      %4604 = vmatprep.subr.bf16.mxu0 0
      %4605 = vmatpush2.bf16.msra.mxu0 0
      %4606 = vmatprep.subr.bf16.mxu0 0
      %4607 = vmatpush2.bf16.msra.mxu0 0
      %4608 = vmatprep.subr.bf16.mxu0 0
      %4609 = vmatpush2.bf16.msra.mxu0 0
      %4610 = vmatprep.subr.bf16.mxu0 0
      %4611 = vmatpush2.bf16.msra.mxu0 0
      %4612 = vmatprep.subr.bf16.mxu0 0
      %4613 = vmatpush2.bf16.msra.mxu0 0
      %4614 = vmatprep.subr.bf16.mxu0 0
      %4615 = vmatpush2.bf16.msra.mxu0 0
      %4616 = vmatprep.subr.bf16.mxu0 0
      %4617 = vmatpush2.bf16.msra.mxu0 0
      %4618 = vmatprep.mubr.bf16.mxu0 0
      %4619 = vmatmul.mubr.bf16.gmra.mxu0 %v4578
      %v4620 = vpop.f32.mrf.mxu0
      %v4621 = vadd.f32 %v4575, %v4620
      %v4622 = vpop.f32.mrf.mxu0
      %v4623 = vadd.f32 %v4575, %v4622
      %v4624 = vpop.f32.mrf.mxu0
      %v4625 = vpop.f32.mrf.mxu0
      %4626 = vdwg.mxu0
      %v4627 = vadd.f32 %v4562, %v4621
      %v4628 = vadd.f32 %v4564, %v4623
      %4629 = vst [vmem:[%s950] sm:$0xff] %v4627
      %4630 = vst [vmem:[%s950 + $0x8] sm:$0xff] %v4628
      %p4631 = scmp.lt.s32.totalorder %s72, 1
      %s4632 = scalar_select %p4631, %s72, 1
      %s4633 = smul.addr %s4632, 2
      %s4634 = smul.addr %s4633, 8
      %s4635 = scalar_lea.vmem %s61, %s4634
      // Predicated region
      $region141: #{mid_block_forward.1} parent=139 // pred_check
        %p4636 = pneg %p730
      $region142: #{mid_block_forward.1} parent=139 // pred_check_branch
        %4638 = sbr.rel (%p4636) target = $region144
      $region143: #{mid_block_forward.1} parent=139 // pred_region
        _
      $region144: #{mid_block_forward.1} parent=139 // pred_fallthru
        _
    $region140: #{mid_block_forward.1} parent=5 // pred_fallthru
      _
    %p4639 = scmp.le.s32.totalorder 2, %s67
    // Predicated region
    $region145: #{mid_block_forward.1} parent=5 // pred_check
      %p4640 = pneg %p4639
    $region146: #{mid_block_forward.1} parent=5 // pred_check_branch
      %4642 = sbr.rel (%p4640) target = $region148
    $region147: #{mid_block_forward.1} parent=5 // pred_region
      %s4643 = ssub.s32 %s67, 2
      // Predicated region
      $region149: #{mid_block_forward.1} parent=147 // pred_check
        %p4644 = pneg %p736
      $region150: #{mid_block_forward.1} parent=147 // pred_check_branch
        %4646 = sbr.rel (%p4644) target = $region152
      $region151: #{mid_block_forward.1} parent=147 // pred_region
        %p4647 = scmp.lt.s32.totalorder %s73, 1
        %s4648 = scalar_select %p4647, %s73, 1
        %s4649 = smul.addr %s4648, 2
        %s4650 = smul.addr %s4649, 8
        %s4651 = scalar_lea.vmem %s61, %s4650
      $region152: #{mid_block_forward.1} parent=147 // pred_fallthru
        _
    $region148: #{mid_block_forward.1} parent=5 // pred_fallthru
      _
  $region6: #{mid_block_forward.1} parent=0 // loop_footer
    %s71 = sadd.s32 1, %s67
  $region7: #{mid_block_forward.1} parent=0 // loop_footer_branch
    %66 = sbr.rel target = $region3
  $region8: #{mid_block_forward.1} parent=0 // loop_exit
    _

</llo_original>
